<compile_context>
chip_gen: v7x
topology: tpu7x:2x2x1
jax: 0.10.0
libtpu: 0.0.40
codegen_flags: <defaults>
</compile_context>

<pallas_src>
import functools

import jax
import jax.numpy as jnp
from jax.experimental import pallas as pl
from jax.experimental.pallas import tpu as pltpu

_BN_EPS = 1e-5
_C_IN, _C1, _C2, _C3 = 3, 16, 32, 64


# ----------------------------------------------------------------------------- kernel ----
def _band_conv(tap, w_ref):
    """3x3 VALID conv as 3 banded MXU matmuls: sum_kh tap(kh) @ w_ref[kh] (f32 accum)."""
    acc = jnp.dot(tap(0), w_ref[0], preferred_element_type=jnp.float32)
    acc = acc + jnp.dot(tap(1), w_ref[1], preferred_element_type=jnp.float32)
    acc = acc + jnp.dot(tap(2), w_ref[2], preferred_element_type=jnp.float32)
    return acc


def _fused_net_kernel(x_ref,
                      w1_ref, b1_ref, w2_ref, b2_ref, w3_ref, b3_ref,
                      o_ref,
                      a1_ref, a2_ref,
                      *, block_batch, row_stride, ho3):
    rows = block_batch * row_stride - 2        # matmul M dimension: all Bt images at once

    # Make the 2 trailing scratch rows deterministic (they are read by the tap slices but
    # only ever contribute to garbage output rows that are discarded).
    a1_ref[rows:rows + 2, :] = jnp.zeros((2, a1_ref.shape[1]), a1_ref.dtype)
    a2_ref[rows:rows + 2, :] = jnp.zeros((2, a2_ref.shape[1]), a2_ref.dtype)

    def taps(ref):
        return lambda kh: ref[kh:kh + rows, :].astype(jnp.bfloat16)

    # layer 1: Conv2d(3,16,3)+bias -> ReLU     (BN1 affine folded into layer 2's weights)
    z = _band_conv(taps(x_ref), w1_ref)
    a1_ref[0:rows, :] = jnp.maximum(z + b1_ref[...], 0.0)

    # layer 2: Conv2d(16,32,3)+bias -> ReLU    (BN2 affine folded into layer 3's weights)
    z = _band_conv(taps(a1_ref), w2_ref)
    a2_ref[0:rows, :] = jnp.maximum(z + b2_ref[...], 0.0)

    # layer 3: Conv2d(32,64,3)+bias only; all Dropout2d layers are identity in eval mode.
    z = _band_conv(taps(a2_ref), w3_ref)
    y = z + b3_ref[...]
    for b in range(block_batch):               # copy each image's valid rows to the output
        o_ref[b] = y[b * row_stride:b * row_stride + ho3, :].astype(o_ref.dtype)


# -------------------------------------------------------------------- one-time packing ----
def _banded_weight(w_oihw, win, dtype=jnp.bfloat16):
    """(Cout,Cin,3,3) -> (3, Win*Cin, Wo*Cout) block-Toeplitz matrices, one per kh tap row.

    B_kh[(q+kw)*Cin + ci, q*Cout + co] = W[co, ci, kh, kw], so that
    conv_out[r, q, co] = sum_kh ( rows[r+kh, :] @ B_kh )[q*Cout + co]   (VALID, stride 1).
    """
    cout, cin, kh, kw = w_oihw.shape
    wo = win - kw + 1
    wt = jnp.transpose(w_oihw, (2, 3, 1, 0))                     # (kh, kw, cin, cout)
    p = jnp.arange(win)[None, :, None]                           # input column
    q = jnp.arange(wo)[None, None, :]                            # output column
    k = jnp.arange(kw)[:, None, None]                            # kw tap
    sel = (p == q + k).astype(w_oihw.dtype)                      # (kw, win, wo)
    band = jnp.einsum("kpq,hkio->hpiqo", sel, wt)                # (kh, win, cin, wo, cout)
    return band.reshape(kh, win * cin, wo * cout).astype(dtype)


def _tile_lanes(vec, wo):
    """Per-channel vector -> (1, wo*C) lane layout matching the (rows, W*C) activation tiles."""
    return jnp.tile(vec, wo).reshape(1, wo * vec.shape[0]).astype(jnp.float32)


def prepare_params(params, image_width):
    """Hoisted per-forward glue: BN folding + banded bf16 conv weights + lane-tiled biases."""
    w = image_width
    wo1, wo2, wo3 = w - 2, w - 4, w - 6

    s1 = params["g1"] * jax.lax.rsqrt(params["v1"] + _BN_EPS)
    t1 = params["be1"] - params["m1"] * s1
    s2 = params["g2"] * jax.lax.rsqrt(params["v2"] + _BN_EPS)
    t2 = params["be2"] - params["m2"] * s2

    # Fold BN1 into conv2 and BN2 into conv3 (in f32, before the bf16 cast):
    #   conv(a*s + t) + b = conv_scaled(a) + (b + sum_{ci,kh,kw} w[co,ci,kh,kw]*t[ci])
    # (the t-term is a per-output-channel constant because VALID conv has full windows).
    w2f = params["w2"] * s1[None, :, None, None]
    b2f = params["b2"] + jnp.einsum("oikl,i->o", params["w2"], t1)
    w3f = params["w3"] * s2[None, :, None, None]
    b3f = params["b3"] + jnp.einsum("oikl,i->o", params["w3"], t2)

    return {
        "w1": _banded_weight(params["w1"], w),    # (3, W*3,    wo1*16) bf16
        "w2": _banded_weight(w2f, wo1),           # (3, wo1*16, wo2*32) bf16
        "w3": _banded_weight(w3f, wo2),           # (3, wo2*32, wo3*64) bf16
        "b1": _tile_lanes(params["b1"], wo1),
        "b2": _tile_lanes(b2f, wo2),
        "b3": _tile_lanes(b3f, wo3),
    }


# --------------------------------------------------------------------------- forward ----
def _pick_block_batch(n):
    """Largest Bt dividing n while keeping >= 2 grid steps (feed both v7x TensorCores)."""
    if n == 1:
        return 1
    for bt in (8, 4, 2):
        if n % bt == 0 and n // bt >= 2:
            return bt
    return 1


def net_forward(prep, x_nchw):
    n, c, h, w = x_nchw.shape
    assert c == _C_IN and h >= 7 and w >= 7
    wo1, wo2 = w - 2, w - 4
    ho3, wo3 = h - 6, w - 6
    assert prep["w1"].shape[1] == w * c, "prepare_params() width mismatch"

    bt = _pick_block_batch(n)
    grid = n // bt
    assert n % bt == 0
    assert (bt * h) % 8 == 0 or grid == 1, "block row count must be sublane aligned"

    # NCHW -> NHWC -> ONE flat lane-packed row buffer (N*H, W*C): each grid step grabs a
    # (Bt*H, W*C) slab, folding the batch straight into the matmul M dimension.
    x2d = jnp.transpose(x_nchw, (0, 2, 3, 1)).reshape(n * h, w * c)

    kern = functools.partial(_fused_net_kernel,
                             block_batch=bt, row_stride=h, ho3=ho3)

    def const_spec(arr):
        idx = (0,) * arr.ndim
        return pl.BlockSpec(arr.shape, lambda i, _idx=idx: _idx)   # resident across steps

    in_specs = [
        pl.BlockSpec((bt * h, w * c), lambda i: (i, 0)),
        const_spec(prep["w1"]), const_spec(prep["b1"]),
        const_spec(prep["w2"]), const_spec(prep["b2"]),
        const_spec(prep["w3"]), const_spec(prep["b3"]),
    ]

    # Advisory cost hint: 3 taps x 3 layers of (Bt*H-2)-row matmuls per grid step.
    m_rows = bt * h - 2
    flops = 2 * 3 * m_rows * (w * _C_IN * wo1 * _C1
                              + wo1 * _C1 * wo2 * _C2
                              + wo2 * _C2 * wo3 * _C3) * grid
    weight_bytes = sum(int(v.size) * v.dtype.itemsize for v in prep.values())
    bytes_accessed = int(weight_bytes + n * h * w * c * 4 + n * ho3 * wo3 * _C3 * 4)

    out2d = pl.pallas_call(
        kern,
        out_shape=jax.ShapeDtypeStruct((n, ho3, wo3 * _C3), jnp.float32),
        grid=(grid,),
        in_specs=in_specs,
        out_specs=pl.BlockSpec((bt, ho3, wo3 * _C3), lambda i: (i, 0, 0)),  # lane-dense
        scratch_shapes=[
            pltpu.VMEM((bt * h, wo1 * _C1), jnp.float32),   # layer-1 activations (VMEM)
            pltpu.VMEM((bt * h, wo2 * _C2), jnp.float32),   # layer-2 activations (VMEM)
        ],
        compiler_params=pltpu.CompilerParams(
            dimension_semantics=("parallel",),              # shard grid over v7x's 2 TCs
            vmem_limit_bytes=32 * 1024 * 1024,
        ),
        cost_estimate=pl.CostEstimate(flops=int(flops), transcendentals=0,
                                      bytes_accessed=bytes_accessed),
    )(x2d, prep["w1"], prep["b1"], prep["w2"], prep["b2"], prep["w3"], prep["b3"])

    out = jnp.transpose(out2d.reshape(n, ho3, wo3, _C3), (0, 3, 1, 2))   # NHWC -> NCHW
    # TODO(synk): the reference `return out + x` is a shape error in PyTorch
    # ((N,64,H-6,W-6) does not broadcast with (N,3,H,W)); the residual add is omitted and
    # the Sequential output is returned instead.
    return out


# ----------------------------------------------------------------------- params / ref ----
def init_params(key):
    ks = jax.random.split(key, 16)
    p = {}
    # Conv2d(3, 16, 3, 1) + BatchNorm2d(16)
    p["w1"] = 0.1 * jax.random.normal(ks[0], (16, 3, 3, 3), jnp.float32)
    p["b1"] = 0.1 * jax.random.normal(ks[1], (16,), jnp.float32)
    p["g1"] = 1.0 + 0.1 * jax.random.normal(ks[2], (16,), jnp.float32)
    p["be1"] = 0.1 * jax.random.normal(ks[3], (16,), jnp.float32)
    p["m1"] = 0.1 * jax.random.normal(ks[4], (16,), jnp.float32)
    p["v1"] = jax.random.uniform(ks[5], (16,), jnp.float32, 0.5, 1.5)
    # Conv2d(16, 32, 3, 1) + BatchNorm2d(32)
    p["w2"] = 0.1 * jax.random.normal(ks[6], (32, 16, 3, 3), jnp.float32)
    p["b2"] = 0.1 * jax.random.normal(ks[7], (32,), jnp.float32)
    p["g2"] = 1.0 + 0.1 * jax.random.normal(ks[8], (32,), jnp.float32)
    p["be2"] = 0.1 * jax.random.normal(ks[9], (32,), jnp.float32)
    p["m2"] = 0.1 * jax.random.normal(ks[10], (32,), jnp.float32)
    p["v2"] = jax.random.uniform(ks[11], (32,), jnp.float32, 0.5, 1.5)
    # Conv2d(32, 64, 3, 1)
    p["w3"] = 0.1 * jax.random.normal(ks[12], (64, 32, 3, 3), jnp.float32)
    p["b3"] = 0.1 * jax.random.normal(ks[13], (64,), jnp.float32)
    # NOTE: self.fc1 (Linear(784,512)+BatchNorm1d) is never used in forward() -> not materialized.
    return p


def _reference_forward(params, x_nchw):
    """Pure-JAX f32 eval-mode reference of the nn.Sequential (true module math)."""
    def conv(x, wgt, b):
        y = jax.lax.conv_general_dilated(x, wgt, (1, 1), "VALID",
                                         dimension_numbers=("NCHW", "OIHW", "NCHW"))
        return y + b.reshape(1, -1, 1, 1)

    y = jnp.maximum(conv(x_nchw, params["w1"], params["b1"]), 0.0)
    s1 = params["g1"] * jax.lax.rsqrt(params["v1"] + _BN_EPS)
    y = y * s1.reshape(1, -1, 1, 1) + (params["be1"] - params["m1"] * s1).reshape(1, -1, 1, 1)
    y = jnp.maximum(conv(y, params["w2"], params["b2"]), 0.0)
    s2 = params["g2"] * jax.lax.rsqrt(params["v2"] + _BN_EPS)
    y = y * s2.reshape(1, -1, 1, 1) + (params["be2"] - params["m2"] * s2).reshape(1, -1, 1, 1)
    return conv(y, params["w3"], params["b3"])


if __name__ == "__main__":
    key = jax.random.PRNGKey(0)
    pkey, xkey = jax.random.split(key)
    params = init_params(pkey)
    # batch=8 so the batch-folding path is exercised: Bt=4 -> grid=2, M=62 per matmul.
    x = jax.random.normal(xkey, (8, 3, 16, 16), dtype=jnp.float32)   # NCHW, like PyTorch

    prep = prepare_params(params, image_width=16)                    # hoisted, once
    fwd = jax.jit(net_forward)

    out = jax.block_until_ready(fwd(prep, x))
    assert out.shape == (8, 64, 10, 10), out.shape
    assert out.dtype == jnp.float32

    ref = jax.block_until_ready(_reference_forward(params, x))
    assert bool(jnp.allclose(out, ref, rtol=1e-1, atol=1.5e-1)), "kernel/reference mismatch"

    print("KERNEL_OK")
</pallas_src>

<mosaic_0001>
module attributes {stable_mosaic.version = 11 : i64} {
  func.func @_fused_net_kernel(%arg0: i32, %arg1: memref<64x48xf32, #tpu.memory_space<vmem>>, %arg2: memref<3x48x224xbf16, #tpu.memory_space<vmem>>, %arg3: memref<1x224xf32, #tpu.memory_space<vmem>>, %arg4: memref<3x224x384xbf16, #tpu.memory_space<vmem>>, %arg5: memref<1x384xf32, #tpu.memory_space<vmem>>, %arg6: memref<3x384x640xbf16, #tpu.memory_space<vmem>>, %arg7: memref<1x640xf32, #tpu.memory_space<vmem>>, %arg8: memref<4x10x640xf32, #tpu.memory_space<vmem>>, %arg9: memref<64x224xf32, #tpu.memory_space<vmem>>, %arg10: memref<64x384xf32, #tpu.memory_space<vmem>>) attributes {dimension_semantics = [#tpu.dimension_semantics<parallel>], iteration_bounds = array<i64: 2>, scalar_prefetch = 0 : i64, scratch_operands = 2 : i64, tpu.core_type = #tpu.core_type<tc>, window_params = [{transform_indices = @transform_0, window_bounds = array<i64: 64, 48>}, {pipeline_mode = #tpu.pipeline_mode<synchronous>, transform_indices = @transform_1, window_bounds = array<i64: 3, 48, 224>}, {pipeline_mode = #tpu.pipeline_mode<synchronous>, transform_indices = @transform_2, window_bounds = array<i64: 1, 224>}, {pipeline_mode = #tpu.pipeline_mode<synchronous>, transform_indices = @transform_3, window_bounds = array<i64: 3, 224, 384>}, {pipeline_mode = #tpu.pipeline_mode<synchronous>, transform_indices = @transform_4, window_bounds = array<i64: 1, 384>}, {pipeline_mode = #tpu.pipeline_mode<synchronous>, transform_indices = @transform_5, window_bounds = array<i64: 3, 384, 640>}, {pipeline_mode = #tpu.pipeline_mode<synchronous>, transform_indices = @transform_6, window_bounds = array<i64: 1, 640>}, {transform_indices = @transform_7, window_bounds = array<i64: 4, 10, 640>}]} {
    %cst = arith.constant 0.000000e+00 : f32
    %0 = vector.broadcast %cst : f32 to vector<2x224xf32>
    %c62 = arith.constant 62 : index
    %c0 = arith.constant 0 : index
    %1 = vector.load %arg9[%c62, %c0] : memref<64x224xf32, #tpu.memory_space<vmem>>, vector<2x224xf32>
    tpu.vector_store %arg9[%c62, %c0], %0 {strides = array<i32>} : memref<64x224xf32, #tpu.memory_space<vmem>>, vector<2x224xf32>,
    %cst_0 = arith.constant 0.000000e+00 : f32
    %2 = vector.broadcast %cst_0 : f32 to vector<2x384xf32>
    %c62_1 = arith.constant 62 : index
    %c0_2 = arith.constant 0 : index
    %3 = vector.load %arg10[%c62_1, %c0_2] : memref<64x384xf32, #tpu.memory_space<vmem>>, vector<2x384xf32>
    tpu.vector_store %arg10[%c62_1, %c0_2], %2 {strides = array<i32>} : memref<64x384xf32, #tpu.memory_space<vmem>>, vector<2x384xf32>,
    %c0_3 = arith.constant 0 : index
    %c0_4 = arith.constant 0 : index
    %4 = vector.load %arg1[%c0_3, %c0_4] : memref<64x48xf32, #tpu.memory_space<vmem>>, vector<62x48xf32>
    %5 = arith.truncf %4 : vector<62x48xf32> to vector<62x48xbf16>
    %c0_5 = arith.constant 0 : index
    %c0_6 = arith.constant 0 : index
    %c0_7 = arith.constant 0 : index
    %6 = vector.load %arg2[%c0_5, %c0_6, %c0_7] : memref<3x48x224xbf16, #tpu.memory_space<vmem>>, vector<1x48x224xbf16>
    %7 = vector.shape_cast %6 : vector<1x48x224xbf16> to vector<48x224xbf16>
    %cst_8 = arith.constant dense<0.000000e+00> : vector<62x224xf32>
    %8 = tpu.matmul %5, %7, %cst_8 {dimension_numbers = #tpu.dot_dimension_numbers<[1], [0], [0], [1], [0, 0, 1, 1], [], []>} : vector<62x48xbf16>, vector<48x224xbf16>, vector<62x224xf32> -> vector<62x224xf32>
    %c1 = arith.constant 1 : index
    %c0_9 = arith.constant 0 : index
    %9 = vector.load %arg1[%c1, %c0_9] : memref<64x48xf32, #tpu.memory_space<vmem>>, vector<62x48xf32>
    %10 = arith.truncf %9 : vector<62x48xf32> to vector<62x48xbf16>
    %c1_10 = arith.constant 1 : index
    %c0_11 = arith.constant 0 : index
    %c0_12 = arith.constant 0 : index
    %11 = vector.load %arg2[%c1_10, %c0_11, %c0_12] : memref<3x48x224xbf16, #tpu.memory_space<vmem>>, vector<1x48x224xbf16>
    %12 = vector.shape_cast %11 : vector<1x48x224xbf16> to vector<48x224xbf16>
    %cst_13 = arith.constant dense<0.000000e+00> : vector<62x224xf32>
    %13 = tpu.matmul %10, %12, %cst_13 {dimension_numbers = #tpu.dot_dimension_numbers<[1], [0], [0], [1], [0, 0, 1, 1], [], []>} : vector<62x48xbf16>, vector<48x224xbf16>, vector<62x224xf32> -> vector<62x224xf32>
    %14 = arith.addf %8, %13 : vector<62x224xf32>
    %c2 = arith.constant 2 : index
    %c0_14 = arith.constant 0 : index
    %15 = vector.load %arg1[%c2, %c0_14] : memref<64x48xf32, #tpu.memory_space<vmem>>, vector<62x48xf32>
    %16 = arith.truncf %15 : vector<62x48xf32> to vector<62x48xbf16>
    %c2_15 = arith.constant 2 : index
    %c0_16 = arith.constant 0 : index
    %c0_17 = arith.constant 0 : index
    %17 = vector.load %arg2[%c2_15, %c0_16, %c0_17] : memref<3x48x224xbf16, #tpu.memory_space<vmem>>, vector<1x48x224xbf16>
    %18 = vector.shape_cast %17 : vector<1x48x224xbf16> to vector<48x224xbf16>
    %cst_18 = arith.constant dense<0.000000e+00> : vector<62x224xf32>
    %19 = tpu.matmul %16, %18, %cst_18 {dimension_numbers = #tpu.dot_dimension_numbers<[1], [0], [0], [1], [0, 0, 1, 1], [], []>} : vector<62x48xbf16>, vector<48x224xbf16>, vector<62x224xf32> -> vector<62x224xf32>
    %20 = arith.addf %14, %19 : vector<62x224xf32>
    %c0_19 = arith.constant 0 : index
    %c0_20 = arith.constant 0 : index
    %21 = vector.load %arg3[%c0_19, %c0_20] : memref<1x224xf32, #tpu.memory_space<vmem>>, vector<1x224xf32>
    %22 = vector.broadcast %21 : vector<1x224xf32> to vector<62x224xf32>
    %23 = arith.addf %20, %22 : vector<62x224xf32>
    %cst_21 = arith.constant 0.000000e+00 : f32
    %24 = vector.broadcast %cst_21 : f32 to vector<62x224xf32>
    %25 = arith.maximumf %23, %24 : vector<62x224xf32>
    %c0_22 = arith.constant 0 : index
    %c0_23 = arith.constant 0 : index
    %26 = vector.load %arg9[%c0_22, %c0_23] : memref<64x224xf32, #tpu.memory_space<vmem>>, vector<62x224xf32>
    tpu.vector_store %arg9[%c0_22, %c0_23], %25 {strides = array<i32>} : memref<64x224xf32, #tpu.memory_space<vmem>>, vector<62x224xf32>,
    %c0_24 = arith.constant 0 : index
    %c0_25 = arith.constant 0 : index
    %27 = vector.load %arg9[%c0_24, %c0_25] : memref<64x224xf32, #tpu.memory_space<vmem>>, vector<62x224xf32>
    %28 = arith.truncf %27 : vector<62x224xf32> to vector<62x224xbf16>
    %c0_26 = arith.constant 0 : index
    %c0_27 = arith.constant 0 : index
    %c0_28 = arith.constant 0 : index
    %29 = vector.load %arg4[%c0_26, %c0_27, %c0_28] : memref<3x224x384xbf16, #tpu.memory_space<vmem>>, vector<1x224x384xbf16>
    %30 = vector.shape_cast %29 : vector<1x224x384xbf16> to vector<224x384xbf16>
    %cst_29 = arith.constant dense<0.000000e+00> : vector<62x384xf32>
    %31 = tpu.matmul %28, %30, %cst_29 {dimension_numbers = #tpu.dot_dimension_numbers<[1], [0], [0], [1], [0, 0, 1, 1], [], []>} : vector<62x224xbf16>, vector<224x384xbf16>, vector<62x384xf32> -> vector<62x384xf32>
    %c1_30 = arith.constant 1 : index
    %c0_31 = arith.constant 0 : index
    %32 = vector.load %arg9[%c1_30, %c0_31] : memref<64x224xf32, #tpu.memory_space<vmem>>, vector<62x224xf32>
    %33 = arith.truncf %32 : vector<62x224xf32> to vector<62x224xbf16>
    %c1_32 = arith.constant 1 : index
    %c0_33 = arith.constant 0 : index
    %c0_34 = arith.constant 0 : index
    %34 = vector.load %arg4[%c1_32, %c0_33, %c0_34] : memref<3x224x384xbf16, #tpu.memory_space<vmem>>, vector<1x224x384xbf16>
    %35 = vector.shape_cast %34 : vector<1x224x384xbf16> to vector<224x384xbf16>
    %cst_35 = arith.constant dense<0.000000e+00> : vector<62x384xf32>
    %36 = tpu.matmul %33, %35, %cst_35 {dimension_numbers = #tpu.dot_dimension_numbers<[1], [0], [0], [1], [0, 0, 1, 1], [], []>} : vector<62x224xbf16>, vector<224x384xbf16>, vector<62x384xf32> -> vector<62x384xf32>
    %37 = arith.addf %31, %36 : vector<62x384xf32>
    %c2_36 = arith.constant 2 : index
    %c0_37 = arith.constant 0 : index
    %38 = vector.load %arg9[%c2_36, %c0_37] : memref<64x224xf32, #tpu.memory_space<vmem>>, vector<62x224xf32>
    %39 = arith.truncf %38 : vector<62x224xf32> to vector<62x224xbf16>
    %c2_38 = arith.constant 2 : index
    %c0_39 = arith.constant 0 : index
    %c0_40 = arith.constant 0 : index
    %40 = vector.load %arg4[%c2_38, %c0_39, %c0_40] : memref<3x224x384xbf16, #tpu.memory_space<vmem>>, vector<1x224x384xbf16>
    %41 = vector.shape_cast %40 : vector<1x224x384xbf16> to vector<224x384xbf16>
    %cst_41 = arith.constant dense<0.000000e+00> : vector<62x384xf32>
    %42 = tpu.matmul %39, %41, %cst_41 {dimension_numbers = #tpu.dot_dimension_numbers<[1], [0], [0], [1], [0, 0, 1, 1], [], []>} : vector<62x224xbf16>, vector<224x384xbf16>, vector<62x384xf32> -> vector<62x384xf32>
    %43 = arith.addf %37, %42 : vector<62x384xf32>
    %c0_42 = arith.constant 0 : index
    %c0_43 = arith.constant 0 : index
    %44 = vector.load %arg5[%c0_42, %c0_43] : memref<1x384xf32, #tpu.memory_space<vmem>>, vector<1x384xf32>
    %45 = vector.broadcast %44 : vector<1x384xf32> to vector<62x384xf32>
    %46 = arith.addf %43, %45 : vector<62x384xf32>
    %cst_44 = arith.constant 0.000000e+00 : f32
    %47 = vector.broadcast %cst_44 : f32 to vector<62x384xf32>
    %48 = arith.maximumf %46, %47 : vector<62x384xf32>
    %c0_45 = arith.constant 0 : index
    %c0_46 = arith.constant 0 : index
    %49 = vector.load %arg10[%c0_45, %c0_46] : memref<64x384xf32, #tpu.memory_space<vmem>>, vector<62x384xf32>
    tpu.vector_store %arg10[%c0_45, %c0_46], %48 {strides = array<i32>} : memref<64x384xf32, #tpu.memory_space<vmem>>, vector<62x384xf32>,
    %c0_47 = arith.constant 0 : index
    %c0_48 = arith.constant 0 : index
    %50 = vector.load %arg10[%c0_47, %c0_48] : memref<64x384xf32, #tpu.memory_space<vmem>>, vector<62x384xf32>
    %51 = arith.truncf %50 : vector<62x384xf32> to vector<62x384xbf16>
    %c0_49 = arith.constant 0 : index
    %c0_50 = arith.constant 0 : index
    %c0_51 = arith.constant 0 : index
    %52 = vector.load %arg6[%c0_49, %c0_50, %c0_51] : memref<3x384x640xbf16, #tpu.memory_space<vmem>>, vector<1x384x640xbf16>
    %53 = vector.shape_cast %52 : vector<1x384x640xbf16> to vector<384x640xbf16>
    %cst_52 = arith.constant dense<0.000000e+00> : vector<62x640xf32>
    %54 = tpu.matmul %51, %53, %cst_52 {dimension_numbers = #tpu.dot_dimension_numbers<[1], [0], [0], [1], [0, 0, 1, 1], [], []>} : vector<62x384xbf16>, vector<384x640xbf16>, vector<62x640xf32> -> vector<62x640xf32>
    %c1_53 = arith.constant 1 : index
    %c0_54 = arith.constant 0 : index
    %55 = vector.load %arg10[%c1_53, %c0_54] : memref<64x384xf32, #tpu.memory_space<vmem>>, vector<62x384xf32>
    %56 = arith.truncf %55 : vector<62x384xf32> to vector<62x384xbf16>
    %c1_55 = arith.constant 1 : index
    %c0_56 = arith.constant 0 : index
    %c0_57 = arith.constant 0 : index
    %57 = vector.load %arg6[%c1_55, %c0_56, %c0_57] : memref<3x384x640xbf16, #tpu.memory_space<vmem>>, vector<1x384x640xbf16>
    %58 = vector.shape_cast %57 : vector<1x384x640xbf16> to vector<384x640xbf16>
    %cst_58 = arith.constant dense<0.000000e+00> : vector<62x640xf32>
    %59 = tpu.matmul %56, %58, %cst_58 {dimension_numbers = #tpu.dot_dimension_numbers<[1], [0], [0], [1], [0, 0, 1, 1], [], []>} : vector<62x384xbf16>, vector<384x640xbf16>, vector<62x640xf32> -> vector<62x640xf32>
    %60 = arith.addf %54, %59 : vector<62x640xf32>
    %c2_59 = arith.constant 2 : index
    %c0_60 = arith.constant 0 : index
    %61 = vector.load %arg10[%c2_59, %c0_60] : memref<64x384xf32, #tpu.memory_space<vmem>>, vector<62x384xf32>
    %62 = arith.truncf %61 : vector<62x384xf32> to vector<62x384xbf16>
    %c2_61 = arith.constant 2 : index
    %c0_62 = arith.constant 0 : index
    %c0_63 = arith.constant 0 : index
    %63 = vector.load %arg6[%c2_61, %c0_62, %c0_63] : memref<3x384x640xbf16, #tpu.memory_space<vmem>>, vector<1x384x640xbf16>
    %64 = vector.shape_cast %63 : vector<1x384x640xbf16> to vector<384x640xbf16>
    %cst_64 = arith.constant dense<0.000000e+00> : vector<62x640xf32>
    %65 = tpu.matmul %62, %64, %cst_64 {dimension_numbers = #tpu.dot_dimension_numbers<[1], [0], [0], [1], [0, 0, 1, 1], [], []>} : vector<62x384xbf16>, vector<384x640xbf16>, vector<62x640xf32> -> vector<62x640xf32>
    %66 = arith.addf %60, %65 : vector<62x640xf32>
    %c0_65 = arith.constant 0 : index
    %c0_66 = arith.constant 0 : index
    %67 = vector.load %arg7[%c0_65, %c0_66] : memref<1x640xf32, #tpu.memory_space<vmem>>, vector<1x640xf32>
    %68 = vector.broadcast %67 : vector<1x640xf32> to vector<62x640xf32>
    %69 = arith.addf %66, %68 : vector<62x640xf32>
    %70 = vector.extract_strided_slice %69 {offsets = [0, 0], sizes = [10, 640], strides = [1, 1]} : vector<62x640xf32> to vector<10x640xf32>
    %c0_67 = arith.constant 0 : index
    %c0_68 = arith.constant 0 : index
    %c0_69 = arith.constant 0 : index
    %71 = vector.load %arg8[%c0_67, %c0_68, %c0_69] : memref<4x10x640xf32, #tpu.memory_space<vmem>>, vector<1x10x640xf32>
    %72 = vector.shape_cast %71 : vector<1x10x640xf32> to vector<10x640xf32>
    %73 = vector.shape_cast %70 : vector<10x640xf32> to vector<1x10x640xf32>
    tpu.vector_store %arg8[%c0_67, %c0_68, %c0_69], %73 {strides = array<i32>} : memref<4x10x640xf32, #tpu.memory_space<vmem>>, vector<1x10x640xf32>,
    %74 = vector.extract_strided_slice %69 {offsets = [16, 0], sizes = [10, 640], strides = [1, 1]} : vector<62x640xf32> to vector<10x640xf32>
    %c1_70 = arith.constant 1 : index
    %c0_71 = arith.constant 0 : index
    %c0_72 = arith.constant 0 : index
    %75 = vector.load %arg8[%c1_70, %c0_71, %c0_72] : memref<4x10x640xf32, #tpu.memory_space<vmem>>, vector<1x10x640xf32>
    %76 = vector.shape_cast %75 : vector<1x10x640xf32> to vector<10x640xf32>
    %77 = vector.shape_cast %74 : vector<10x640xf32> to vector<1x10x640xf32>
    tpu.vector_store %arg8[%c1_70, %c0_71, %c0_72], %77 {strides = array<i32>} : memref<4x10x640xf32, #tpu.memory_space<vmem>>, vector<1x10x640xf32>,
    %78 = vector.extract_strided_slice %69 {offsets = [32, 0], sizes = [10, 640], strides = [1, 1]} : vector<62x640xf32> to vector<10x640xf32>
    %c2_73 = arith.constant 2 : index
    %c0_74 = arith.constant 0 : index
    %c0_75 = arith.constant 0 : index
    %79 = vector.load %arg8[%c2_73, %c0_74, %c0_75] : memref<4x10x640xf32, #tpu.memory_space<vmem>>, vector<1x10x640xf32>
    %80 = vector.shape_cast %79 : vector<1x10x640xf32> to vector<10x640xf32>
    %81 = vector.shape_cast %78 : vector<10x640xf32> to vector<1x10x640xf32>
    tpu.vector_store %arg8[%c2_73, %c0_74, %c0_75], %81 {strides = array<i32>} : memref<4x10x640xf32, #tpu.memory_space<vmem>>, vector<1x10x640xf32>,
    %82 = vector.extract_strided_slice %69 {offsets = [48, 0], sizes = [10, 640], strides = [1, 1]} : vector<62x640xf32> to vector<10x640xf32>
    %c3 = arith.constant 3 : index
    %c0_76 = arith.constant 0 : index
    %c0_77 = arith.constant 0 : index
    %83 = vector.load %arg8[%c3, %c0_76, %c0_77] : memref<4x10x640xf32, #tpu.memory_space<vmem>>, vector<1x10x640xf32>
    %84 = vector.shape_cast %83 : vector<1x10x640xf32> to vector<10x640xf32>
    %85 = vector.shape_cast %82 : vector<10x640xf32> to vector<1x10x640xf32>
    tpu.vector_store %arg8[%c3, %c0_76, %c0_77], %85 {strides = array<i32>} : memref<4x10x640xf32, #tpu.memory_space<vmem>>, vector<1x10x640xf32>,
    return
  }
  func.func @transform_0(%arg0: i32) -> (i32, i32) {
    %c0_i32 = arith.constant 0 : i32
    %c0_i32_0 = arith.constant 0 : i32
    return %arg0, %c0_i32 : i32, i32
  }
  func.func @transform_1(%arg0: i32) -> (i32, i32, i32) {
    %c0_i32 = arith.constant 0 : i32
    %c0_i32_0 = arith.constant 0 : i32
    %c0_i32_1 = arith.constant 0 : i32
    %c0_i32_2 = arith.constant 0 : i32
    return %c0_i32, %c0_i32_0, %c0_i32_1 : i32, i32, i32
  }
  func.func @transform_2(%arg0: i32) -> (i32, i32) {
    %c0_i32 = arith.constant 0 : i32
    %c0_i32_0 = arith.constant 0 : i32
    %c0_i32_1 = arith.constant 0 : i32
    return %c0_i32, %c0_i32_0 : i32, i32
  }
  func.func @transform_3(%arg0: i32) -> (i32, i32, i32) {
    %c0_i32 = arith.constant 0 : i32
    %c0_i32_0 = arith.constant 0 : i32
    %c0_i32_1 = arith.constant 0 : i32
    %c0_i32_2 = arith.constant 0 : i32
    return %c0_i32, %c0_i32_0, %c0_i32_1 : i32, i32, i32
  }
  func.func @transform_4(%arg0: i32) -> (i32, i32) {
    %c0_i32 = arith.constant 0 : i32
    %c0_i32_0 = arith.constant 0 : i32
    %c0_i32_1 = arith.constant 0 : i32
    return %c0_i32, %c0_i32_0 : i32, i32
  }
  func.func @transform_5(%arg0: i32) -> (i32, i32, i32) {
    %c0_i32 = arith.constant 0 : i32
    %c0_i32_0 = arith.constant 0 : i32
    %c0_i32_1 = arith.constant 0 : i32
    %c0_i32_2 = arith.constant 0 : i32
    return %c0_i32, %c0_i32_0, %c0_i32_1 : i32, i32, i32
  }
  func.func @transform_6(%arg0: i32) -> (i32, i32) {
    %c0_i32 = arith.constant 0 : i32
    %c0_i32_0 = arith.constant 0 : i32
    %c0_i32_1 = arith.constant 0 : i32
    return %c0_i32, %c0_i32_0 : i32, i32
  }
  func.func @transform_7(%arg0: i32) -> (i32, i32, i32) {
    %c0_i32 = arith.constant 0 : i32
    %c0_i32_0 = arith.constant 0 : i32
    %c0_i32_1 = arith.constant 0 : i32
    return %arg0, %c0_i32, %c0_i32_0 : i32, i32, i32
  }
}

</mosaic_0001>

<llo_original>
// kernel: net_forward.1
$region0: #{net_forward.1}
  #allocation0 [shape = 'u32[]', space=smem, size = 0x4, offset = 0x4, fixed_abs, tag = 'smem constant byte address 0x4 - core index']
  #allocation1 [shape = 'u32[144,128]{1,0:T(1,128)}', space=vmem, size = 0x12000, scoped, tag = 'internal scratch']
  #allocation2 [shape = 'f32[64,224]{1,0:T(8,128)}', space=vmem, size = 0x10000, scoped, tag = 'scratch operand']
  #allocation3 [shape = 'f32[64,384]{1,0:T(8,128)}', space=vmem, size = 0x18000, scoped, tag = 'scratch operand']
  %s0 = inlined_call_operand.vmem [shape: f32[128,48], index: 0, kind: input, shape index: {}]
  %s1 = inlined_call_operand.hbm [shape: bf16[3,48,224], index: 1, kind: input, shape index: {}]
  %s2 = inlined_call_operand.hbm [shape: f32[1,224], index: 2, kind: input, shape index: {}]
  %s3 = inlined_call_operand.hbm [shape: bf16[3,224,384], index: 3, kind: input, shape index: {}]
  %s4 = inlined_call_operand.hbm [shape: f32[1,384], index: 4, kind: input, shape index: {}]
  %s5 = inlined_call_operand.hbm [shape: bf16[3,384,640], index: 5, kind: input, shape index: {}]
  %s6 = inlined_call_operand.hbm [shape: f32[1,640], index: 6, kind: input, shape index: {}]
  %s7 = inlined_call_operand.vmem [shape: f32[8,10,640], index: 7, kind: output, shape index: {}]
  %s8 = sld [smem:[#allocation0]]
  $region85: #{net_forward.1} parent=0
    _
  %s10 = ssub.s32 1, %s8
  %s11 = scalar_select 0, %s10, %s8
  $region1: #{net_forward.1} parent=0
    #allocation4 [shape = 'u8[73728]{0}', space=vmem, size = 0x12000, scoped, tag = 'input window, operand 1, single buffered']
    #allocation5 [shape = 's32[2]{0}', space=sflag, size = 0x8, scoped, tag = 'scoped memory for net_forward.1']
    #allocation6 [shape = 'u8[1024]{0}', space=vmem, size = 0x400, scoped, tag = 'input window, operand 2, single buffered']
    #allocation7 [shape = 's32[1]{0}', space=sflag, size = 0x4, scoped, tag = 'scoped memory for net_forward.1']
    #allocation8 [shape = 'u8[516096]{0}', space=vmem, size = 0x7e000, scoped, tag = 'input window, operand 3, single buffered']
    #allocation9 [shape = 'u8[1536]{0}', space=vmem, size = 0x800, scoped, tag = 'input window, operand 4, single buffered']
    #allocation10 [shape = 's32[1]{0}', space=sflag, size = 0x4, scoped, tag = 'scoped memory for net_forward.1']
    #allocation11 [shape = 'u8[1474560]{0}', space=vmem, size = 0x168000, scoped, tag = 'input window, operand 5, single buffered']
    #allocation12 [shape = 'u8[2560]{0}', space=vmem, size = 0xc00, scoped, tag = 'input window, operand 6, single buffered']
    #allocation13 [shape = 's32[1]{0}', space=sflag, size = 0x4, scoped, tag = 'scoped memory for net_forward.1']
    %12 = vsyncpa [#allocation5], 0
    %13 = vsyncpa [#allocation7], 0
    %14 = vsyncpa [#allocation10], 0
    %15 = vsyncpa [#allocation13], 0
    loop: start=0, step=1, limit=4
    $region2: #{net_forward.1} parent=1 // loop_pre_header
      _
    $region3: #{net_forward.1} parent=1 // loop_header
      %s17 = sphi 0, %s21
      %p18 = scmp.ge.s32.totalorder %s17, 4
      %s27 = sphi 0, %s29
      %s30 = sphi 0, %s27
      %s31 = sphi 0, %s30
      %s47 = sphi 0, %s31
      %s51 = sphi 0, %s51
      %s53 = sphi 0, %s51
      %s54 = sphi 0, %s53
      %s68 = sphi 0, %s54
      %s72 = sphi 0, %s72
      %s74 = sphi 0, %s72
      %s75 = sphi 0, %s74
      %s89 = sphi 0, %s75
      %s93 = sphi 0, %s93
      %s95 = sphi 0, %s93
      %s96 = sphi 0, %s95
      %s110 = sphi 0, %s96
      %s114 = sphi 0, %s114
      %s116 = sphi 0, %s114
      %s117 = sphi 0, %s116
      %s131 = sphi 0, %s117
      %s135 = sphi 0, %s135
      %s137 = sphi 0, %s135
      %s138 = sphi 0, %s137
      %s152 = sphi 0, %s138
      %s156 = sphi 0, %s156
      %s158 = sphi 0, %s156
      %s159 = sphi 0, %s158
      %s173 = sphi 0, %s159
      %s179 = sphi 0, %s181
      %s182 = sphi 0, %s179
      %s183 = sphi 0, %s182
      %s199 = sphi 0, %s183
    $region4: #{net_forward.1} parent=1 // loop_header_branch
      %20 = sbr.rel (%p18) target = $region8
    $region5: #{net_forward.1} parent=1 // loop_body
      %s22 = ssub.s32 %s17, 1
      %s23 = ssub.s32 %s17, 2
      %s24 = sadd.s32 %s17, 1
      %s25 = ssub.s32 %s17, %s24
      %p26 = scmp.eq.s32.totalorder %s25, 0
      %s28 = sadd.s32 %s27, 1
      %s29 = scalar_select %p26, %s27, %s28
      %p32 = pneg %p26
      %p33 = scmp.eq.s32.totalorder %s17, 1
      %p34 = por %p32, %p33
      %p35 = scmp.ne.s32.totalorder %s27, %s30
      %p36 = scmp.eq.s32.totalorder %s17, 0
      %p37 = por %p35, %p36
      %p38 = scmp.ne.s32.totalorder %s27, %s30
      %p39 = scmp.eq.s32.totalorder %s22, 1
      %p40 = por %p38, %p39
      %p41 = scmp.ne.s32.totalorder %s30, %s31
      %p42 = scmp.eq.s32.totalorder %s22, 0
      %p43 = por %p41, %p42
      %p44 = scmp.ne.s32.totalorder %s30, %s31
      %p45 = scmp.eq.s32.totalorder %s23, 1
      %p46 = por %p44, %p45
      %p48 = scmp.ne.s32.totalorder %s31, %s47
      %p49 = scmp.eq.s32.totalorder %s23, 0
      %p50 = por %p48, %p49
      %s52 = sadd.s32 %s51, 1
      %p55 = scmp.eq.s32.totalorder %s17, 1
      %p56 = scmp.ne.s32.totalorder %s51, %s53
      %p57 = scmp.eq.s32.totalorder %s17, 0
      %p58 = por %p56, %p57
      %p59 = scmp.ne.s32.totalorder %s51, %s53
      %p60 = scmp.eq.s32.totalorder %s22, 1
      %p61 = por %p59, %p60
      %p62 = scmp.ne.s32.totalorder %s53, %s54
      %p63 = scmp.eq.s32.totalorder %s22, 0
      %p64 = por %p62, %p63
      %p65 = scmp.ne.s32.totalorder %s53, %s54
      %p66 = scmp.eq.s32.totalorder %s23, 1
      %p67 = por %p65, %p66
      %p69 = scmp.ne.s32.totalorder %s54, %s68
      %p70 = scmp.eq.s32.totalorder %s23, 0
      %p71 = por %p69, %p70
      %s73 = sadd.s32 %s72, 1
      %p76 = scmp.eq.s32.totalorder %s17, 1
      %p77 = scmp.ne.s32.totalorder %s72, %s74
      %p78 = scmp.eq.s32.totalorder %s17, 0
      %p79 = por %p77, %p78
      %p80 = scmp.ne.s32.totalorder %s72, %s74
      %p81 = scmp.eq.s32.totalorder %s22, 1
      %p82 = por %p80, %p81
      %p83 = scmp.ne.s32.totalorder %s74, %s75
      %p84 = scmp.eq.s32.totalorder %s22, 0
      %p85 = por %p83, %p84
      %p86 = scmp.ne.s32.totalorder %s74, %s75
      %p87 = scmp.eq.s32.totalorder %s23, 1
      %p88 = por %p86, %p87
      %p90 = scmp.ne.s32.totalorder %s75, %s89
      %p91 = scmp.eq.s32.totalorder %s23, 0
      %p92 = por %p90, %p91
      %s94 = sadd.s32 %s93, 1
      %p97 = scmp.eq.s32.totalorder %s17, 1
      %p98 = scmp.ne.s32.totalorder %s93, %s95
      %p99 = scmp.eq.s32.totalorder %s17, 0
      %p100 = por %p98, %p99
      %p101 = scmp.ne.s32.totalorder %s93, %s95
      %p102 = scmp.eq.s32.totalorder %s22, 1
      %p103 = por %p101, %p102
      %p104 = scmp.ne.s32.totalorder %s95, %s96
      %p105 = scmp.eq.s32.totalorder %s22, 0
      %p106 = por %p104, %p105
      %p107 = scmp.ne.s32.totalorder %s95, %s96
      %p108 = scmp.eq.s32.totalorder %s23, 1
      %p109 = por %p107, %p108
      %p111 = scmp.ne.s32.totalorder %s96, %s110
      %p112 = scmp.eq.s32.totalorder %s23, 0
      %p113 = por %p111, %p112
      %s115 = sadd.s32 %s114, 1
      %p118 = scmp.eq.s32.totalorder %s17, 1
      %p119 = scmp.ne.s32.totalorder %s114, %s116
      %p120 = scmp.eq.s32.totalorder %s17, 0
      %p121 = por %p119, %p120
      %p122 = scmp.ne.s32.totalorder %s114, %s116
      %p123 = scmp.eq.s32.totalorder %s22, 1
      %p124 = por %p122, %p123
      %p125 = scmp.ne.s32.totalorder %s116, %s117
      %p126 = scmp.eq.s32.totalorder %s22, 0
      %p127 = por %p125, %p126
      %p128 = scmp.ne.s32.totalorder %s116, %s117
      %p129 = scmp.eq.s32.totalorder %s23, 1
      %p130 = por %p128, %p129
      %p132 = scmp.ne.s32.totalorder %s117, %s131
      %p133 = scmp.eq.s32.totalorder %s23, 0
      %p134 = por %p132, %p133
      %s136 = sadd.s32 %s135, 1
      %p139 = scmp.eq.s32.totalorder %s17, 1
      %p140 = scmp.ne.s32.totalorder %s135, %s137
      %p141 = scmp.eq.s32.totalorder %s17, 0
      %p142 = por %p140, %p141
      %p143 = scmp.ne.s32.totalorder %s135, %s137
      %p144 = scmp.eq.s32.totalorder %s22, 1
      %p145 = por %p143, %p144
      %p146 = scmp.ne.s32.totalorder %s137, %s138
      %p147 = scmp.eq.s32.totalorder %s22, 0
      %p148 = por %p146, %p147
      %p149 = scmp.ne.s32.totalorder %s137, %s138
      %p150 = scmp.eq.s32.totalorder %s23, 1
      %p151 = por %p149, %p150
      %p153 = scmp.ne.s32.totalorder %s138, %s152
      %p154 = scmp.eq.s32.totalorder %s23, 0
      %p155 = por %p153, %p154
      %s157 = sadd.s32 %s156, 1
      %p160 = scmp.eq.s32.totalorder %s17, 1
      %p161 = scmp.ne.s32.totalorder %s156, %s158
      %p162 = scmp.eq.s32.totalorder %s17, 0
      %p163 = por %p161, %p162
      %p164 = scmp.ne.s32.totalorder %s156, %s158
      %p165 = scmp.eq.s32.totalorder %s22, 1
      %p166 = por %p164, %p165
      %p167 = scmp.ne.s32.totalorder %s158, %s159
      %p168 = scmp.eq.s32.totalorder %s22, 0
      %p169 = por %p167, %p168
      %p170 = scmp.ne.s32.totalorder %s158, %s159
      %p171 = scmp.eq.s32.totalorder %s23, 1
      %p172 = por %p170, %p171
      %p174 = scmp.ne.s32.totalorder %s159, %s173
      %p175 = scmp.eq.s32.totalorder %s23, 0
      %p176 = por %p174, %p175
      %s177 = ssub.s32 %s17, %s24
      %p178 = scmp.eq.s32.totalorder %s177, 0
      %s180 = sadd.s32 %s179, 1
      %s181 = scalar_select %p178, %s179, %s180
      %p184 = pneg %p178
      %p185 = scmp.eq.s32.totalorder %s17, 1
      %p186 = por %p184, %p185
      %p187 = scmp.ne.s32.totalorder %s179, %s182
      %p188 = scmp.eq.s32.totalorder %s17, 0
      %p189 = por %p187, %p188
      %p190 = scmp.ne.s32.totalorder %s179, %s182
      %p191 = scmp.eq.s32.totalorder %s22, 1
      %p192 = por %p190, %p191
      %p193 = scmp.ne.s32.totalorder %s182, %s183
      %p194 = scmp.eq.s32.totalorder %s22, 0
      %p195 = por %p193, %p194
      %p196 = scmp.ne.s32.totalorder %s182, %s183
      %p197 = scmp.eq.s32.totalorder %s23, 1
      %p198 = por %p196, %p197
      %p200 = scmp.ne.s32.totalorder %s183, %s199
      %p201 = scmp.eq.s32.totalorder %s23, 0
      %p202 = por %p200, %p201
      %p203 = scmp.le.s32.totalorder 1, %s17
      %p204 = scmp.lt.s32.totalorder %s17, 3
      %p205 = pnand %p203, %p204
      %p206 = pneg %p205
      // Predicated region
      $region9: #{net_forward.1} parent=5 // pred_check
        _
      $region10: #{net_forward.1} parent=5 // pred_check_branch
        %208 = sbr.rel (%p205) target = $region12
      $region11: #{net_forward.1} parent=5 // pred_region
        %s209 = ssub.s32 %s17, 1
        // Predicated region
        $region13: #{net_forward.1} parent=11 // pred_check
          %p210 = pneg %p64
        $region14: #{net_forward.1} parent=11 // pred_check_branch
          %212 = sbr.rel (%p210) target = $region16
        $region15: #{net_forward.1} parent=11 // pred_region
          %s214 = ssub.s32 2304, 2304
          %215 = vsyncadd [#allocation5], %s214
          %s216 = sshll.u32 [#allocation4], 4
          %s217 = int_to_ptr.vmem [resolvable:$true] %s216
          %222 = dma.hbm_to_vmem [thread:$0]  %s1, 2304, %s217, [#allocation5], 128, 128, 8
        $region16: #{net_forward.1} parent=11 // pred_fallthru
          _
        // Predicated region
        $region17: #{net_forward.1} parent=11 // pred_check
          %p223 = pneg %p85
        $region18: #{net_forward.1} parent=11 // pred_check_branch
          %225 = sbr.rel (%p223) target = $region20
        $region19: #{net_forward.1} parent=11 // pred_region
          %s227 = ssub.s32 32, 32
          %228 = vsyncadd [#allocation7], %s227
          %s230 = sshll.u32 [#allocation6], 4
          %s231 = int_to_ptr.vmem [resolvable:$true] %s230
          %233 = dma.hbm_to_vmem [thread:$0]  %s2, 32, %s231, [#allocation7]
        $region20: #{net_forward.1} parent=11 // pred_fallthru
          _
        // Predicated region
        $region21: #{net_forward.1} parent=11 // pred_check
          %p234 = pneg %p106
        $region22: #{net_forward.1} parent=11 // pred_check_branch
          %236 = sbr.rel (%p234) target = $region24
        $region23: #{net_forward.1} parent=11 // pred_region
          %s238 = ssub.s32 16128, 16128
          %239 = vsyncadd [#allocation7], %s238
          %s240 = sshll.u32 [#allocation8], 4
          %s241 = int_to_ptr.vmem [resolvable:$true] %s240
          %246 = dma.hbm_to_vmem [thread:$0]  %s3, 16128, %s241, [#allocation7], 192, 192, 12
        $region24: #{net_forward.1} parent=11 // pred_fallthru
          _
        // Predicated region
        $region25: #{net_forward.1} parent=11 // pred_check
          %p247 = pneg %p127
        $region26: #{net_forward.1} parent=11 // pred_check_branch
          %249 = sbr.rel (%p247) target = $region28
        $region27: #{net_forward.1} parent=11 // pred_region
          %s251 = ssub.s32 48, 48
          %252 = vsyncadd [#allocation10], %s251
          %s254 = sshll.u32 [#allocation9], 4
          %s255 = int_to_ptr.vmem [resolvable:$true] %s254
          %257 = dma.hbm_to_vmem [thread:$0]  %s4, 48, %s255, [#allocation10]
        $region28: #{net_forward.1} parent=11 // pred_fallthru
          _
        // Predicated region
        $region29: #{net_forward.1} parent=11 // pred_check
          %p258 = pneg %p148
        $region30: #{net_forward.1} parent=11 // pred_check_branch
          %260 = sbr.rel (%p258) target = $region32
        $region31: #{net_forward.1} parent=11 // pred_region
          %s262 = ssub.s32 46080, 46080
          %263 = vsyncadd [#allocation10], %s262
          %s264 = sshll.u32 [#allocation11], 4
          %s265 = int_to_ptr.vmem [resolvable:$true] %s264
          %270 = dma.hbm_to_vmem [thread:$0]  %s5, 46080, %s265, [#allocation10], 320, 320, 20
        $region32: #{net_forward.1} parent=11 // pred_fallthru
          _
        // Predicated region
        $region33: #{net_forward.1} parent=11 // pred_check
          %p271 = pneg %p169
        $region34: #{net_forward.1} parent=11 // pred_check_branch
          %273 = sbr.rel (%p271) target = $region36
        $region35: #{net_forward.1} parent=11 // pred_region
          %s275 = ssub.s32 80, 80
          %276 = vsyncadd [#allocation13], %s275
          %s278 = sshll.u32 [#allocation12], 4
          %s279 = int_to_ptr.vmem [resolvable:$true] %s278
          %281 = dma.hbm_to_vmem [thread:$0]  %s6, 80, %s279, [#allocation13]
        $region36: #{net_forward.1} parent=11 // pred_fallthru
          _
      $region12: #{net_forward.1} parent=5 // pred_fallthru
        _
      %p282 = scmp.lt.s32.totalorder %s17, 2
      // Predicated region
      $region37: #{net_forward.1} parent=5 // pred_check
        %p283 = pneg %p282
      $region38: #{net_forward.1} parent=5 // pred_check_branch
        %285 = sbr.rel (%p283) target = $region40
      $region39: #{net_forward.1} parent=5 // pred_region
        // Predicated region
        $region41: #{net_forward.1} parent=39 // pred_check
          %p286 = pneg %p37
        $region42: #{net_forward.1} parent=39 // pred_check_branch
          %288 = sbr.rel (%p286) target = $region44
        $region43: #{net_forward.1} parent=39 // pred_region
          %s289 = smul.u32 8, %s17
          %p290 = scmp.lt.s32.totalorder %s289, 15
          %s291 = scalar_select %p290, %s289, 15
          %s292 = smul.addr %s291, 8
          %s293 = scalar_lea.vmem %s0, %s292
          %s294 = smul.u32 8, %s17
        $region44: #{net_forward.1} parent=39 // pred_fallthru
          _
      $region40: #{net_forward.1} parent=5 // pred_fallthru
        _
      %p295 = scmp.le.s32.totalorder 1, %s17
      %p296 = scmp.lt.s32.totalorder %s17, 3
      %p297 = pnand %p295, %p296
      %p298 = pneg %p297
      // Predicated region
      $region45: #{net_forward.1} parent=5 // pred_check
        _
      $region46: #{net_forward.1} parent=5 // pred_check_branch
        %300 = sbr.rel (%p297) target = $region48
      $region47: #{net_forward.1} parent=5 // pred_region
        %s301 = ssub.s32 %s17, 1
        // Predicated region
        $region49: #{net_forward.1} parent=47 // pred_check
          %p302 = pneg %p64
        $region50: #{net_forward.1} parent=47 // pred_check_branch
          %304 = sbr.rel (%p302) target = $region52
        $region51: #{net_forward.1} parent=47 // pred_region
          %305 = dma.done [#allocation5], 2304
        $region52: #{net_forward.1} parent=47 // pred_fallthru
          _
        // Predicated region
        $region53: #{net_forward.1} parent=47 // pred_check
          %p306 = pneg %p85
        $region54: #{net_forward.1} parent=47 // pred_check_branch
          %308 = sbr.rel (%p306) target = $region56
        $region55: #{net_forward.1} parent=47 // pred_region
          %309 = dma.done [#allocation7], 32
        $region56: #{net_forward.1} parent=47 // pred_fallthru
          _
        // Predicated region
        $region57: #{net_forward.1} parent=47 // pred_check
          %p310 = pneg %p106
        $region58: #{net_forward.1} parent=47 // pred_check_branch
          %312 = sbr.rel (%p310) target = $region60
        $region59: #{net_forward.1} parent=47 // pred_region
          %313 = dma.done [#allocation7], 16128
        $region60: #{net_forward.1} parent=47 // pred_fallthru
          _
        // Predicated region
        $region61: #{net_forward.1} parent=47 // pred_check
          %p314 = pneg %p127
        $region62: #{net_forward.1} parent=47 // pred_check_branch
          %316 = sbr.rel (%p314) target = $region64
        $region63: #{net_forward.1} parent=47 // pred_region
          %317 = dma.done [#allocation10], 48
        $region64: #{net_forward.1} parent=47 // pred_fallthru
          _
        // Predicated region
        $region65: #{net_forward.1} parent=47 // pred_check
          %p318 = pneg %p148
        $region66: #{net_forward.1} parent=47 // pred_check_branch
          %320 = sbr.rel (%p318) target = $region68
        $region67: #{net_forward.1} parent=47 // pred_region
          %321 = dma.done [#allocation10], 46080
        $region68: #{net_forward.1} parent=47 // pred_fallthru
          _
        // Predicated region
        $region69: #{net_forward.1} parent=47 // pred_check
          %p322 = pneg %p169
        $region70: #{net_forward.1} parent=47 // pred_check_branch
          %324 = sbr.rel (%p322) target = $region72
        $region71: #{net_forward.1} parent=47 // pred_region
          %325 = dma.done [#allocation13], 80
        $region72: #{net_forward.1} parent=47 // pred_fallthru
          _
        %s326 = smul.u32 8, %s22
        %p327 = scmp.lt.s32.totalorder %s326, 15
        %s328 = scalar_select %p327, %s326, 15
        %s329 = smul.addr %s328, 8
        %s330 = scalar_lea.vmem %s0, %s329
        %p331 = pneg %p43
        %p332 = pneg %p40
        %p333 = pneg %p64
        %p334 = pneg %p61
        %p335 = pneg %p85
        %p336 = pneg %p82
        %p337 = pneg %p106
        %p338 = pneg %p103
        %p339 = pneg %p127
        %p340 = pneg %p124
        %p341 = pneg %p148
        %p342 = pneg %p145
        %p343 = pneg %p169
        %p344 = pneg %p166
        %p345 = pneg %p195
        %p346 = pneg %p192
        %s347 = smul.u32 4, %s22
        %p348 = scmp.lt.s32.totalorder %s347, 7
        %s349 = scalar_select %p348, %s347, 7
        %s350 = smul.addr %s349, 10
        %s351 = smul.addr %s350, 8
        %s352 = scalar_lea.vmem %s7, %s351
        %s353 = smul.u32 8, %s22
        %p354 = scmp.lt.s32.totalorder %s353, 15
        %s355 = scalar_select %p354, %s353, 15
        %s356 = smul.addr %s355, 8
        %s357 = scalar_lea.vmem %s0, %s356
        %s358 = smul.u32 8, %s22
        %s359 = smul.u32 4, %s22
        %p360 = scmp.lt.s32.totalorder %s359, 7
        %s361 = scalar_select %p360, %s359, 7
        %s362 = smul.addr %s361, 10
        %s363 = smul.addr %s362, 8
        %s364 = scalar_lea.vmem %s7, %s363
        %s365 = smul.u32 4, %s22
        %367 = vst [vmem:[#allocation2 + $0x70] sm:$0xc0] 0.0
        %vm368 = vcmask 785414
        %369 = vst.msk [vmem:[#allocation2 + $0x78] sm:$0xc0] %vm368, 0.0
        %370 = vst [vmem:[#allocation3 + $0xa8] sm:$0xc0] 0.0
        %371 = vst [vmem:[#allocation3 + $0xb0] sm:$0xc0] 0.0
        %372 = vst [vmem:[#allocation3 + $0xb8] sm:$0xc0] 0.0
        %v373 = vld [vmem:[%s357] sm:$0xff]
        %v374 = vld [vmem:[%s357 + $0x8] sm:$0xff]
        %v375 = vld [vmem:[%s357 + $0x10] sm:$0xff]
        %v376 = vld [vmem:[%s357 + $0x18] sm:$0xff]
        %v377 = vld [vmem:[%s357 + $0x20] sm:$0xff]
        %v378 = vld [vmem:[%s357 + $0x28] sm:$0xff]
        %v379 = vld [vmem:[%s357 + $0x30] sm:$0xff]
        %v380 = vld [vmem:[%s357 + $0x38] sm:$0x3f]
        %v381 = vpack.c.bf16 %v374, %v373
        %v382 = vpack.c.bf16 %v376, %v375
        %v383 = vpack.c.bf16 %v378, %v377
        %v384 = vpack.c.bf16 %v380, %v379
        %v385 = vld [vmem:[#allocation4] sm:$0xff]
        %v386 = vld [vmem:[#allocation4 + $0x8] sm:$0xff]
        %v387 = vld [vmem:[#allocation4 + $0x10] sm:$0xff]
        %v388 = vld [vmem:[#allocation4 + $0x18] sm:$0xff]
        %v389 = vld [vmem:[#allocation4 + $0x20] sm:$0xff]
        %v390 = vld [vmem:[#allocation4 + $0x28] sm:$0xff]
        %v391 = vld [vmem:[%s357 + $0x1] sm:$0xff]
        %v392 = vld [vmem:[%s357 + $0x9] sm:$0xff]
        %v393 = vld [vmem:[%s357 + $0x11] sm:$0xff]
        %v394 = vld [vmem:[%s357 + $0x19] sm:$0xff]
        %v395 = vld [vmem:[%s357 + $0x21] sm:$0xff]
        %v396 = vld [vmem:[%s357 + $0x29] sm:$0xff]
        %v397 = vld [vmem:[%s357 + $0x31] sm:$0xff]
        %v398 = vld [vmem:[%s357 + $0x39] sm:$0x3f]
        %v399 = vpack.c.bf16 %v392, %v391
        %v400 = vpack.c.bf16 %v394, %v393
        %v401 = vpack.c.bf16 %v396, %v395
        %v402 = vpack.c.bf16 %v398, %v397
        %s403 = scalar_lea.vmem [#allocation4], 48
        %v404 = vld [vmem:[%s403] sm:$0xff]
        %v405 = vld [vmem:[%s403 + $0x8] sm:$0xff]
        %v406 = vld [vmem:[%s403 + $0x10] sm:$0xff]
        %v407 = vld [vmem:[%s403 + $0x18] sm:$0xff]
        %v408 = vld [vmem:[%s403 + $0x20] sm:$0xff]
        %v409 = vld [vmem:[%s403 + $0x28] sm:$0xff]
        %v416 = vunpack.c.l.b16 %v404
        %v417 = vunpack.c.h.b16 %v404
        %v418 = vunpack.c.l.b16 %v405
        %v419 = vunpack.c.h.b16 %v405
        %v420 = vunpack.c.l.b16 %v406
        %v421 = vunpack.c.h.b16 %v406
        %v422 = vunpack.c.l.b16 %v407
        %v423 = vunpack.c.h.b16 %v407
        %v424 = vunpack.c.l.b16 %v408
        %v425 = vunpack.c.h.b16 %v408
        %v426 = vunpack.c.l.b16 %v409
        %v427 = vunpack.c.h.b16 %v409
        %v428 = vpack.c.b16 %v418, %v416
        %v429 = vpack.c.b16 %v419, %v417
        %v430 = vpack.c.b16 %v422, %v420
        %v431 = vpack.c.b16 %v423, %v421
        %v432 = vpack.c.b16 %v426, %v424
        %v433 = vpack.c.b16 %v427, %v425
        %vm440 = vcmask 392192
        %v442 = vsel %vm440, %v399, 0
        %v445 = vsel %vm440, %v400, 0
        %v448 = vsel %vm440, %v401, 0
        %v451 = vsel %vm440, %v402, 0
        %453 = vmatprep.subr.bf16.mxu0 %v429
        %454 = vmatpush1.bf16.msra.mxu0 %v428
        %455 = vmatprep.subr.bf16.mxu0 %v431
        %456 = vmatpush1.bf16.msra.mxu0 %v430
        %457 = vmatprep.subr.bf16.mxu0 %v433
        %458 = vmatpush1.bf16.msra.mxu0 %v432
        %459 = vmatprep.subr.bf16.mxu0 0
        %460 = vmatpush1.bf16.msra.mxu0 0
        %461 = vmatprep.subr.bf16.mxu0 0
        %462 = vmatpush1.bf16.msra.mxu0 0
        %463 = vmatprep.subr.bf16.mxu0 0
        %464 = vmatpush1.bf16.msra.mxu0 0
        %465 = vmatprep.subr.bf16.mxu0 0
        %466 = vmatpush1.bf16.msra.mxu0 0
        %467 = vmatprep.subr.bf16.mxu0 0
        %468 = vmatpush1.bf16.msra.mxu0 0
        %469 = vmatprep.subr.bf16.mxu0 0
        %470 = vmatpush1.bf16.msra.mxu0 0
        %471 = vmatprep.subr.bf16.mxu0 0
        %472 = vmatpush1.bf16.msra.mxu0 0
        %473 = vmatprep.subr.bf16.mxu0 0
        %474 = vmatpush1.bf16.msra.mxu0 0
        %475 = vmatprep.subr.bf16.mxu0 0
        %476 = vmatpush1.bf16.msra.mxu0 0
        %477 = vmatprep.subr.bf16.mxu0 0
        %478 = vmatpush1.bf16.msra.mxu0 0
        %479 = vmatprep.subr.bf16.mxu0 0
        %480 = vmatpush1.bf16.msra.mxu0 0
        %481 = vmatprep.subr.bf16.mxu0 0
        %482 = vmatpush1.bf16.msra.mxu0 0
        %483 = vmatprep.subr.bf16.mxu0 0
        %484 = vmatpush1.bf16.msra.mxu0 0
        %485 = vmatprep.mubr.bf16.mxu0 0
        %486 = vmatmul.mubr.bf16.gmra.mrb[0].mxu0 %v442
        %v487 = vpop.f32.mrb[0].mxu0
        %v488 = vadd.f32 0.0, %v487
        %v489 = vpop.f32.mrb[0].mxu0
        %v490 = vadd.f32 0.0, %v489
        %v491 = vpop.f32.mrb[0].mxu0
        %v492 = vadd.f32 0.0, %v491
        %v493 = vpop.f32.mrb[0].mxu0
        %v494 = vadd.f32 0.0, %v493
        %495 = vmatprep.mubr.bf16.mxu0 0
        %496 = vmatmul.mubr.bf16.gmra.mrb[0].mxu0 %v445
        %v497 = vpop.f32.mrb[0].mxu0
        %v498 = vadd.f32 0.0, %v497
        %v499 = vpop.f32.mrb[0].mxu0
        %v500 = vadd.f32 0.0, %v499
        %v501 = vpop.f32.mrb[0].mxu0
        %v502 = vadd.f32 0.0, %v501
        %v503 = vpop.f32.mrb[0].mxu0
        %v504 = vadd.f32 0.0, %v503
        %505 = vmatprep.mubr.bf16.mxu0 0
        %506 = vmatmul.mubr.bf16.gmra.mrb[0].mxu0 %v448
        %v507 = vpop.f32.mrb[0].mxu0
        %v508 = vadd.f32 0.0, %v507
        %v509 = vpop.f32.mrb[0].mxu0
        %v510 = vadd.f32 0.0, %v509
        %v511 = vpop.f32.mrb[0].mxu0
        %v512 = vadd.f32 0.0, %v511
        %v513 = vpop.f32.mrb[0].mxu0
        %v514 = vadd.f32 0.0, %v513
        %515 = vmatprep.mubr.bf16.mxu0 0
        %516 = vmatmul.mubr.bf16.gmra.mrb[0].mxu0 %v451
        %v517 = vpop.f32.mrb[0].mxu0
        %v518 = vadd.f32 0.0, %v517
        %v519 = vpop.f32.mrb[0].mxu0
        %v520 = vadd.f32 0.0, %v519
        %v521 = vpop.f32.mrb[0].mxu0
        %v522 = vadd.f32 0.0, %v521
        %v523 = vpop.f32.mrb[0].mxu0
        %v524 = vadd.f32 0.0, %v523
        %525 = vdwg.mxu0
        %v532 = vunpack.c.l.b16 %v385
        %v533 = vunpack.c.h.b16 %v385
        %v534 = vunpack.c.l.b16 %v386
        %v535 = vunpack.c.h.b16 %v386
        %v536 = vunpack.c.l.b16 %v387
        %v537 = vunpack.c.h.b16 %v387
        %v538 = vunpack.c.l.b16 %v388
        %v539 = vunpack.c.h.b16 %v388
        %v540 = vunpack.c.l.b16 %v389
        %v541 = vunpack.c.h.b16 %v389
        %v542 = vunpack.c.l.b16 %v390
        %v543 = vunpack.c.h.b16 %v390
        %v544 = vpack.c.b16 %v534, %v532
        %v545 = vpack.c.b16 %v535, %v533
        %v546 = vpack.c.b16 %v538, %v536
        %v547 = vpack.c.b16 %v539, %v537
        %v548 = vpack.c.b16 %v542, %v540
        %v549 = vpack.c.b16 %v543, %v541
        %v557 = vsel %vm440, %v381, 0
        %v560 = vsel %vm440, %v382, 0
        %v563 = vsel %vm440, %v383, 0
        %v566 = vsel %vm440, %v384, 0
        %568 = vmatprep.subr.bf16.mxu0 %v545
        %569 = vmatpush1.bf16.msra.mxu0 %v544
        %570 = vmatprep.subr.bf16.mxu0 %v547
        %571 = vmatpush1.bf16.msra.mxu0 %v546
        %572 = vmatprep.subr.bf16.mxu0 %v549
        %573 = vmatpush1.bf16.msra.mxu0 %v548
        %574 = vmatprep.subr.bf16.mxu0 0
        %575 = vmatpush1.bf16.msra.mxu0 0
        %576 = vmatprep.subr.bf16.mxu0 0
        %577 = vmatpush1.bf16.msra.mxu0 0
        %578 = vmatprep.subr.bf16.mxu0 0
        %579 = vmatpush1.bf16.msra.mxu0 0
        %580 = vmatprep.subr.bf16.mxu0 0
        %581 = vmatpush1.bf16.msra.mxu0 0
        %582 = vmatprep.subr.bf16.mxu0 0
        %583 = vmatpush1.bf16.msra.mxu0 0
        %584 = vmatprep.subr.bf16.mxu0 0
        %585 = vmatpush1.bf16.msra.mxu0 0
        %586 = vmatprep.subr.bf16.mxu0 0
        %587 = vmatpush1.bf16.msra.mxu0 0
        %588 = vmatprep.subr.bf16.mxu0 0
        %589 = vmatpush1.bf16.msra.mxu0 0
        %590 = vmatprep.subr.bf16.mxu0 0
        %591 = vmatpush1.bf16.msra.mxu0 0
        %592 = vmatprep.subr.bf16.mxu0 0
        %593 = vmatpush1.bf16.msra.mxu0 0
        %594 = vmatprep.subr.bf16.mxu0 0
        %595 = vmatpush1.bf16.msra.mxu0 0
        %596 = vmatprep.subr.bf16.mxu0 0
        %597 = vmatpush1.bf16.msra.mxu0 0
        %598 = vmatprep.subr.bf16.mxu0 0
        %599 = vmatpush1.bf16.msra.mxu0 0
        %600 = vmatprep.mubr.bf16.mxu0 0
        %601 = vmatmul.mubr.bf16.gmra.mrb[0].mxu0 %v557
        %v602 = vpop.f32.mrb[0].mxu0
        %v603 = vadd.f32 %v488, %v602
        %v604 = vpop.f32.mrb[0].mxu0
        %v605 = vadd.f32 %v490, %v604
        %v606 = vpop.f32.mrb[0].mxu0
        %v607 = vadd.f32 %v492, %v606
        %v608 = vpop.f32.mrb[0].mxu0
        %v609 = vadd.f32 %v494, %v608
        %610 = vmatprep.mubr.bf16.mxu0 0
        %611 = vmatmul.mubr.bf16.gmra.mrb[0].mxu0 %v560
        %v612 = vpop.f32.mrb[0].mxu0
        %v613 = vadd.f32 %v498, %v612
        %v614 = vpop.f32.mrb[0].mxu0
        %v615 = vadd.f32 %v500, %v614
        %v616 = vpop.f32.mrb[0].mxu0
        %v617 = vadd.f32 %v502, %v616
        %v618 = vpop.f32.mrb[0].mxu0
        %v619 = vadd.f32 %v504, %v618
        %620 = vmatprep.mubr.bf16.mxu0 0
        %621 = vmatmul.mubr.bf16.gmra.mrb[0].mxu0 %v563
        %v622 = vpop.f32.mrb[0].mxu0
        %v623 = vadd.f32 %v508, %v622
        %v624 = vpop.f32.mrb[0].mxu0
        %v625 = vadd.f32 %v510, %v624
        %v626 = vpop.f32.mrb[0].mxu0
        %v627 = vadd.f32 %v512, %v626
        %v628 = vpop.f32.mrb[0].mxu0
        %v629 = vadd.f32 %v514, %v628
        %630 = vmatprep.mubr.bf16.mxu0 0
        %631 = vmatmul.mubr.bf16.gmra.mrb[0].mxu0 %v566
        %v632 = vpop.f32.mrb[0].mxu0
        %v633 = vadd.f32 %v518, %v632
        %v634 = vpop.f32.mrb[0].mxu0
        %v635 = vadd.f32 %v520, %v634
        %v636 = vpop.f32.mrb[0].mxu0
        %v637 = vadd.f32 %v522, %v636
        %v638 = vpop.f32.mrb[0].mxu0
        %v639 = vadd.f32 %v524, %v638
        %640 = vdwg.mxu0
        %v641 = vld [vmem:[%s357 + $0x2] sm:$0xff]
        %v642 = vld [vmem:[%s357 + $0xa] sm:$0xff]
        %v643 = vld [vmem:[%s357 + $0x12] sm:$0xff]
        %v644 = vld [vmem:[%s357 + $0x1a] sm:$0xff]
        %v645 = vld [vmem:[%s357 + $0x22] sm:$0xff]
        %v646 = vld [vmem:[%s357 + $0x2a] sm:$0xff]
        %v647 = vld [vmem:[%s357 + $0x32] sm:$0xff]
        %v648 = vld [vmem:[%s357 + $0x3a] sm:$0x3f]
        %v649 = vpack.c.bf16 %v642, %v641
        %v650 = vpack.c.bf16 %v644, %v643
        %v651 = vpack.c.bf16 %v646, %v645
        %v652 = vpack.c.bf16 %v648, %v647
        %s653 = scalar_lea.vmem [#allocation4], 96
        %v654 = vld [vmem:[%s653] sm:$0xff]
        %v655 = vld [vmem:[%s653 + $0x8] sm:$0xff]
        %v656 = vld [vmem:[%s653 + $0x10] sm:$0xff]
        %v657 = vld [vmem:[%s653 + $0x18] sm:$0xff]
        %v658 = vld [vmem:[%s653 + $0x20] sm:$0xff]
        %v659 = vld [vmem:[%s653 + $0x28] sm:$0xff]
        %v666 = vunpack.c.l.b16 %v654
        %v667 = vunpack.c.h.b16 %v654
        %v668 = vunpack.c.l.b16 %v655
        %v669 = vunpack.c.h.b16 %v655
        %v670 = vunpack.c.l.b16 %v656
        %v671 = vunpack.c.h.b16 %v656
        %v672 = vunpack.c.l.b16 %v657
        %v673 = vunpack.c.h.b16 %v657
        %v674 = vunpack.c.l.b16 %v658
        %v675 = vunpack.c.h.b16 %v658
        %v676 = vunpack.c.l.b16 %v659
        %v677 = vunpack.c.h.b16 %v659
        %v678 = vpack.c.b16 %v668, %v666
        %v679 = vpack.c.b16 %v669, %v667
        %v680 = vpack.c.b16 %v672, %v670
        %v681 = vpack.c.b16 %v673, %v671
        %v682 = vpack.c.b16 %v676, %v674
        %v683 = vpack.c.b16 %v677, %v675
        %v691 = vsel %vm440, %v649, 0
        %v694 = vsel %vm440, %v650, 0
        %v697 = vsel %vm440, %v651, 0
        %v700 = vsel %vm440, %v652, 0
        %702 = vmatprep.subr.bf16.mxu0 %v679
        %703 = vmatpush1.bf16.msra.mxu0 %v678
        %704 = vmatprep.subr.bf16.mxu0 %v681
        %705 = vmatpush1.bf16.msra.mxu0 %v680
        %706 = vmatprep.subr.bf16.mxu0 %v683
        %707 = vmatpush1.bf16.msra.mxu0 %v682
        %708 = vmatprep.subr.bf16.mxu0 0
        %709 = vmatpush1.bf16.msra.mxu0 0
        %710 = vmatprep.subr.bf16.mxu0 0
        %711 = vmatpush1.bf16.msra.mxu0 0
        %712 = vmatprep.subr.bf16.mxu0 0
        %713 = vmatpush1.bf16.msra.mxu0 0
        %714 = vmatprep.subr.bf16.mxu0 0
        %715 = vmatpush1.bf16.msra.mxu0 0
        %716 = vmatprep.subr.bf16.mxu0 0
        %717 = vmatpush1.bf16.msra.mxu0 0
        %718 = vmatprep.subr.bf16.mxu0 0
        %719 = vmatpush1.bf16.msra.mxu0 0
        %720 = vmatprep.subr.bf16.mxu0 0
        %721 = vmatpush1.bf16.msra.mxu0 0
        %722 = vmatprep.subr.bf16.mxu0 0
        %723 = vmatpush1.bf16.msra.mxu0 0
        %724 = vmatprep.subr.bf16.mxu0 0
        %725 = vmatpush1.bf16.msra.mxu0 0
        %726 = vmatprep.subr.bf16.mxu0 0
        %727 = vmatpush1.bf16.msra.mxu0 0
        %728 = vmatprep.subr.bf16.mxu0 0
        %729 = vmatpush1.bf16.msra.mxu0 0
        %730 = vmatprep.subr.bf16.mxu0 0
        %731 = vmatpush1.bf16.msra.mxu0 0
        %732 = vmatprep.subr.bf16.mxu0 0
        %733 = vmatpush1.bf16.msra.mxu0 0
        %734 = vmatprep.mubr.bf16.mxu0 0
        %735 = vmatmul.mubr.bf16.gmra.mrb[0].mxu0 %v691
        %v736 = vpop.f32.mrb[0].mxu0
        %v737 = vadd.f32 0.0, %v736
        %v738 = vpop.f32.mrb[0].mxu0
        %v739 = vadd.f32 0.0, %v738
        %v740 = vpop.f32.mrb[0].mxu0
        %v741 = vadd.f32 0.0, %v740
        %v742 = vpop.f32.mrb[0].mxu0
        %v743 = vadd.f32 0.0, %v742
        %744 = vmatprep.mubr.bf16.mxu0 0
        %745 = vmatmul.mubr.bf16.gmra.mrb[0].mxu0 %v694
        %v746 = vpop.f32.mrb[0].mxu0
        %v747 = vadd.f32 0.0, %v746
        %v748 = vpop.f32.mrb[0].mxu0
        %v749 = vadd.f32 0.0, %v748
        %v750 = vpop.f32.mrb[0].mxu0
        %v751 = vadd.f32 0.0, %v750
        %v752 = vpop.f32.mrb[0].mxu0
        %v753 = vadd.f32 0.0, %v752
        %754 = vmatprep.mubr.bf16.mxu0 0
        %755 = vmatmul.mubr.bf16.gmra.mrb[0].mxu0 %v697
        %v756 = vpop.f32.mrb[0].mxu0
        %v757 = vadd.f32 0.0, %v756
        %v758 = vpop.f32.mrb[0].mxu0
        %v759 = vadd.f32 0.0, %v758
        %v760 = vpop.f32.mrb[0].mxu0
        %v761 = vadd.f32 0.0, %v760
        %v762 = vpop.f32.mrb[0].mxu0
        %v763 = vadd.f32 0.0, %v762
        %764 = vmatprep.mubr.bf16.mxu0 0
        %765 = vmatmul.mubr.bf16.gmra.mrb[0].mxu0 %v700
        %v766 = vpop.f32.mrb[0].mxu0
        %v767 = vadd.f32 0.0, %v766
        %v768 = vpop.f32.mrb[0].mxu0
        %v769 = vadd.f32 0.0, %v768
        %v770 = vpop.f32.mrb[0].mxu0
        %v771 = vadd.f32 0.0, %v770
        %v772 = vpop.f32.mrb[0].mxu0
        %v773 = vadd.f32 0.0, %v772
        %774 = vdwg.mxu0
        %v775 = vadd.f32 %v603, %v737
        %v776 = vadd.f32 %v605, %v739
        %v777 = vadd.f32 %v607, %v741
        %v778 = vadd.f32 %v609, %v743
        %v779 = vadd.f32 %v613, %v747
        %v780 = vadd.f32 %v615, %v749
        %v781 = vadd.f32 %v617, %v751
        %v782 = vadd.f32 %v619, %v753
        %v783 = vadd.f32 %v623, %v757
        %v784 = vadd.f32 %v625, %v759
        %v785 = vadd.f32 %v627, %v761
        %v786 = vadd.f32 %v629, %v763
        %v787 = vadd.f32 %v633, %v767
        %v788 = vadd.f32 %v635, %v769
        %v789 = vadd.f32 %v637, %v771
        %v790 = vadd.f32 %v639, %v773
        %v791 = vld [vmem:[#allocation6] sm:$0x3]
        %v793 = vlaneseq
        %v794 = vshrl.u32 %v793, 7
        %v795 = vsub.s32 0, %v794
        %v796 = vrot.slane %v791, %v795
        %v797 = vlaneseq
        %v798 = vshrl.u32 %v797, 7
        %v799 = vsub.s32 1, %v798
        %v800 = vrot.slane %v791, %v799
        %v803 = vadd.f32 %v775, %v796
        %v804 = vadd.f32 %v776, %v800
        %v805 = vadd.f32 %v777, %v796
        %v806 = vadd.f32 %v778, %v800
        %v807 = vadd.f32 %v779, %v796
        %v808 = vadd.f32 %v780, %v800
        %v809 = vadd.f32 %v781, %v796
        %v810 = vadd.f32 %v782, %v800
        %v811 = vadd.f32 %v783, %v796
        %v812 = vadd.f32 %v784, %v800
        %v813 = vadd.f32 %v785, %v796
        %v814 = vadd.f32 %v786, %v800
        %v815 = vadd.f32 %v787, %v796
        %v816 = vadd.f32 %v788, %v800
        %v817 = vadd.f32 %v789, %v796
        %v818 = vadd.f32 %v790, %v800
        %v819 = vmax.f32 %v803, 0.0
        %v820 = vmax.f32 %v804, 0.0
        %v821 = vmax.f32 %v805, 0.0
        %v822 = vmax.f32 %v806, 0.0
        %v823 = vmax.f32 %v807, 0.0
        %v824 = vmax.f32 %v808, 0.0
        %v825 = vmax.f32 %v809, 0.0
        %v826 = vmax.f32 %v810, 0.0
        %v827 = vmax.f32 %v811, 0.0
        %v828 = vmax.f32 %v812, 0.0
        %v829 = vmax.f32 %v813, 0.0
        %v830 = vmax.f32 %v814, 0.0
        %v831 = vmax.f32 %v815, 0.0
        %v832 = vmax.f32 %v816, 0.0
        %v833 = vmax.f32 %v817, 0.0
        %v834 = vmax.f32 %v818, 0.0
        %835 = vst [vmem:[#allocation2] sm:$0xff] %v819
        %vm836 = vcmask 785408
        %837 = vst.msk [vmem:[#allocation2 + $0x8] sm:$0xff] %vm836, %v820
        %838 = vst [vmem:[#allocation2 + $0x10] sm:$0xff] %v821
        %839 = vst.msk [vmem:[#allocation2 + $0x18] sm:$0xff] %vm836, %v822
        %840 = vst [vmem:[#allocation2 + $0x20] sm:$0xff] %v823
        %841 = vst.msk [vmem:[#allocation2 + $0x28] sm:$0xff] %vm836, %v824
        %842 = vst [vmem:[#allocation2 + $0x30] sm:$0xff] %v825
        %843 = vst.msk [vmem:[#allocation2 + $0x38] sm:$0xff] %vm836, %v826
        %844 = vst [vmem:[#allocation2 + $0x40] sm:$0xff] %v827
        %845 = vst.msk [vmem:[#allocation2 + $0x48] sm:$0xff] %vm836, %v828
        %846 = vst [vmem:[#allocation2 + $0x50] sm:$0xff] %v829
        %847 = vst.msk [vmem:[#allocation2 + $0x58] sm:$0xff] %vm836, %v830
        %848 = vst [vmem:[#allocation2 + $0x60] sm:$0xff] %v831
        %849 = vst.msk [vmem:[#allocation2 + $0x68] sm:$0xff] %vm836, %v832
        %850 = vst [vmem:[#allocation2 + $0x70] sm:$0x3f] %v833
        %vm851 = vcmask 783360
        %852 = vst.msk [vmem:[#allocation2 + $0x78] sm:$0x3f] %vm851, %v834
        %v853 = vld [vmem:[#allocation2] sm:$0xff]
        %v854 = vld [vmem:[#allocation2 + $0x8] sm:$0xff]
        %v855 = vld [vmem:[#allocation2 + $0x10] sm:$0xff]
        %v856 = vld [vmem:[#allocation2 + $0x18] sm:$0xff]
        %v857 = vld [vmem:[#allocation2 + $0x20] sm:$0xff]
        %v858 = vld [vmem:[#allocation2 + $0x28] sm:$0xff]
        %v859 = vld [vmem:[#allocation2 + $0x30] sm:$0xff]
        %v860 = vld [vmem:[#allocation2 + $0x38] sm:$0xff]
        %v861 = vld [vmem:[#allocation2 + $0x40] sm:$0xff]
        %v862 = vld [vmem:[#allocation2 + $0x48] sm:$0xff]
        %v863 = vld [vmem:[#allocation2 + $0x50] sm:$0xff]
        %v864 = vld [vmem:[#allocation2 + $0x58] sm:$0xff]
        %v865 = vld [vmem:[#allocation2 + $0x60] sm:$0xff]
        %v866 = vld [vmem:[#allocation2 + $0x68] sm:$0xff]
        %v867 = vld [vmem:[#allocation2 + $0x70] sm:$0x3f]
        %v868 = vld [vmem:[#allocation2 + $0x78] sm:$0x3f]
        %v869 = vpack.c.bf16 %v855, %v853
        %v870 = vpack.c.bf16 %v856, %v854
        %v871 = vpack.c.bf16 %v859, %v857
        %v872 = vpack.c.bf16 %v860, %v858
        %v873 = vpack.c.bf16 %v863, %v861
        %v874 = vpack.c.bf16 %v864, %v862
        %v875 = vpack.c.bf16 %v867, %v865
        %v876 = vpack.c.bf16 %v868, %v866
        %v877 = vld [vmem:[#allocation8] sm:$0xff]
        %v878 = vld [vmem:[#allocation8 + $0x8] sm:$0xf]
        %v879 = vld [vmem:[#allocation8 + $0xc] sm:$0xff]
        %v880 = vld [vmem:[#allocation8 + $0x14] sm:$0xf]
        %v881 = vld [vmem:[#allocation8 + $0x18] sm:$0xff]
        %v882 = vld [vmem:[#allocation8 + $0x20] sm:$0xf]
        %v883 = vld [vmem:[#allocation8 + $0x24] sm:$0xff]
        %v884 = vld [vmem:[#allocation8 + $0x2c] sm:$0xf]
        %v885 = vld [vmem:[#allocation8 + $0x30] sm:$0xff]
        %v886 = vld [vmem:[#allocation8 + $0x38] sm:$0xf]
        %v887 = vld [vmem:[#allocation8 + $0x3c] sm:$0xff]
        %v888 = vld [vmem:[#allocation8 + $0x44] sm:$0xf]
        %v889 = vld [vmem:[#allocation8 + $0x48] sm:$0xff]
        %v890 = vld [vmem:[#allocation8 + $0x50] sm:$0xf]
        %v891 = vld [vmem:[#allocation8 + $0x54] sm:$0xff]
        %v892 = vld [vmem:[#allocation8 + $0x5c] sm:$0xf]
        %v893 = vld [vmem:[#allocation8 + $0x60] sm:$0xff]
        %v894 = vld [vmem:[#allocation8 + $0x68] sm:$0xf]
        %v895 = vld [vmem:[#allocation8 + $0x6c] sm:$0xff]
        %v896 = vld [vmem:[#allocation8 + $0x74] sm:$0xf]
        %v897 = vld [vmem:[#allocation8 + $0x78] sm:$0xff]
        %v898 = vld [vmem:[#allocation8 + $0x80] sm:$0xf]
        %v899 = vld [vmem:[#allocation8 + $0x84] sm:$0xff]
        %v900 = vld [vmem:[#allocation8 + $0x8c] sm:$0xf]
        %v901 = vld [vmem:[#allocation8 + $0x90] sm:$0xff]
        %v902 = vld [vmem:[#allocation8 + $0x98] sm:$0xf]
        %v903 = vld [vmem:[#allocation8 + $0x9c] sm:$0xff]
        %v904 = vld [vmem:[#allocation8 + $0xa4] sm:$0xf]
        %v905 = vld [vmem:[#allocation8 + $0xa8] sm:$0xff]
        %v906 = vld [vmem:[#allocation8 + $0xb0] sm:$0xf]
        %v907 = vld [vmem:[#allocation8 + $0xb4] sm:$0xff]
        %v908 = vld [vmem:[#allocation8 + $0xbc] sm:$0xf]
        %v909 = vld [vmem:[#allocation8 + $0xc0] sm:$0xff]
        %v910 = vld [vmem:[#allocation8 + $0xc8] sm:$0xf]
        %v911 = vld [vmem:[#allocation8 + $0xcc] sm:$0xff]
        %v912 = vld [vmem:[#allocation8 + $0xd4] sm:$0xf]
        %v913 = vld [vmem:[#allocation8 + $0xd8] sm:$0xff]
        %v914 = vld [vmem:[#allocation8 + $0xe0] sm:$0xf]
        %v915 = vld [vmem:[#allocation8 + $0xe4] sm:$0xff]
        %v916 = vld [vmem:[#allocation8 + $0xec] sm:$0xf]
        %v917 = vld [vmem:[#allocation8 + $0xf0] sm:$0xff]
        %v918 = vld [vmem:[#allocation8 + $0xf8] sm:$0xf]
        %v919 = vld [vmem:[#allocation8 + $0xfc] sm:$0xff]
        %v920 = vld [vmem:[#allocation8 + $0x104] sm:$0xf]
        %v921 = vld [vmem:[#allocation8 + $0x108] sm:$0xff]
        %v922 = vld [vmem:[#allocation8 + $0x110] sm:$0xf]
        %v923 = vld [vmem:[#allocation8 + $0x114] sm:$0xff]
        %v924 = vld [vmem:[#allocation8 + $0x11c] sm:$0xf]
        %v925 = vld [vmem:[#allocation8 + $0x120] sm:$0xff]
        %v926 = vld [vmem:[#allocation8 + $0x128] sm:$0xf]
        %v927 = vld [vmem:[#allocation8 + $0x12c] sm:$0xff]
        %v928 = vld [vmem:[#allocation8 + $0x134] sm:$0xf]
        %v929 = vld [vmem:[#allocation8 + $0x138] sm:$0xff]
        %v930 = vld [vmem:[#allocation8 + $0x140] sm:$0xf]
        %v931 = vld [vmem:[#allocation8 + $0x144] sm:$0xff]
        %v932 = vld [vmem:[#allocation8 + $0x14c] sm:$0xf]
        %v933 = vld [vmem:[#allocation2] sm:$0xfe]
        %v934 = vld [vmem:[#allocation2 + $0x8] sm:$0xfe]
        %v935 = vld [vmem:[#allocation2 + $0x70] sm:$0x7f]
        %v936 = vld [vmem:[#allocation2 + $0x78] sm:$0x7f]
        %v937 = vpack.c.bf16 %v855, %v933
        %v938 = vpack.c.bf16 %v856, %v934
        %v939 = vpack.c.bf16 %v935, %v865
        %v940 = vpack.c.bf16 %v936, %v866
        %s941 = scalar_lea.vmem [#allocation8], 336
        %v942 = vld [vmem:[%s941] sm:$0xff]
        %v943 = vld [vmem:[%s941 + $0x8] sm:$0xf]
        %v944 = vld [vmem:[%s941 + $0xc] sm:$0xff]
        %v945 = vld [vmem:[%s941 + $0x14] sm:$0xf]
        %v946 = vld [vmem:[%s941 + $0x18] sm:$0xff]
        %v947 = vld [vmem:[%s941 + $0x20] sm:$0xf]
        %v948 = vld [vmem:[%s941 + $0x24] sm:$0xff]
        %v949 = vld [vmem:[%s941 + $0x2c] sm:$0xf]
        %v950 = vld [vmem:[%s941 + $0x30] sm:$0xff]
        %v951 = vld [vmem:[%s941 + $0x38] sm:$0xf]
        %v952 = vld [vmem:[%s941 + $0x3c] sm:$0xff]
        %v953 = vld [vmem:[%s941 + $0x44] sm:$0xf]
        %v954 = vld [vmem:[%s941 + $0x48] sm:$0xff]
        %v955 = vld [vmem:[%s941 + $0x50] sm:$0xf]
        %v956 = vld [vmem:[%s941 + $0x54] sm:$0xff]
        %v957 = vld [vmem:[%s941 + $0x5c] sm:$0xf]
        %v958 = vld [vmem:[%s941 + $0x60] sm:$0xff]
        %v959 = vld [vmem:[%s941 + $0x68] sm:$0xf]
        %v960 = vld [vmem:[%s941 + $0x6c] sm:$0xff]
        %v961 = vld [vmem:[%s941 + $0x74] sm:$0xf]
        %v962 = vld [vmem:[%s941 + $0x78] sm:$0xff]
        %v963 = vld [vmem:[%s941 + $0x80] sm:$0xf]
        %v964 = vld [vmem:[%s941 + $0x84] sm:$0xff]
        %v965 = vld [vmem:[%s941 + $0x8c] sm:$0xf]
        %v966 = vld [vmem:[%s941 + $0x90] sm:$0xff]
        %v967 = vld [vmem:[%s941 + $0x98] sm:$0xf]
        %v968 = vld [vmem:[%s941 + $0x9c] sm:$0xff]
        %v969 = vld [vmem:[%s941 + $0xa4] sm:$0xf]
        %v970 = vld [vmem:[%s941 + $0xa8] sm:$0xff]
        %v971 = vld [vmem:[%s941 + $0xb0] sm:$0xf]
        %v972 = vld [vmem:[%s941 + $0xb4] sm:$0xff]
        %v973 = vld [vmem:[%s941 + $0xbc] sm:$0xf]
        %v974 = vld [vmem:[%s941 + $0xc0] sm:$0xff]
        %v975 = vld [vmem:[%s941 + $0xc8] sm:$0xf]
        %v976 = vld [vmem:[%s941 + $0xcc] sm:$0xff]
        %v977 = vld [vmem:[%s941 + $0xd4] sm:$0xf]
        %v978 = vld [vmem:[%s941 + $0xd8] sm:$0xff]
        %v979 = vld [vmem:[%s941 + $0xe0] sm:$0xf]
        %v980 = vld [vmem:[%s941 + $0xe4] sm:$0xff]
        %v981 = vld [vmem:[%s941 + $0xec] sm:$0xf]
        %v982 = vld [vmem:[%s941 + $0xf0] sm:$0xff]
        %v983 = vld [vmem:[%s941 + $0xf8] sm:$0xf]
        %v984 = vld [vmem:[%s941 + $0xfc] sm:$0xff]
        %v985 = vld [vmem:[%s941 + $0x104] sm:$0xf]
        %v986 = vld [vmem:[%s941 + $0x108] sm:$0xff]
        %v987 = vld [vmem:[%s941 + $0x110] sm:$0xf]
        %v988 = vld [vmem:[%s941 + $0x114] sm:$0xff]
        %v989 = vld [vmem:[%s941 + $0x11c] sm:$0xf]
        %v990 = vld [vmem:[%s941 + $0x120] sm:$0xff]
        %v991 = vld [vmem:[%s941 + $0x128] sm:$0xf]
        %v992 = vld [vmem:[%s941 + $0x12c] sm:$0xff]
        %v993 = vld [vmem:[%s941 + $0x134] sm:$0xf]
        %v994 = vld [vmem:[%s941 + $0x138] sm:$0xff]
        %v995 = vld [vmem:[%s941 + $0x140] sm:$0xf]
        %v996 = vld [vmem:[%s941 + $0x144] sm:$0xff]
        %v997 = vld [vmem:[%s941 + $0x14c] sm:$0xf]
        %vm998 = vsmask.f32 7424
        %v1000 = vshrl.u32 %v937, 16
        %v1002 = vshll.u32 %v937, 16
        %v1004 = vrot.slane %v1002, 1
        %v1005 = vor.u32 %v1000, %v1004
        %v1007 = vshll.u32 %v871, 16
        %v1009 = vrot.slane %v1007, 1
        %v1010 = vsel %vm998, %v1005, %v1009
        %v1012 = vshrl.u32 %v938, 16
        %v1014 = vshll.u32 %v938, 16
        %v1016 = vrot.slane %v1014, 1
        %v1017 = vor.u32 %v1012, %v1016
        %v1019 = vshll.u32 %v872, 16
        %v1021 = vrot.slane %v1019, 1
        %v1022 = vsel %vm998, %v1017, %v1021
        %v1023 = vshrl.u32 %v871, 16
        %v1025 = vor.u32 %v1023, %v1009
        %v1027 = vshll.u32 %v873, 16
        %v1029 = vrot.slane %v1027, 1
        %v1030 = vsel %vm998, %v1025, %v1029
        %v1031 = vshrl.u32 %v872, 16
        %v1033 = vor.u32 %v1031, %v1021
        %v1035 = vshll.u32 %v874, 16
        %v1037 = vrot.slane %v1035, 1
        %v1038 = vsel %vm998, %v1033, %v1037
        %v1039 = vshrl.u32 %v873, 16
        %v1041 = vor.u32 %v1039, %v1029
        %v1043 = vshll.u32 %v939, 16
        %v1045 = vrot.slane %v1043, 1
        %v1046 = vsel %vm998, %v1041, %v1045
        %v1047 = vshrl.u32 %v874, 16
        %v1049 = vor.u32 %v1047, %v1037
        %v1051 = vshll.u32 %v940, 16
        %v1053 = vrot.slane %v1051, 1
        %v1054 = vsel %vm998, %v1049, %v1053
        %v1055 = vshrl.u32 %v939, 16
        %v1057 = vor.u32 %v1055, %v1045
        %v1058 = vshrl.u32 %v940, 16
        %v1060 = vor.u32 %v1058, %v1053
        %v1121 = vunpack.c.l.b16 %v942
        %v1122 = vunpack.c.h.b16 %v942
        %v1123 = vunpack.c.l.b16 %v943
        %v1124 = vunpack.c.l.b16 %v944
        %v1125 = vunpack.c.h.b16 %v944
        %v1126 = vunpack.c.l.b16 %v945
        %v1127 = vunpack.c.l.b16 %v946
        %v1128 = vunpack.c.h.b16 %v946
        %v1129 = vunpack.c.l.b16 %v947
        %v1130 = vunpack.c.l.b16 %v948
        %v1131 = vunpack.c.h.b16 %v948
        %v1132 = vunpack.c.l.b16 %v949
        %v1133 = vunpack.c.l.b16 %v950
        %v1134 = vunpack.c.h.b16 %v950
        %v1135 = vunpack.c.l.b16 %v951
        %v1136 = vunpack.c.l.b16 %v952
        %v1137 = vunpack.c.h.b16 %v952
        %v1138 = vunpack.c.l.b16 %v953
        %v1139 = vunpack.c.l.b16 %v954
        %v1140 = vunpack.c.h.b16 %v954
        %v1141 = vunpack.c.l.b16 %v955
        %v1142 = vunpack.c.l.b16 %v956
        %v1143 = vunpack.c.h.b16 %v956
        %v1144 = vunpack.c.l.b16 %v957
        %v1145 = vunpack.c.l.b16 %v958
        %v1146 = vunpack.c.h.b16 %v958
        %v1147 = vunpack.c.l.b16 %v959
        %v1148 = vunpack.c.l.b16 %v960
        %v1149 = vunpack.c.h.b16 %v960
        %v1150 = vunpack.c.l.b16 %v961
        %v1151 = vunpack.c.l.b16 %v962
        %v1152 = vunpack.c.h.b16 %v962
        %v1153 = vunpack.c.l.b16 %v963
        %v1154 = vunpack.c.l.b16 %v964
        %v1155 = vunpack.c.h.b16 %v964
        %v1156 = vunpack.c.l.b16 %v965
        %v1157 = vunpack.c.l.b16 %v966
        %v1158 = vunpack.c.h.b16 %v966
        %v1159 = vunpack.c.l.b16 %v967
        %v1160 = vunpack.c.l.b16 %v968
        %v1161 = vunpack.c.h.b16 %v968
        %v1162 = vunpack.c.l.b16 %v969
        %v1163 = vunpack.c.l.b16 %v970
        %v1164 = vunpack.c.h.b16 %v970
        %v1165 = vunpack.c.l.b16 %v971
        %v1166 = vunpack.c.l.b16 %v972
        %v1167 = vunpack.c.h.b16 %v972
        %v1168 = vunpack.c.l.b16 %v973
        %v1169 = vunpack.c.l.b16 %v974
        %v1170 = vunpack.c.h.b16 %v974
        %v1171 = vunpack.c.l.b16 %v975
        %v1172 = vunpack.c.l.b16 %v976
        %v1173 = vunpack.c.h.b16 %v976
        %v1174 = vunpack.c.l.b16 %v977
        %v1175 = vunpack.c.l.b16 %v978
        %v1176 = vunpack.c.h.b16 %v978
        %v1177 = vunpack.c.l.b16 %v979
        %v1178 = vunpack.c.l.b16 %v980
        %v1179 = vunpack.c.h.b16 %v980
        %v1180 = vunpack.c.l.b16 %v981
        %v1181 = vunpack.c.l.b16 %v982
        %v1182 = vunpack.c.h.b16 %v982
        %v1183 = vunpack.c.l.b16 %v983
        %v1184 = vunpack.c.l.b16 %v984
        %v1185 = vunpack.c.h.b16 %v984
        %v1186 = vunpack.c.l.b16 %v985
        %v1187 = vunpack.c.l.b16 %v986
        %v1188 = vunpack.c.h.b16 %v986
        %v1189 = vunpack.c.l.b16 %v987
        %v1190 = vunpack.c.l.b16 %v988
        %v1191 = vunpack.c.h.b16 %v988
        %v1192 = vunpack.c.l.b16 %v989
        %v1193 = vunpack.c.l.b16 %v990
        %v1194 = vunpack.c.h.b16 %v990
        %v1195 = vunpack.c.l.b16 %v991
        %v1196 = vunpack.c.l.b16 %v992
        %v1197 = vunpack.c.h.b16 %v992
        %v1198 = vunpack.c.l.b16 %v993
        %v1199 = vunpack.c.l.b16 %v994
        %v1200 = vunpack.c.h.b16 %v994
        %v1201 = vunpack.c.l.b16 %v995
        %v1202 = vunpack.c.l.b16 %v996
        %v1203 = vunpack.c.h.b16 %v996
        %v1204 = vunpack.c.l.b16 %v997
        %v1205 = vpack.c.b16 %v1124, %v1121
        %v1206 = vpack.c.b16 %v1125, %v1122
        %v1207 = vpack.c.b16 %v1126, %v1123
        %v1208 = vpack.c.b16 %v1130, %v1127
        %v1209 = vpack.c.b16 %v1131, %v1128
        %v1210 = vpack.c.b16 %v1132, %v1129
        %v1211 = vpack.c.b16 %v1136, %v1133
        %v1212 = vpack.c.b16 %v1137, %v1134
        %v1213 = vpack.c.b16 %v1138, %v1135
        %v1214 = vpack.c.b16 %v1142, %v1139
        %v1215 = vpack.c.b16 %v1143, %v1140
        %v1216 = vpack.c.b16 %v1144, %v1141
        %v1217 = vpack.c.b16 %v1148, %v1145
        %v1218 = vpack.c.b16 %v1149, %v1146
        %v1219 = vpack.c.b16 %v1150, %v1147
        %v1220 = vpack.c.b16 %v1154, %v1151
        %v1221 = vpack.c.b16 %v1155, %v1152
        %v1222 = vpack.c.b16 %v1156, %v1153
        %v1223 = vpack.c.b16 %v1160, %v1157
        %v1224 = vpack.c.b16 %v1161, %v1158
        %v1225 = vpack.c.b16 %v1162, %v1159
        %v1226 = vpack.c.b16 %v1166, %v1163
        %v1227 = vpack.c.b16 %v1167, %v1164
        %v1228 = vpack.c.b16 %v1168, %v1165
        %v1229 = vpack.c.b16 %v1172, %v1169
        %v1230 = vpack.c.b16 %v1173, %v1170
        %v1231 = vpack.c.b16 %v1174, %v1171
        %v1232 = vpack.c.b16 %v1178, %v1175
        %v1233 = vpack.c.b16 %v1179, %v1176
        %v1234 = vpack.c.b16 %v1180, %v1177
        %v1235 = vpack.c.b16 %v1184, %v1181
        %v1236 = vpack.c.b16 %v1185, %v1182
        %v1237 = vpack.c.b16 %v1186, %v1183
        %v1238 = vpack.c.b16 %v1190, %v1187
        %v1239 = vpack.c.b16 %v1191, %v1188
        %v1240 = vpack.c.b16 %v1192, %v1189
        %v1241 = vpack.c.b16 %v1196, %v1193
        %v1242 = vpack.c.b16 %v1197, %v1194
        %v1243 = vpack.c.b16 %v1198, %v1195
        %v1244 = vpack.c.b16 %v1202, %v1199
        %v1245 = vpack.c.b16 %v1203, %v1200
        %v1246 = vpack.c.b16 %v1204, %v1201
        %v1290 = vsel %vm836, %v1022, 0
        %v1293 = vsel %vm836, %v1038, 0
        %v1296 = vsel %vm836, %v1054, 0
        %v1299 = vsel %vm836, %v1060, 0
        %1301 = vmatprep.subr.bf16.mxu0 %v1206
        %1302 = vmatpush1.bf16.msra.mxu0 %v1205
        %1303 = vmatprep.subr.bf16.mxu0 %v1209
        %1304 = vmatpush1.bf16.msra.mxu0 %v1208
        %1305 = vmatprep.subr.bf16.mxu0 %v1212
        %1306 = vmatpush1.bf16.msra.mxu0 %v1211
        %1307 = vmatprep.subr.bf16.mxu0 %v1215
        %1308 = vmatpush1.bf16.msra.mxu0 %v1214
        %1309 = vmatprep.subr.bf16.mxu0 %v1218
        %1310 = vmatpush1.bf16.msra.mxu0 %v1217
        %1311 = vmatprep.subr.bf16.mxu0 %v1221
        %1312 = vmatpush1.bf16.msra.mxu0 %v1220
        %1313 = vmatprep.subr.bf16.mxu0 %v1224
        %1314 = vmatpush1.bf16.msra.mxu0 %v1223
        %1315 = vmatprep.subr.bf16.mxu0 %v1227
        %1316 = vmatpush1.bf16.msra.mxu0 %v1226
        %1317 = vmatprep.subr.bf16.mxu0 %v1230
        %1318 = vmatpush1.bf16.msra.mxu0 %v1229
        %1319 = vmatprep.subr.bf16.mxu0 %v1233
        %1320 = vmatpush1.bf16.msra.mxu0 %v1232
        %1321 = vmatprep.subr.bf16.mxu0 %v1236
        %1322 = vmatpush1.bf16.msra.mxu0 %v1235
        %1323 = vmatprep.subr.bf16.mxu0 %v1239
        %1324 = vmatpush1.bf16.msra.mxu0 %v1238
        %1325 = vmatprep.subr.bf16.mxu0 %v1242
        %1326 = vmatpush1.bf16.msra.mxu0 %v1241
        %1327 = vmatprep.subr.bf16.mxu0 %v1245
        %1328 = vmatpush1.bf16.msra.mxu0 %v1244
        %1329 = vmatprep.subr.bf16.mxu0 0
        %1330 = vmatpush1.bf16.msra.mxu0 0
        %1331 = vmatprep.subr.bf16.mxu0 0
        %1332 = vmatpush1.bf16.msra.mxu0 0
        %1333 = vmatprep.mubr.bf16.mxu0 %v1290
        %1334 = vmatmul.mubr.bf16.gmra.mrb[0].mxu0 %v1010
        %v1335 = vpop.f32.mrb[0].mxu0
        %v1336 = vadd.f32 0.0, %v1335
        %v1337 = vpop.f32.mrb[0].mxu0
        %v1338 = vadd.f32 0.0, %v1337
        %v1339 = vpop.f32.mrb[0].mxu0
        %v1340 = vadd.f32 0.0, %v1339
        %v1341 = vpop.f32.mrb[0].mxu0
        %v1342 = vadd.f32 0.0, %v1341
        %1343 = vmatprep.mubr.bf16.mxu0 %v1293
        %1344 = vmatmul.mubr.bf16.gmra.mrb[0].mxu0 %v1030
        %v1345 = vpop.f32.mrb[0].mxu0
        %v1346 = vadd.f32 0.0, %v1345
        %v1347 = vpop.f32.mrb[0].mxu0
        %v1348 = vadd.f32 0.0, %v1347
        %v1349 = vpop.f32.mrb[0].mxu0
        %v1350 = vadd.f32 0.0, %v1349
        %v1351 = vpop.f32.mrb[0].mxu0
        %v1352 = vadd.f32 0.0, %v1351
        %1353 = vmatprep.mubr.bf16.mxu0 %v1296
        %1354 = vmatmul.mubr.bf16.gmra.mrb[0].mxu0 %v1046
        %v1355 = vpop.f32.mrb[0].mxu0
        %v1356 = vadd.f32 0.0, %v1355
        %v1357 = vpop.f32.mrb[0].mxu0
        %v1358 = vadd.f32 0.0, %v1357
        %v1359 = vpop.f32.mrb[0].mxu0
        %v1360 = vadd.f32 0.0, %v1359
        %v1361 = vpop.f32.mrb[0].mxu0
        %v1362 = vadd.f32 0.0, %v1361
        %1363 = vmatprep.mubr.bf16.mxu0 %v1299
        %1364 = vmatmul.mubr.bf16.gmra.mrb[0].mxu0 %v1057
        %v1365 = vpop.f32.mrb[0].mxu0
        %v1366 = vadd.f32 0.0, %v1365
        %v1367 = vpop.f32.mrb[0].mxu0
        %v1368 = vadd.f32 0.0, %v1367
        %v1369 = vpop.f32.mrb[0].mxu0
        %v1370 = vadd.f32 0.0, %v1369
        %v1371 = vpop.f32.mrb[0].mxu0
        %v1372 = vadd.f32 0.0, %v1371
        %1373 = vdwg.mxu0
        %1374 = vmatprep.subr.bf16.mxu0 0
        %1375 = vmatpush1.bf16.msra.mxu0 %v1207
        %1376 = vmatprep.subr.bf16.mxu0 0
        %1377 = vmatpush1.bf16.msra.mxu0 %v1210
        %1378 = vmatprep.subr.bf16.mxu0 0
        %1379 = vmatpush1.bf16.msra.mxu0 %v1213
        %1380 = vmatprep.subr.bf16.mxu0 0
        %1381 = vmatpush1.bf16.msra.mxu0 %v1216
        %1382 = vmatprep.subr.bf16.mxu0 0
        %1383 = vmatpush1.bf16.msra.mxu0 %v1219
        %1384 = vmatprep.subr.bf16.mxu0 0
        %1385 = vmatpush1.bf16.msra.mxu0 %v1222
        %1386 = vmatprep.subr.bf16.mxu0 0
        %1387 = vmatpush1.bf16.msra.mxu0 %v1225
        %1388 = vmatprep.subr.bf16.mxu0 0
        %1389 = vmatpush1.bf16.msra.mxu0 %v1228
        %1390 = vmatprep.subr.bf16.mxu0 0
        %1391 = vmatpush1.bf16.msra.mxu0 %v1231
        %1392 = vmatprep.subr.bf16.mxu0 0
        %1393 = vmatpush1.bf16.msra.mxu0 %v1234
        %1394 = vmatprep.subr.bf16.mxu0 0
        %1395 = vmatpush1.bf16.msra.mxu0 %v1237
        %1396 = vmatprep.subr.bf16.mxu0 0
        %1397 = vmatpush1.bf16.msra.mxu0 %v1240
        %1398 = vmatprep.subr.bf16.mxu0 0
        %1399 = vmatpush1.bf16.msra.mxu0 %v1243
        %1400 = vmatprep.subr.bf16.mxu0 0
        %1401 = vmatpush1.bf16.msra.mxu0 %v1246
        %1402 = vmatprep.subr.bf16.mxu0 0
        %1403 = vmatpush1.bf16.msra.mxu0 0
        %1404 = vmatprep.subr.bf16.mxu0 0
        %1405 = vmatpush1.bf16.msra.mxu0 0
        %1406 = vmatprep.mubr.bf16.mxu0 %v1290
        %1407 = vmatmul.mubr.bf16.gmra.mrb[0].mxu0 %v1010
        %v1408 = vpop.f32.mrb[0].mxu0
        %v1409 = vadd.f32 0.0, %v1408
        %v1410 = vpop.f32.mrb[0].mxu0
        %v1411 = vpop.f32.mrb[0].mxu0
        %v1412 = vadd.f32 0.0, %v1411
        %v1413 = vpop.f32.mrb[0].mxu0
        %1414 = vmatprep.mubr.bf16.mxu0 %v1293
        %1415 = vmatmul.mubr.bf16.gmra.mrb[0].mxu0 %v1030
        %v1416 = vpop.f32.mrb[0].mxu0
        %v1417 = vadd.f32 0.0, %v1416
        %v1418 = vpop.f32.mrb[0].mxu0
        %v1419 = vpop.f32.mrb[0].mxu0
        %v1420 = vadd.f32 0.0, %v1419
        %v1421 = vpop.f32.mrb[0].mxu0
        %1422 = vmatprep.mubr.bf16.mxu0 %v1296
        %1423 = vmatmul.mubr.bf16.gmra.mrb[0].mxu0 %v1046
        %v1424 = vpop.f32.mrb[0].mxu0
        %v1425 = vadd.f32 0.0, %v1424
        %v1426 = vpop.f32.mrb[0].mxu0
        %v1427 = vpop.f32.mrb[0].mxu0
        %v1428 = vadd.f32 0.0, %v1427
        %v1429 = vpop.f32.mrb[0].mxu0
        %1430 = vmatprep.mubr.bf16.mxu0 %v1299
        %1431 = vmatmul.mubr.bf16.gmra.mrb[0].mxu0 %v1057
        %v1432 = vpop.f32.mrb[0].mxu0
        %v1433 = vadd.f32 0.0, %v1432
        %v1434 = vpop.f32.mrb[0].mxu0
        %v1435 = vpop.f32.mrb[0].mxu0
        %v1436 = vadd.f32 0.0, %v1435
        %v1437 = vpop.f32.mrb[0].mxu0
        %1438 = vdwg.mxu0
        %v1495 = vunpack.c.l.b16 %v877
        %v1496 = vunpack.c.h.b16 %v877
        %v1497 = vunpack.c.l.b16 %v878
        %v1498 = vunpack.c.l.b16 %v879
        %v1499 = vunpack.c.h.b16 %v879
        %v1500 = vunpack.c.l.b16 %v880
        %v1501 = vunpack.c.l.b16 %v881
        %v1502 = vunpack.c.h.b16 %v881
        %v1503 = vunpack.c.l.b16 %v882
        %v1504 = vunpack.c.l.b16 %v883
        %v1505 = vunpack.c.h.b16 %v883
        %v1506 = vunpack.c.l.b16 %v884
        %v1507 = vunpack.c.l.b16 %v885
        %v1508 = vunpack.c.h.b16 %v885
        %v1509 = vunpack.c.l.b16 %v886
        %v1510 = vunpack.c.l.b16 %v887
        %v1511 = vunpack.c.h.b16 %v887
        %v1512 = vunpack.c.l.b16 %v888
        %v1513 = vunpack.c.l.b16 %v889
        %v1514 = vunpack.c.h.b16 %v889
        %v1515 = vunpack.c.l.b16 %v890
        %v1516 = vunpack.c.l.b16 %v891
        %v1517 = vunpack.c.h.b16 %v891
        %v1518 = vunpack.c.l.b16 %v892
        %v1519 = vunpack.c.l.b16 %v893
        %v1520 = vunpack.c.h.b16 %v893
        %v1521 = vunpack.c.l.b16 %v894
        %v1522 = vunpack.c.l.b16 %v895
        %v1523 = vunpack.c.h.b16 %v895
        %v1524 = vunpack.c.l.b16 %v896
        %v1525 = vunpack.c.l.b16 %v897
        %v1526 = vunpack.c.h.b16 %v897
        %v1527 = vunpack.c.l.b16 %v898
        %v1528 = vunpack.c.l.b16 %v899
        %v1529 = vunpack.c.h.b16 %v899
        %v1530 = vunpack.c.l.b16 %v900
        %v1531 = vunpack.c.l.b16 %v901
        %v1532 = vunpack.c.h.b16 %v901
        %v1533 = vunpack.c.l.b16 %v902
        %v1534 = vunpack.c.l.b16 %v903
        %v1535 = vunpack.c.h.b16 %v903
        %v1536 = vunpack.c.l.b16 %v904
        %v1537 = vunpack.c.l.b16 %v905
        %v1538 = vunpack.c.h.b16 %v905
        %v1539 = vunpack.c.l.b16 %v906
        %v1540 = vunpack.c.l.b16 %v907
        %v1541 = vunpack.c.h.b16 %v907
        %v1542 = vunpack.c.l.b16 %v908
        %v1543 = vunpack.c.l.b16 %v909
        %v1544 = vunpack.c.h.b16 %v909
        %v1545 = vunpack.c.l.b16 %v910
        %v1546 = vunpack.c.l.b16 %v911
        %v1547 = vunpack.c.h.b16 %v911
        %v1548 = vunpack.c.l.b16 %v912
        %v1549 = vunpack.c.l.b16 %v913
        %v1550 = vunpack.c.h.b16 %v913
        %v1551 = vunpack.c.l.b16 %v914
        %v1552 = vunpack.c.l.b16 %v915
        %v1553 = vunpack.c.h.b16 %v915
        %v1554 = vunpack.c.l.b16 %v916
        %v1555 = vunpack.c.l.b16 %v917
        %v1556 = vunpack.c.h.b16 %v917
        %v1557 = vunpack.c.l.b16 %v918
        %v1558 = vunpack.c.l.b16 %v919
        %v1559 = vunpack.c.h.b16 %v919
        %v1560 = vunpack.c.l.b16 %v920
        %v1561 = vunpack.c.l.b16 %v921
        %v1562 = vunpack.c.h.b16 %v921
        %v1563 = vunpack.c.l.b16 %v922
        %v1564 = vunpack.c.l.b16 %v923
        %v1565 = vunpack.c.h.b16 %v923
        %v1566 = vunpack.c.l.b16 %v924
        %v1567 = vunpack.c.l.b16 %v925
        %v1568 = vunpack.c.h.b16 %v925
        %v1569 = vunpack.c.l.b16 %v926
        %v1570 = vunpack.c.l.b16 %v927
        %v1571 = vunpack.c.h.b16 %v927
        %v1572 = vunpack.c.l.b16 %v928
        %v1573 = vunpack.c.l.b16 %v929
        %v1574 = vunpack.c.h.b16 %v929
        %v1575 = vunpack.c.l.b16 %v930
        %v1576 = vunpack.c.l.b16 %v931
        %v1577 = vunpack.c.h.b16 %v931
        %v1578 = vunpack.c.l.b16 %v932
        %v1579 = vpack.c.b16 %v1498, %v1495
        %v1580 = vpack.c.b16 %v1499, %v1496
        %v1581 = vpack.c.b16 %v1500, %v1497
        %v1582 = vpack.c.b16 %v1504, %v1501
        %v1583 = vpack.c.b16 %v1505, %v1502
        %v1584 = vpack.c.b16 %v1506, %v1503
        %v1585 = vpack.c.b16 %v1510, %v1507
        %v1586 = vpack.c.b16 %v1511, %v1508
        %v1587 = vpack.c.b16 %v1512, %v1509
        %v1588 = vpack.c.b16 %v1516, %v1513
        %v1589 = vpack.c.b16 %v1517, %v1514
        %v1590 = vpack.c.b16 %v1518, %v1515
        %v1591 = vpack.c.b16 %v1522, %v1519
        %v1592 = vpack.c.b16 %v1523, %v1520
        %v1593 = vpack.c.b16 %v1524, %v1521
        %v1594 = vpack.c.b16 %v1528, %v1525
        %v1595 = vpack.c.b16 %v1529, %v1526
        %v1596 = vpack.c.b16 %v1530, %v1527
        %v1597 = vpack.c.b16 %v1534, %v1531
        %v1598 = vpack.c.b16 %v1535, %v1532
        %v1599 = vpack.c.b16 %v1536, %v1533
        %v1600 = vpack.c.b16 %v1540, %v1537
        %v1601 = vpack.c.b16 %v1541, %v1538
        %v1602 = vpack.c.b16 %v1542, %v1539
        %v1603 = vpack.c.b16 %v1546, %v1543
        %v1604 = vpack.c.b16 %v1547, %v1544
        %v1605 = vpack.c.b16 %v1548, %v1545
        %v1606 = vpack.c.b16 %v1552, %v1549
        %v1607 = vpack.c.b16 %v1553, %v1550
        %v1608 = vpack.c.b16 %v1554, %v1551
        %v1609 = vpack.c.b16 %v1558, %v1555
        %v1610 = vpack.c.b16 %v1559, %v1556
        %v1611 = vpack.c.b16 %v1560, %v1557
        %v1612 = vpack.c.b16 %v1564, %v1561
        %v1613 = vpack.c.b16 %v1565, %v1562
        %v1614 = vpack.c.b16 %v1566, %v1563
        %v1615 = vpack.c.b16 %v1570, %v1567
        %v1616 = vpack.c.b16 %v1571, %v1568
        %v1617 = vpack.c.b16 %v1572, %v1569
        %v1618 = vpack.c.b16 %v1576, %v1573
        %v1619 = vpack.c.b16 %v1577, %v1574
        %v1620 = vpack.c.b16 %v1578, %v1575
        %v1664 = vsel %vm836, %v870, 0
        %v1666 = vsel %vm836, %v872, 0
        %v1668 = vsel %vm836, %v874, 0
        %v1671 = vsel %vm836, %v876, 0
        %1673 = vmatprep.subr.bf16.mxu0 %v1580
        %1674 = vmatpush1.bf16.msra.mxu0 %v1579
        %1675 = vmatprep.subr.bf16.mxu0 %v1583
        %1676 = vmatpush1.bf16.msra.mxu0 %v1582
        %1677 = vmatprep.subr.bf16.mxu0 %v1586
        %1678 = vmatpush1.bf16.msra.mxu0 %v1585
        %1679 = vmatprep.subr.bf16.mxu0 %v1589
        %1680 = vmatpush1.bf16.msra.mxu0 %v1588
        %1681 = vmatprep.subr.bf16.mxu0 %v1592
        %1682 = vmatpush1.bf16.msra.mxu0 %v1591
        %1683 = vmatprep.subr.bf16.mxu0 %v1595
        %1684 = vmatpush1.bf16.msra.mxu0 %v1594
        %1685 = vmatprep.subr.bf16.mxu0 %v1598
        %1686 = vmatpush1.bf16.msra.mxu0 %v1597
        %1687 = vmatprep.subr.bf16.mxu0 %v1601
        %1688 = vmatpush1.bf16.msra.mxu0 %v1600
        %1689 = vmatprep.subr.bf16.mxu0 %v1604
        %1690 = vmatpush1.bf16.msra.mxu0 %v1603
        %1691 = vmatprep.subr.bf16.mxu0 %v1607
        %1692 = vmatpush1.bf16.msra.mxu0 %v1606
        %1693 = vmatprep.subr.bf16.mxu0 %v1610
        %1694 = vmatpush1.bf16.msra.mxu0 %v1609
        %1695 = vmatprep.subr.bf16.mxu0 %v1613
        %1696 = vmatpush1.bf16.msra.mxu0 %v1612
        %1697 = vmatprep.subr.bf16.mxu0 %v1616
        %1698 = vmatpush1.bf16.msra.mxu0 %v1615
        %1699 = vmatprep.subr.bf16.mxu0 %v1619
        %1700 = vmatpush1.bf16.msra.mxu0 %v1618
        %1701 = vmatprep.subr.bf16.mxu0 0
        %1702 = vmatpush1.bf16.msra.mxu0 0
        %1703 = vmatprep.subr.bf16.mxu0 0
        %1704 = vmatpush1.bf16.msra.mxu0 0
        %1705 = vmatprep.mubr.bf16.mxu0 %v1664
        %1706 = vmatmul.mubr.bf16.gmra.mrb[0].mxu0 %v869
        %v1707 = vpop.f32.mrb[0].mxu0
        %v1708 = vadd.f32 %v1336, %v1707
        %v1709 = vpop.f32.mrb[0].mxu0
        %v1710 = vadd.f32 %v1338, %v1709
        %v1711 = vpop.f32.mrb[0].mxu0
        %v1712 = vadd.f32 %v1340, %v1711
        %v1713 = vpop.f32.mrb[0].mxu0
        %v1714 = vadd.f32 %v1342, %v1713
        %1715 = vmatprep.mubr.bf16.mxu0 %v1666
        %1716 = vmatmul.mubr.bf16.gmra.mrb[0].mxu0 %v871
        %v1717 = vpop.f32.mrb[0].mxu0
        %v1718 = vadd.f32 %v1346, %v1717
        %v1719 = vpop.f32.mrb[0].mxu0
        %v1720 = vadd.f32 %v1348, %v1719
        %v1721 = vpop.f32.mrb[0].mxu0
        %v1722 = vadd.f32 %v1350, %v1721
        %v1723 = vpop.f32.mrb[0].mxu0
        %v1724 = vadd.f32 %v1352, %v1723
        %1725 = vmatprep.mubr.bf16.mxu0 %v1668
        %1726 = vmatmul.mubr.bf16.gmra.mrb[0].mxu0 %v873
        %v1727 = vpop.f32.mrb[0].mxu0
        %v1728 = vadd.f32 %v1356, %v1727
        %v1729 = vpop.f32.mrb[0].mxu0
        %v1730 = vadd.f32 %v1358, %v1729
        %v1731 = vpop.f32.mrb[0].mxu0
        %v1732 = vadd.f32 %v1360, %v1731
        %v1733 = vpop.f32.mrb[0].mxu0
        %v1734 = vadd.f32 %v1362, %v1733
        %1735 = vmatprep.mubr.bf16.mxu0 %v1671
        %1736 = vmatmul.mubr.bf16.gmra.mrb[0].mxu0 %v875
        %v1737 = vpop.f32.mrb[0].mxu0
        %v1738 = vadd.f32 %v1366, %v1737
        %v1739 = vpop.f32.mrb[0].mxu0
        %v1740 = vadd.f32 %v1368, %v1739
        %v1741 = vpop.f32.mrb[0].mxu0
        %v1742 = vadd.f32 %v1370, %v1741
        %v1743 = vpop.f32.mrb[0].mxu0
        %v1744 = vadd.f32 %v1372, %v1743
        %1745 = vdwg.mxu0
        %1746 = vmatprep.subr.bf16.mxu0 0
        %1747 = vmatpush1.bf16.msra.mxu0 %v1581
        %1748 = vmatprep.subr.bf16.mxu0 0
        %1749 = vmatpush1.bf16.msra.mxu0 %v1584
        %1750 = vmatprep.subr.bf16.mxu0 0
        %1751 = vmatpush1.bf16.msra.mxu0 %v1587
        %1752 = vmatprep.subr.bf16.mxu0 0
        %1753 = vmatpush1.bf16.msra.mxu0 %v1590
        %1754 = vmatprep.subr.bf16.mxu0 0
        %1755 = vmatpush1.bf16.msra.mxu0 %v1593
        %1756 = vmatprep.subr.bf16.mxu0 0
        %1757 = vmatpush1.bf16.msra.mxu0 %v1596
        %1758 = vmatprep.subr.bf16.mxu0 0
        %1759 = vmatpush1.bf16.msra.mxu0 %v1599
        %1760 = vmatprep.subr.bf16.mxu0 0
        %1761 = vmatpush1.bf16.msra.mxu0 %v1602
        %1762 = vmatprep.subr.bf16.mxu0 0
        %1763 = vmatpush1.bf16.msra.mxu0 %v1605
        %1764 = vmatprep.subr.bf16.mxu0 0
        %1765 = vmatpush1.bf16.msra.mxu0 %v1608
        %1766 = vmatprep.subr.bf16.mxu0 0
        %1767 = vmatpush1.bf16.msra.mxu0 %v1611
        %1768 = vmatprep.subr.bf16.mxu0 0
        %1769 = vmatpush1.bf16.msra.mxu0 %v1614
        %1770 = vmatprep.subr.bf16.mxu0 0
        %1771 = vmatpush1.bf16.msra.mxu0 %v1617
        %1772 = vmatprep.subr.bf16.mxu0 0
        %1773 = vmatpush1.bf16.msra.mxu0 %v1620
        %1774 = vmatprep.subr.bf16.mxu0 0
        %1775 = vmatpush1.bf16.msra.mxu0 0
        %1776 = vmatprep.subr.bf16.mxu0 0
        %1777 = vmatpush1.bf16.msra.mxu0 0
        %1778 = vmatprep.mubr.bf16.mxu0 %v1664
        %1779 = vmatmul.mubr.bf16.gmra.mrb[0].mxu0 %v869
        %v1780 = vpop.f32.mrb[0].mxu0
        %v1781 = vadd.f32 %v1409, %v1780
        %v1782 = vpop.f32.mrb[0].mxu0
        %v1783 = vpop.f32.mrb[0].mxu0
        %v1784 = vadd.f32 %v1412, %v1783
        %v1785 = vpop.f32.mrb[0].mxu0
        %1786 = vmatprep.mubr.bf16.mxu0 %v1666
        %1787 = vmatmul.mubr.bf16.gmra.mrb[0].mxu0 %v871
        %v1788 = vpop.f32.mrb[0].mxu0
        %v1789 = vadd.f32 %v1417, %v1788
        %v1790 = vpop.f32.mrb[0].mxu0
        %v1791 = vpop.f32.mrb[0].mxu0
        %v1792 = vadd.f32 %v1420, %v1791
        %v1793 = vpop.f32.mrb[0].mxu0
        %1794 = vmatprep.mubr.bf16.mxu0 %v1668
        %1795 = vmatmul.mubr.bf16.gmra.mrb[0].mxu0 %v873
        %v1796 = vpop.f32.mrb[0].mxu0
        %v1797 = vadd.f32 %v1425, %v1796
        %v1798 = vpop.f32.mrb[0].mxu0
        %v1799 = vpop.f32.mrb[0].mxu0
        %v1800 = vadd.f32 %v1428, %v1799
        %v1801 = vpop.f32.mrb[0].mxu0
        %1802 = vmatprep.mubr.bf16.mxu0 %v1671
        %1803 = vmatmul.mubr.bf16.gmra.mrb[0].mxu0 %v875
        %v1804 = vpop.f32.mrb[0].mxu0
        %v1805 = vadd.f32 %v1433, %v1804
        %v1806 = vpop.f32.mrb[0].mxu0
        %v1807 = vpop.f32.mrb[0].mxu0
        %v1808 = vadd.f32 %v1436, %v1807
        %v1809 = vpop.f32.mrb[0].mxu0
        %1810 = vdwg.mxu0
        %v1811 = vld [vmem:[#allocation2] sm:$0xfc]
        %v1812 = vld [vmem:[#allocation2 + $0x8] sm:$0xfc]
        %v1813 = vld [vmem:[#allocation2 + $0x70] sm:$0xff]
        %v1814 = vld [vmem:[#allocation2 + $0x78] sm:$0xff]
        %v1815 = vpack.c.bf16 %v855, %v1811
        %v1816 = vpack.c.bf16 %v856, %v1812
        %v1817 = vpack.c.bf16 %v1813, %v865
        %v1818 = vpack.c.bf16 %v1814, %v866
        %s1819 = scalar_lea.vmem [#allocation8], 672
        %v1820 = vld [vmem:[%s1819] sm:$0xff]
        %v1821 = vld [vmem:[%s1819 + $0x8] sm:$0xf]
        %v1822 = vld [vmem:[%s1819 + $0xc] sm:$0xff]
        %v1823 = vld [vmem:[%s1819 + $0x14] sm:$0xf]
        %v1824 = vld [vmem:[%s1819 + $0x18] sm:$0xff]
        %v1825 = vld [vmem:[%s1819 + $0x20] sm:$0xf]
        %v1826 = vld [vmem:[%s1819 + $0x24] sm:$0xff]
        %v1827 = vld [vmem:[%s1819 + $0x2c] sm:$0xf]
        %v1828 = vld [vmem:[%s1819 + $0x30] sm:$0xff]
        %v1829 = vld [vmem:[%s1819 + $0x38] sm:$0xf]
        %v1830 = vld [vmem:[%s1819 + $0x3c] sm:$0xff]
        %v1831 = vld [vmem:[%s1819 + $0x44] sm:$0xf]
        %v1832 = vld [vmem:[%s1819 + $0x48] sm:$0xff]
        %v1833 = vld [vmem:[%s1819 + $0x50] sm:$0xf]
        %v1834 = vld [vmem:[%s1819 + $0x54] sm:$0xff]
        %v1835 = vld [vmem:[%s1819 + $0x5c] sm:$0xf]
        %v1836 = vld [vmem:[%s1819 + $0x60] sm:$0xff]
        %v1837 = vld [vmem:[%s1819 + $0x68] sm:$0xf]
        %v1838 = vld [vmem:[%s1819 + $0x6c] sm:$0xff]
        %v1839 = vld [vmem:[%s1819 + $0x74] sm:$0xf]
        %v1840 = vld [vmem:[%s1819 + $0x78] sm:$0xff]
        %v1841 = vld [vmem:[%s1819 + $0x80] sm:$0xf]
        %v1842 = vld [vmem:[%s1819 + $0x84] sm:$0xff]
        %v1843 = vld [vmem:[%s1819 + $0x8c] sm:$0xf]
        %v1844 = vld [vmem:[%s1819 + $0x90] sm:$0xff]
        %v1845 = vld [vmem:[%s1819 + $0x98] sm:$0xf]
        %v1846 = vld [vmem:[%s1819 + $0x9c] sm:$0xff]
        %v1847 = vld [vmem:[%s1819 + $0xa4] sm:$0xf]
        %v1848 = vld [vmem:[%s1819 + $0xa8] sm:$0xff]
        %v1849 = vld [vmem:[%s1819 + $0xb0] sm:$0xf]
        %v1850 = vld [vmem:[%s1819 + $0xb4] sm:$0xff]
        %v1851 = vld [vmem:[%s1819 + $0xbc] sm:$0xf]
        %v1852 = vld [vmem:[%s1819 + $0xc0] sm:$0xff]
        %v1853 = vld [vmem:[%s1819 + $0xc8] sm:$0xf]
        %v1854 = vld [vmem:[%s1819 + $0xcc] sm:$0xff]
        %v1855 = vld [vmem:[%s1819 + $0xd4] sm:$0xf]
        %v1856 = vld [vmem:[%s1819 + $0xd8] sm:$0xff]
        %v1857 = vld [vmem:[%s1819 + $0xe0] sm:$0xf]
        %v1858 = vld [vmem:[%s1819 + $0xe4] sm:$0xff]
        %v1859 = vld [vmem:[%s1819 + $0xec] sm:$0xf]
        %v1860 = vld [vmem:[%s1819 + $0xf0] sm:$0xff]
        %v1861 = vld [vmem:[%s1819 + $0xf8] sm:$0xf]
        %v1862 = vld [vmem:[%s1819 + $0xfc] sm:$0xff]
        %v1863 = vld [vmem:[%s1819 + $0x104] sm:$0xf]
        %v1864 = vld [vmem:[%s1819 + $0x108] sm:$0xff]
        %v1865 = vld [vmem:[%s1819 + $0x110] sm:$0xf]
        %v1866 = vld [vmem:[%s1819 + $0x114] sm:$0xff]
        %v1867 = vld [vmem:[%s1819 + $0x11c] sm:$0xf]
        %v1868 = vld [vmem:[%s1819 + $0x120] sm:$0xff]
        %v1869 = vld [vmem:[%s1819 + $0x128] sm:$0xf]
        %v1870 = vld [vmem:[%s1819 + $0x12c] sm:$0xff]
        %v1871 = vld [vmem:[%s1819 + $0x134] sm:$0xf]
        %v1872 = vld [vmem:[%s1819 + $0x138] sm:$0xff]
        %v1873 = vld [vmem:[%s1819 + $0x140] sm:$0xf]
        %v1874 = vld [vmem:[%s1819 + $0x144] sm:$0xff]
        %v1875 = vld [vmem:[%s1819 + $0x14c] sm:$0xf]
        %vm1884 = vcmask 1046528
        %v1885 = vrot.slane %v1815, 1
        %v1886 = vrot.slane %v871, 1
        %v1887 = vsel %vm1884, %v1885, %v1886
        %v1888 = vrot.slane %v1816, 1
        %v1889 = vrot.slane %v872, 1
        %v1890 = vsel %vm1884, %v1888, %v1889
        %v1891 = vrot.slane %v873, 1
        %v1892 = vsel %vm1884, %v1886, %v1891
        %v1893 = vrot.slane %v874, 1
        %v1894 = vsel %vm1884, %v1889, %v1893
        %v1895 = vrot.slane %v1817, 1
        %v1896 = vsel %vm1884, %v1891, %v1895
        %v1897 = vrot.slane %v1818, 1
        %v1898 = vsel %vm1884, %v1893, %v1897
        %v1959 = vunpack.c.l.b16 %v1820
        %v1960 = vunpack.c.h.b16 %v1820
        %v1961 = vunpack.c.l.b16 %v1821
        %v1962 = vunpack.c.l.b16 %v1822
        %v1963 = vunpack.c.h.b16 %v1822
        %v1964 = vunpack.c.l.b16 %v1823
        %v1965 = vunpack.c.l.b16 %v1824
        %v1966 = vunpack.c.h.b16 %v1824
        %v1967 = vunpack.c.l.b16 %v1825
        %v1968 = vunpack.c.l.b16 %v1826
        %v1969 = vunpack.c.h.b16 %v1826
        %v1970 = vunpack.c.l.b16 %v1827
        %v1971 = vunpack.c.l.b16 %v1828
        %v1972 = vunpack.c.h.b16 %v1828
        %v1973 = vunpack.c.l.b16 %v1829
        %v1974 = vunpack.c.l.b16 %v1830
        %v1975 = vunpack.c.h.b16 %v1830
        %v1976 = vunpack.c.l.b16 %v1831
        %v1977 = vunpack.c.l.b16 %v1832
        %v1978 = vunpack.c.h.b16 %v1832
        %v1979 = vunpack.c.l.b16 %v1833
        %v1980 = vunpack.c.l.b16 %v1834
        %v1981 = vunpack.c.h.b16 %v1834
        %v1982 = vunpack.c.l.b16 %v1835
        %v1983 = vunpack.c.l.b16 %v1836
        %v1984 = vunpack.c.h.b16 %v1836
        %v1985 = vunpack.c.l.b16 %v1837
        %v1986 = vunpack.c.l.b16 %v1838
        %v1987 = vunpack.c.h.b16 %v1838
        %v1988 = vunpack.c.l.b16 %v1839
        %v1989 = vunpack.c.l.b16 %v1840
        %v1990 = vunpack.c.h.b16 %v1840
        %v1991 = vunpack.c.l.b16 %v1841
        %v1992 = vunpack.c.l.b16 %v1842
        %v1993 = vunpack.c.h.b16 %v1842
        %v1994 = vunpack.c.l.b16 %v1843
        %v1995 = vunpack.c.l.b16 %v1844
        %v1996 = vunpack.c.h.b16 %v1844
        %v1997 = vunpack.c.l.b16 %v1845
        %v1998 = vunpack.c.l.b16 %v1846
        %v1999 = vunpack.c.h.b16 %v1846
        %v2000 = vunpack.c.l.b16 %v1847
        %v2001 = vunpack.c.l.b16 %v1848
        %v2002 = vunpack.c.h.b16 %v1848
        %v2003 = vunpack.c.l.b16 %v1849
        %v2004 = vunpack.c.l.b16 %v1850
        %v2005 = vunpack.c.h.b16 %v1850
        %v2006 = vunpack.c.l.b16 %v1851
        %v2007 = vunpack.c.l.b16 %v1852
        %v2008 = vunpack.c.h.b16 %v1852
        %v2009 = vunpack.c.l.b16 %v1853
        %v2010 = vunpack.c.l.b16 %v1854
        %v2011 = vunpack.c.h.b16 %v1854
        %v2012 = vunpack.c.l.b16 %v1855
        %v2013 = vunpack.c.l.b16 %v1856
        %v2014 = vunpack.c.h.b16 %v1856
        %v2015 = vunpack.c.l.b16 %v1857
        %v2016 = vunpack.c.l.b16 %v1858
        %v2017 = vunpack.c.h.b16 %v1858
        %v2018 = vunpack.c.l.b16 %v1859
        %v2019 = vunpack.c.l.b16 %v1860
        %v2020 = vunpack.c.h.b16 %v1860
        %v2021 = vunpack.c.l.b16 %v1861
        %v2022 = vunpack.c.l.b16 %v1862
        %v2023 = vunpack.c.h.b16 %v1862
        %v2024 = vunpack.c.l.b16 %v1863
        %v2025 = vunpack.c.l.b16 %v1864
        %v2026 = vunpack.c.h.b16 %v1864
        %v2027 = vunpack.c.l.b16 %v1865
        %v2028 = vunpack.c.l.b16 %v1866
        %v2029 = vunpack.c.h.b16 %v1866
        %v2030 = vunpack.c.l.b16 %v1867
        %v2031 = vunpack.c.l.b16 %v1868
        %v2032 = vunpack.c.h.b16 %v1868
        %v2033 = vunpack.c.l.b16 %v1869
        %v2034 = vunpack.c.l.b16 %v1870
        %v2035 = vunpack.c.h.b16 %v1870
        %v2036 = vunpack.c.l.b16 %v1871
        %v2037 = vunpack.c.l.b16 %v1872
        %v2038 = vunpack.c.h.b16 %v1872
        %v2039 = vunpack.c.l.b16 %v1873
        %v2040 = vunpack.c.l.b16 %v1874
        %v2041 = vunpack.c.h.b16 %v1874
        %v2042 = vunpack.c.l.b16 %v1875
        %v2043 = vpack.c.b16 %v1962, %v1959
        %v2044 = vpack.c.b16 %v1963, %v1960
        %v2045 = vpack.c.b16 %v1964, %v1961
        %v2046 = vpack.c.b16 %v1968, %v1965
        %v2047 = vpack.c.b16 %v1969, %v1966
        %v2048 = vpack.c.b16 %v1970, %v1967
        %v2049 = vpack.c.b16 %v1974, %v1971
        %v2050 = vpack.c.b16 %v1975, %v1972
        %v2051 = vpack.c.b16 %v1976, %v1973
        %v2052 = vpack.c.b16 %v1980, %v1977
        %v2053 = vpack.c.b16 %v1981, %v1978
        %v2054 = vpack.c.b16 %v1982, %v1979
        %v2055 = vpack.c.b16 %v1986, %v1983
        %v2056 = vpack.c.b16 %v1987, %v1984
        %v2057 = vpack.c.b16 %v1988, %v1985
        %v2058 = vpack.c.b16 %v1992, %v1989
        %v2059 = vpack.c.b16 %v1993, %v1990
        %v2060 = vpack.c.b16 %v1994, %v1991
        %v2061 = vpack.c.b16 %v1998, %v1995
        %v2062 = vpack.c.b16 %v1999, %v1996
        %v2063 = vpack.c.b16 %v2000, %v1997
        %v2064 = vpack.c.b16 %v2004, %v2001
        %v2065 = vpack.c.b16 %v2005, %v2002
        %v2066 = vpack.c.b16 %v2006, %v2003
        %v2067 = vpack.c.b16 %v2010, %v2007
        %v2068 = vpack.c.b16 %v2011, %v2008
        %v2069 = vpack.c.b16 %v2012, %v2009
        %v2070 = vpack.c.b16 %v2016, %v2013
        %v2071 = vpack.c.b16 %v2017, %v2014
        %v2072 = vpack.c.b16 %v2018, %v2015
        %v2073 = vpack.c.b16 %v2022, %v2019
        %v2074 = vpack.c.b16 %v2023, %v2020
        %v2075 = vpack.c.b16 %v2024, %v2021
        %v2076 = vpack.c.b16 %v2028, %v2025
        %v2077 = vpack.c.b16 %v2029, %v2026
        %v2078 = vpack.c.b16 %v2030, %v2027
        %v2079 = vpack.c.b16 %v2034, %v2031
        %v2080 = vpack.c.b16 %v2035, %v2032
        %v2081 = vpack.c.b16 %v2036, %v2033
        %v2082 = vpack.c.b16 %v2040, %v2037
        %v2083 = vpack.c.b16 %v2041, %v2038
        %v2084 = vpack.c.b16 %v2042, %v2039
        %v2128 = vsel %vm836, %v1890, 0
        %v2131 = vsel %vm836, %v1894, 0
        %v2134 = vsel %vm836, %v1898, 0
        %v2137 = vsel %vm836, %v1897, 0
        %2139 = vmatprep.subr.bf16.mxu0 %v2044
        %2140 = vmatpush1.bf16.msra.mxu0 %v2043
        %2141 = vmatprep.subr.bf16.mxu0 %v2047
        %2142 = vmatpush1.bf16.msra.mxu0 %v2046
        %2143 = vmatprep.subr.bf16.mxu0 %v2050
        %2144 = vmatpush1.bf16.msra.mxu0 %v2049
        %2145 = vmatprep.subr.bf16.mxu0 %v2053
        %2146 = vmatpush1.bf16.msra.mxu0 %v2052
        %2147 = vmatprep.subr.bf16.mxu0 %v2056
        %2148 = vmatpush1.bf16.msra.mxu0 %v2055
        %2149 = vmatprep.subr.bf16.mxu0 %v2059
        %2150 = vmatpush1.bf16.msra.mxu0 %v2058
        %2151 = vmatprep.subr.bf16.mxu0 %v2062
        %2152 = vmatpush1.bf16.msra.mxu0 %v2061
        %2153 = vmatprep.subr.bf16.mxu0 %v2065
        %2154 = vmatpush1.bf16.msra.mxu0 %v2064
        %2155 = vmatprep.subr.bf16.mxu0 %v2068
        %2156 = vmatpush1.bf16.msra.mxu0 %v2067
        %2157 = vmatprep.subr.bf16.mxu0 %v2071
        %2158 = vmatpush1.bf16.msra.mxu0 %v2070
        %2159 = vmatprep.subr.bf16.mxu0 %v2074
        %2160 = vmatpush1.bf16.msra.mxu0 %v2073
        %2161 = vmatprep.subr.bf16.mxu0 %v2077
        %2162 = vmatpush1.bf16.msra.mxu0 %v2076
        %2163 = vmatprep.subr.bf16.mxu0 %v2080
        %2164 = vmatpush1.bf16.msra.mxu0 %v2079
        %2165 = vmatprep.subr.bf16.mxu0 %v2083
        %2166 = vmatpush1.bf16.msra.mxu0 %v2082
        %2167 = vmatprep.subr.bf16.mxu0 0
        %2168 = vmatpush1.bf16.msra.mxu0 0
        %2169 = vmatprep.subr.bf16.mxu0 0
        %2170 = vmatpush1.bf16.msra.mxu0 0
        %2171 = vmatprep.mubr.bf16.mxu0 %v2128
        %2172 = vmatmul.mubr.bf16.gmra.mrb[0].mxu0 %v1887
        %v2173 = vpop.f32.mrb[0].mxu0
        %v2174 = vadd.f32 0.0, %v2173
        %v2175 = vpop.f32.mrb[0].mxu0
        %v2176 = vadd.f32 0.0, %v2175
        %v2177 = vpop.f32.mrb[0].mxu0
        %v2178 = vadd.f32 0.0, %v2177
        %v2179 = vpop.f32.mrb[0].mxu0
        %v2180 = vadd.f32 0.0, %v2179
        %2181 = vmatprep.mubr.bf16.mxu0 %v2131
        %2182 = vmatmul.mubr.bf16.gmra.mrb[0].mxu0 %v1892
        %v2183 = vpop.f32.mrb[0].mxu0
        %v2184 = vadd.f32 0.0, %v2183
        %v2185 = vpop.f32.mrb[0].mxu0
        %v2186 = vadd.f32 0.0, %v2185
        %v2187 = vpop.f32.mrb[0].mxu0
        %v2188 = vadd.f32 0.0, %v2187
        %v2189 = vpop.f32.mrb[0].mxu0
        %v2190 = vadd.f32 0.0, %v2189
        %2191 = vmatprep.mubr.bf16.mxu0 %v2134
        %2192 = vmatmul.mubr.bf16.gmra.mrb[0].mxu0 %v1896
        %v2193 = vpop.f32.mrb[0].mxu0
        %v2194 = vadd.f32 0.0, %v2193
        %v2195 = vpop.f32.mrb[0].mxu0
        %v2196 = vadd.f32 0.0, %v2195
        %v2197 = vpop.f32.mrb[0].mxu0
        %v2198 = vadd.f32 0.0, %v2197
        %v2199 = vpop.f32.mrb[0].mxu0
        %v2200 = vadd.f32 0.0, %v2199
        %2201 = vmatprep.mubr.bf16.mxu0 %v2137
        %2202 = vmatmul.mubr.bf16.gmra.mrb[0].mxu0 %v1895
        %v2203 = vpop.f32.mrb[0].mxu0
        %v2204 = vadd.f32 0.0, %v2203
        %v2205 = vpop.f32.mrb[0].mxu0
        %v2206 = vadd.f32 0.0, %v2205
        %v2207 = vpop.f32.mrb[0].mxu0
        %v2208 = vadd.f32 0.0, %v2207
        %v2209 = vpop.f32.mrb[0].mxu0
        %v2210 = vadd.f32 0.0, %v2209
        %2211 = vdwg.mxu0
        %2212 = vmatprep.subr.bf16.mxu0 0
        %2213 = vmatpush1.bf16.msra.mxu0 %v2045
        %2214 = vmatprep.subr.bf16.mxu0 0
        %2215 = vmatpush1.bf16.msra.mxu0 %v2048
        %2216 = vmatprep.subr.bf16.mxu0 0
        %2217 = vmatpush1.bf16.msra.mxu0 %v2051
        %2218 = vmatprep.subr.bf16.mxu0 0
        %2219 = vmatpush1.bf16.msra.mxu0 %v2054
        %2220 = vmatprep.subr.bf16.mxu0 0
        %2221 = vmatpush1.bf16.msra.mxu0 %v2057
        %2222 = vmatprep.subr.bf16.mxu0 0
        %2223 = vmatpush1.bf16.msra.mxu0 %v2060
        %2224 = vmatprep.subr.bf16.mxu0 0
        %2225 = vmatpush1.bf16.msra.mxu0 %v2063
        %2226 = vmatprep.subr.bf16.mxu0 0
        %2227 = vmatpush1.bf16.msra.mxu0 %v2066
        %2228 = vmatprep.subr.bf16.mxu0 0
        %2229 = vmatpush1.bf16.msra.mxu0 %v2069
        %2230 = vmatprep.subr.bf16.mxu0 0
        %2231 = vmatpush1.bf16.msra.mxu0 %v2072
        %2232 = vmatprep.subr.bf16.mxu0 0
        %2233 = vmatpush1.bf16.msra.mxu0 %v2075
        %2234 = vmatprep.subr.bf16.mxu0 0
        %2235 = vmatpush1.bf16.msra.mxu0 %v2078
        %2236 = vmatprep.subr.bf16.mxu0 0
        %2237 = vmatpush1.bf16.msra.mxu0 %v2081
        %2238 = vmatprep.subr.bf16.mxu0 0
        %2239 = vmatpush1.bf16.msra.mxu0 %v2084
        %2240 = vmatprep.subr.bf16.mxu0 0
        %2241 = vmatpush1.bf16.msra.mxu0 0
        %2242 = vmatprep.subr.bf16.mxu0 0
        %2243 = vmatpush1.bf16.msra.mxu0 0
        %2244 = vmatprep.mubr.bf16.mxu0 %v2128
        %2245 = vmatmul.mubr.bf16.gmra.mrb[0].mxu0 %v1887
        %v2246 = vpop.f32.mrb[0].mxu0
        %v2247 = vadd.f32 0.0, %v2246
        %v2248 = vpop.f32.mrb[0].mxu0
        %v2249 = vpop.f32.mrb[0].mxu0
        %v2250 = vadd.f32 0.0, %v2249
        %v2251 = vpop.f32.mrb[0].mxu0
        %2252 = vmatprep.mubr.bf16.mxu0 %v2131
        %2253 = vmatmul.mubr.bf16.gmra.mrb[0].mxu0 %v1892
        %v2254 = vpop.f32.mrb[0].mxu0
        %v2255 = vadd.f32 0.0, %v2254
        %v2256 = vpop.f32.mrb[0].mxu0
        %v2257 = vpop.f32.mrb[0].mxu0
        %v2258 = vadd.f32 0.0, %v2257
        %v2259 = vpop.f32.mrb[0].mxu0
        %2260 = vmatprep.mubr.bf16.mxu0 %v2134
        %2261 = vmatmul.mubr.bf16.gmra.mrb[0].mxu0 %v1896
        %v2262 = vpop.f32.mrb[0].mxu0
        %v2263 = vadd.f32 0.0, %v2262
        %v2264 = vpop.f32.mrb[0].mxu0
        %v2265 = vpop.f32.mrb[0].mxu0
        %v2266 = vadd.f32 0.0, %v2265
        %v2267 = vpop.f32.mrb[0].mxu0
        %2268 = vmatprep.mubr.bf16.mxu0 %v2137
        %2269 = vmatmul.mubr.bf16.gmra.mrb[0].mxu0 %v1895
        %v2270 = vpop.f32.mrb[0].mxu0
        %v2271 = vadd.f32 0.0, %v2270
        %v2272 = vpop.f32.mrb[0].mxu0
        %v2273 = vpop.f32.mrb[0].mxu0
        %v2274 = vadd.f32 0.0, %v2273
        %v2275 = vpop.f32.mrb[0].mxu0
        %2276 = vdwg.mxu0
        %v2277 = vadd.f32 %v1708, %v2174
        %v2278 = vadd.f32 %v1710, %v2176
        %v2279 = vadd.f32 %v1781, %v2247
        %v2280 = vadd.f32 %v1712, %v2178
        %v2281 = vadd.f32 %v1714, %v2180
        %v2282 = vadd.f32 %v1784, %v2250
        %v2283 = vadd.f32 %v1718, %v2184
        %v2284 = vadd.f32 %v1720, %v2186
        %v2285 = vadd.f32 %v1789, %v2255
        %v2286 = vadd.f32 %v1722, %v2188
        %v2287 = vadd.f32 %v1724, %v2190
        %v2288 = vadd.f32 %v1792, %v2258
        %v2289 = vadd.f32 %v1728, %v2194
        %v2290 = vadd.f32 %v1730, %v2196
        %v2291 = vadd.f32 %v1797, %v2263
        %v2292 = vadd.f32 %v1732, %v2198
        %v2293 = vadd.f32 %v1734, %v2200
        %v2294 = vadd.f32 %v1800, %v2266
        %v2295 = vadd.f32 %v1738, %v2204
        %v2296 = vadd.f32 %v1740, %v2206
        %v2297 = vadd.f32 %v1805, %v2271
        %v2298 = vadd.f32 %v1742, %v2208
        %v2299 = vadd.f32 %v1744, %v2210
        %v2300 = vadd.f32 %v1808, %v2274
        %v2301 = vld [vmem:[#allocation9] sm:$0x7]
        %v2303 = vlaneseq
        %v2304 = vshrl.u32 %v2303, 7
        %v2305 = vsub.s32 0, %v2304
        %v2306 = vrot.slane %v2301, %v2305
        %v2307 = vlaneseq
        %v2308 = vshrl.u32 %v2307, 7
        %v2309 = vsub.s32 1, %v2308
        %v2310 = vrot.slane %v2301, %v2309
        %v2311 = vlaneseq
        %v2312 = vshrl.u32 %v2311, 7
        %v2313 = vsub.s32 2, %v2312
        %v2314 = vrot.slane %v2301, %v2313
        %v2318 = vadd.f32 %v2277, %v2306
        %v2319 = vadd.f32 %v2278, %v2310
        %v2320 = vadd.f32 %v2279, %v2314
        %v2321 = vadd.f32 %v2280, %v2306
        %v2322 = vadd.f32 %v2281, %v2310
        %v2323 = vadd.f32 %v2282, %v2314
        %v2324 = vadd.f32 %v2283, %v2306
        %v2325 = vadd.f32 %v2284, %v2310
        %v2326 = vadd.f32 %v2285, %v2314
        %v2327 = vadd.f32 %v2286, %v2306
        %v2328 = vadd.f32 %v2287, %v2310
        %v2329 = vadd.f32 %v2288, %v2314
        %v2330 = vadd.f32 %v2289, %v2306
        %v2331 = vadd.f32 %v2290, %v2310
        %v2332 = vadd.f32 %v2291, %v2314
        %v2333 = vadd.f32 %v2292, %v2306
        %v2334 = vadd.f32 %v2293, %v2310
        %v2335 = vadd.f32 %v2294, %v2314
        %v2336 = vadd.f32 %v2295, %v2306
        %v2337 = vadd.f32 %v2296, %v2310
        %v2338 = vadd.f32 %v2297, %v2314
        %v2339 = vadd.f32 %v2298, %v2306
        %v2340 = vadd.f32 %v2299, %v2310
        %v2341 = vadd.f32 %v2300, %v2314
        %v2342 = vmax.f32 %v2318, 0.0
        %v2343 = vmax.f32 %v2319, 0.0
        %v2344 = vmax.f32 %v2320, 0.0
        %v2345 = vmax.f32 %v2321, 0.0
        %v2346 = vmax.f32 %v2322, 0.0
        %v2347 = vmax.f32 %v2323, 0.0
        %v2348 = vmax.f32 %v2324, 0.0
        %v2349 = vmax.f32 %v2325, 0.0
        %v2350 = vmax.f32 %v2326, 0.0
        %v2351 = vmax.f32 %v2327, 0.0
        %v2352 = vmax.f32 %v2328, 0.0
        %v2353 = vmax.f32 %v2329, 0.0
        %v2354 = vmax.f32 %v2330, 0.0
        %v2355 = vmax.f32 %v2331, 0.0
        %v2356 = vmax.f32 %v2332, 0.0
        %v2357 = vmax.f32 %v2333, 0.0
        %v2358 = vmax.f32 %v2334, 0.0
        %v2359 = vmax.f32 %v2335, 0.0
        %v2360 = vmax.f32 %v2336, 0.0
        %v2361 = vmax.f32 %v2337, 0.0
        %v2362 = vmax.f32 %v2338, 0.0
        %v2363 = vmax.f32 %v2339, 0.0
        %v2364 = vmax.f32 %v2340, 0.0
        %v2365 = vmax.f32 %v2341, 0.0
        %2366 = vst [vmem:[#allocation3] sm:$0xff] %v2342
        %2367 = vst [vmem:[#allocation3 + $0x8] sm:$0xff] %v2343
        %2368 = vst [vmem:[#allocation3 + $0x10] sm:$0xff] %v2344
        %2369 = vst [vmem:[#allocation3 + $0x18] sm:$0xff] %v2345
        %2370 = vst [vmem:[#allocation3 + $0x20] sm:$0xff] %v2346
        %2371 = vst [vmem:[#allocation3 + $0x28] sm:$0xff] %v2347
        %2372 = vst [vmem:[#allocation3 + $0x30] sm:$0xff] %v2348
        %2373 = vst [vmem:[#allocation3 + $0x38] sm:$0xff] %v2349
        %2374 = vst [vmem:[#allocation3 + $0x40] sm:$0xff] %v2350
        %2375 = vst [vmem:[#allocation3 + $0x48] sm:$0xff] %v2351
        %2376 = vst [vmem:[#allocation3 + $0x50] sm:$0xff] %v2352
        %2377 = vst [vmem:[#allocation3 + $0x58] sm:$0xff] %v2353
        %2378 = vst [vmem:[#allocation3 + $0x60] sm:$0xff] %v2354
        %2379 = vst [vmem:[#allocation3 + $0x68] sm:$0xff] %v2355
        %2380 = vst [vmem:[#allocation3 + $0x70] sm:$0xff] %v2356
        %2381 = vst [vmem:[#allocation3 + $0x78] sm:$0xff] %v2357
        %2382 = vst [vmem:[#allocation3 + $0x80] sm:$0xff] %v2358
        %2383 = vst [vmem:[#allocation3 + $0x88] sm:$0xff] %v2359
        %2384 = vst [vmem:[#allocation3 + $0x90] sm:$0xff] %v2360
        %2385 = vst [vmem:[#allocation3 + $0x98] sm:$0xff] %v2361
        %2386 = vst [vmem:[#allocation3 + $0xa0] sm:$0xff] %v2362
        %2387 = vst [vmem:[#allocation3 + $0xa8] sm:$0x3f] %v2363
        %2388 = vst [vmem:[#allocation3 + $0xb0] sm:$0x3f] %v2364
        %2389 = vst [vmem:[#allocation3 + $0xb8] sm:$0x3f] %v2365
        %v2390 = vld [vmem:[#allocation3] sm:$0xff]
        %v2391 = vld [vmem:[#allocation3 + $0x8] sm:$0xff]
        %v2392 = vld [vmem:[#allocation3 + $0x10] sm:$0xff]
        %v2393 = vld [vmem:[#allocation3 + $0x18] sm:$0xff]
        %v2394 = vld [vmem:[#allocation3 + $0x20] sm:$0xff]
        %v2395 = vld [vmem:[#allocation3 + $0x28] sm:$0xff]
        %v2396 = vld [vmem:[#allocation3 + $0x30] sm:$0xff]
        %v2397 = vld [vmem:[#allocation3 + $0x38] sm:$0xff]
        %v2398 = vld [vmem:[#allocation3 + $0x40] sm:$0xff]
        %v2399 = vld [vmem:[#allocation3 + $0x48] sm:$0xff]
        %v2400 = vld [vmem:[#allocation3 + $0x50] sm:$0xff]
        %v2401 = vld [vmem:[#allocation3 + $0x58] sm:$0xff]
        %v2402 = vld [vmem:[#allocation3 + $0x60] sm:$0xff]
        %v2403 = vld [vmem:[#allocation3 + $0x68] sm:$0xff]
        %v2404 = vld [vmem:[#allocation3 + $0x70] sm:$0xff]
        %v2405 = vld [vmem:[#allocation3 + $0x78] sm:$0xff]
        %v2406 = vld [vmem:[#allocation3 + $0x80] sm:$0xff]
        %v2407 = vld [vmem:[#allocation3 + $0x88] sm:$0xff]
        %v2408 = vld [vmem:[#allocation3 + $0x90] sm:$0xff]
        %v2409 = vld [vmem:[#allocation3 + $0x98] sm:$0xff]
        %v2410 = vld [vmem:[#allocation3 + $0xa0] sm:$0xff]
        %v2411 = vld [vmem:[#allocation3 + $0xa8] sm:$0x3f]
        %v2412 = vld [vmem:[#allocation3 + $0xb0] sm:$0x3f]
        %v2413 = vld [vmem:[#allocation3 + $0xb8] sm:$0x3f]
        %v2414 = vpack.c.bf16 %v2393, %v2390
        %v2415 = vpack.c.bf16 %v2394, %v2391
        %v2416 = vpack.c.bf16 %v2395, %v2392
        %v2417 = vpack.c.bf16 %v2399, %v2396
        %v2418 = vpack.c.bf16 %v2400, %v2397
        %v2419 = vpack.c.bf16 %v2401, %v2398
        %v2420 = vpack.c.bf16 %v2405, %v2402
        %v2421 = vpack.c.bf16 %v2406, %v2403
        %v2422 = vpack.c.bf16 %v2407, %v2404
        %v2423 = vpack.c.bf16 %v2411, %v2408
        %v2424 = vpack.c.bf16 %v2412, %v2409
        %v2425 = vpack.c.bf16 %v2413, %v2410
        %v2426 = vld [vmem:[#allocation11] sm:$0xff]
        %v2427 = vld [vmem:[#allocation11 + $0x8] sm:$0xff]
        %v2428 = vld [vmem:[#allocation11 + $0x10] sm:$0xf]
        %v2429 = vld [vmem:[#allocation11 + $0x14] sm:$0xff]
        %v2430 = vld [vmem:[#allocation11 + $0x1c] sm:$0xff]
        %v2431 = vld [vmem:[#allocation11 + $0x24] sm:$0xf]
        %v2432 = vld [vmem:[#allocation11 + $0x28] sm:$0xff]
        %v2433 = vld [vmem:[#allocation11 + $0x30] sm:$0xff]
        %v2434 = vld [vmem:[#allocation11 + $0x38] sm:$0xf]
        %v2435 = vld [vmem:[#allocation11 + $0x3c] sm:$0xff]
        %v2436 = vld [vmem:[#allocation11 + $0x44] sm:$0xff]
        %v2437 = vld [vmem:[#allocation11 + $0x4c] sm:$0xf]
        %v2438 = vld [vmem:[#allocation11 + $0x50] sm:$0xff]
        %v2439 = vld [vmem:[#allocation11 + $0x58] sm:$0xff]
        %v2440 = vld [vmem:[#allocation11 + $0x60] sm:$0xf]
        %v2441 = vld [vmem:[#allocation11 + $0x64] sm:$0xff]
        %v2442 = vld [vmem:[#allocation11 + $0x6c] sm:$0xff]
        %v2443 = vld [vmem:[#allocation11 + $0x74] sm:$0xf]
        %v2444 = vld [vmem:[#allocation11 + $0x78] sm:$0xff]
        %v2445 = vld [vmem:[#allocation11 + $0x80] sm:$0xff]
        %v2446 = vld [vmem:[#allocation11 + $0x88] sm:$0xf]
        %v2447 = vld [vmem:[#allocation11 + $0x8c] sm:$0xff]
        %v2448 = vld [vmem:[#allocation11 + $0x94] sm:$0xff]
        %v2449 = vld [vmem:[#allocation11 + $0x9c] sm:$0xf]
        %v2450 = vld [vmem:[#allocation11 + $0xa0] sm:$0xff]
        %v2451 = vld [vmem:[#allocation11 + $0xa8] sm:$0xff]
        %v2452 = vld [vmem:[#allocation11 + $0xb0] sm:$0xf]
        %v2453 = vld [vmem:[#allocation11 + $0xb4] sm:$0xff]
        %v2454 = vld [vmem:[#allocation11 + $0xbc] sm:$0xff]
        %v2455 = vld [vmem:[#allocation11 + $0xc4] sm:$0xf]
        %v2456 = vld [vmem:[#allocation11 + $0xc8] sm:$0xff]
        %v2457 = vld [vmem:[#allocation11 + $0xd0] sm:$0xff]
        %v2458 = vld [vmem:[#allocation11 + $0xd8] sm:$0xf]
        %v2459 = vld [vmem:[#allocation11 + $0xdc] sm:$0xff]
        %v2460 = vld [vmem:[#allocation11 + $0xe4] sm:$0xff]
        %v2461 = vld [vmem:[#allocation11 + $0xec] sm:$0xf]
        %v2462 = vld [vmem:[#allocation11 + $0xf0] sm:$0xff]
        %v2463 = vld [vmem:[#allocation11 + $0xf8] sm:$0xff]
        %v2464 = vld [vmem:[#allocation11 + $0x100] sm:$0xf]
        %v2465 = vld [vmem:[#allocation11 + $0x104] sm:$0xff]
        %v2466 = vld [vmem:[#allocation11 + $0x10c] sm:$0xff]
        %v2467 = vld [vmem:[#allocation11 + $0x114] sm:$0xf]
        %v2468 = vld [vmem:[#allocation11 + $0x118] sm:$0xff]
        %v2469 = vld [vmem:[#allocation11 + $0x120] sm:$0xff]
        %v2470 = vld [vmem:[#allocation11 + $0x128] sm:$0xf]
        %v2471 = vld [vmem:[#allocation11 + $0x12c] sm:$0xff]
        %v2472 = vld [vmem:[#allocation11 + $0x134] sm:$0xff]
        %v2473 = vld [vmem:[#allocation11 + $0x13c] sm:$0xf]
        %v2474 = vld [vmem:[#allocation11 + $0x140] sm:$0xff]
        %v2475 = vld [vmem:[#allocation11 + $0x148] sm:$0xff]
        %v2476 = vld [vmem:[#allocation11 + $0x150] sm:$0xf]
        %v2477 = vld [vmem:[#allocation11 + $0x154] sm:$0xff]
        %v2478 = vld [vmem:[#allocation11 + $0x15c] sm:$0xff]
        %v2479 = vld [vmem:[#allocation11 + $0x164] sm:$0xf]
        %v2480 = vld [vmem:[#allocation11 + $0x168] sm:$0xff]
        %v2481 = vld [vmem:[#allocation11 + $0x170] sm:$0xff]
        %v2482 = vld [vmem:[#allocation11 + $0x178] sm:$0xf]
        %v2483 = vld [vmem:[#allocation11 + $0x17c] sm:$0xff]
        %v2484 = vld [vmem:[#allocation11 + $0x184] sm:$0xff]
        %v2485 = vld [vmem:[#allocation11 + $0x18c] sm:$0xf]
        %v2486 = vld [vmem:[#allocation11 + $0x190] sm:$0xff]
        %v2487 = vld [vmem:[#allocation11 + $0x198] sm:$0xff]
        %v2488 = vld [vmem:[#allocation11 + $0x1a0] sm:$0xf]
        %v2489 = vld [vmem:[#allocation11 + $0x1a4] sm:$0xff]
        %v2490 = vld [vmem:[#allocation11 + $0x1ac] sm:$0xff]
        %v2491 = vld [vmem:[#allocation11 + $0x1b4] sm:$0xf]
        %v2492 = vld [vmem:[#allocation11 + $0x1b8] sm:$0xff]
        %v2493 = vld [vmem:[#allocation11 + $0x1c0] sm:$0xff]
        %v2494 = vld [vmem:[#allocation11 + $0x1c8] sm:$0xf]
        %v2495 = vld [vmem:[#allocation11 + $0x1cc] sm:$0xff]
        %v2496 = vld [vmem:[#allocation11 + $0x1d4] sm:$0xff]
        %v2497 = vld [vmem:[#allocation11 + $0x1dc] sm:$0xf]
        %v2498 = vld [vmem:[#allocation11 + $0x1e0] sm:$0xff]
        %v2499 = vld [vmem:[#allocation11 + $0x1e8] sm:$0xff]
        %v2500 = vld [vmem:[#allocation11 + $0x1f0] sm:$0xf]
        %v2501 = vld [vmem:[#allocation11 + $0x1f4] sm:$0xff]
        %v2502 = vld [vmem:[#allocation11 + $0x1fc] sm:$0xff]
        %v2503 = vld [vmem:[#allocation11 + $0x204] sm:$0xf]
        %v2504 = vld [vmem:[#allocation11 + $0x208] sm:$0xff]
        %v2505 = vld [vmem:[#allocation11 + $0x210] sm:$0xff]
        %v2506 = vld [vmem:[#allocation11 + $0x218] sm:$0xf]
        %v2507 = vld [vmem:[#allocation11 + $0x21c] sm:$0xff]
        %v2508 = vld [vmem:[#allocation11 + $0x224] sm:$0xff]
        %v2509 = vld [vmem:[#allocation11 + $0x22c] sm:$0xf]
        %v2510 = vld [vmem:[#allocation11 + $0x230] sm:$0xff]
        %v2511 = vld [vmem:[#allocation11 + $0x238] sm:$0xff]
        %v2512 = vld [vmem:[#allocation11 + $0x240] sm:$0xf]
        %v2513 = vld [vmem:[#allocation11 + $0x244] sm:$0xff]
        %v2514 = vld [vmem:[#allocation11 + $0x24c] sm:$0xff]
        %v2515 = vld [vmem:[#allocation11 + $0x254] sm:$0xf]
        %v2516 = vld [vmem:[#allocation11 + $0x258] sm:$0xff]
        %v2517 = vld [vmem:[#allocation11 + $0x260] sm:$0xff]
        %v2518 = vld [vmem:[#allocation11 + $0x268] sm:$0xf]
        %v2519 = vld [vmem:[#allocation11 + $0x26c] sm:$0xff]
        %v2520 = vld [vmem:[#allocation11 + $0x274] sm:$0xff]
        %v2521 = vld [vmem:[#allocation11 + $0x27c] sm:$0xf]
        %v2522 = vld [vmem:[#allocation11 + $0x280] sm:$0xff]
        %v2523 = vld [vmem:[#allocation11 + $0x288] sm:$0xff]
        %v2524 = vld [vmem:[#allocation11 + $0x290] sm:$0xf]
        %v2525 = vld [vmem:[#allocation11 + $0x294] sm:$0xff]
        %v2526 = vld [vmem:[#allocation11 + $0x29c] sm:$0xff]
        %v2527 = vld [vmem:[#allocation11 + $0x2a4] sm:$0xf]
        %v2528 = vld [vmem:[#allocation11 + $0x2a8] sm:$0xff]
        %v2529 = vld [vmem:[#allocation11 + $0x2b0] sm:$0xff]
        %v2530 = vld [vmem:[#allocation11 + $0x2b8] sm:$0xf]
        %v2531 = vld [vmem:[#allocation11 + $0x2bc] sm:$0xff]
        %v2532 = vld [vmem:[#allocation11 + $0x2c4] sm:$0xff]
        %v2533 = vld [vmem:[#allocation11 + $0x2cc] sm:$0xf]
        %v2534 = vld [vmem:[#allocation11 + $0x2d0] sm:$0xff]
        %v2535 = vld [vmem:[#allocation11 + $0x2d8] sm:$0xff]
        %v2536 = vld [vmem:[#allocation11 + $0x2e0] sm:$0xf]
        %v2537 = vld [vmem:[#allocation11 + $0x2e4] sm:$0xff]
        %v2538 = vld [vmem:[#allocation11 + $0x2ec] sm:$0xff]
        %v2539 = vld [vmem:[#allocation11 + $0x2f4] sm:$0xf]
        %v2540 = vld [vmem:[#allocation11 + $0x2f8] sm:$0xff]
        %v2541 = vld [vmem:[#allocation11 + $0x300] sm:$0xff]
        %v2542 = vld [vmem:[#allocation11 + $0x308] sm:$0xf]
        %v2543 = vld [vmem:[#allocation11 + $0x30c] sm:$0xff]
        %v2544 = vld [vmem:[#allocation11 + $0x314] sm:$0xff]
        %v2545 = vld [vmem:[#allocation11 + $0x31c] sm:$0xf]
        %v2546 = vld [vmem:[#allocation11 + $0x320] sm:$0xff]
        %v2547 = vld [vmem:[#allocation11 + $0x328] sm:$0xff]
        %v2548 = vld [vmem:[#allocation11 + $0x330] sm:$0xf]
        %v2549 = vld [vmem:[#allocation11 + $0x334] sm:$0xff]
        %v2550 = vld [vmem:[#allocation11 + $0x33c] sm:$0xff]
        %v2551 = vld [vmem:[#allocation11 + $0x344] sm:$0xf]
        %v2552 = vld [vmem:[#allocation11 + $0x348] sm:$0xff]
        %v2553 = vld [vmem:[#allocation11 + $0x350] sm:$0xff]
        %v2554 = vld [vmem:[#allocation11 + $0x358] sm:$0xf]
        %v2555 = vld [vmem:[#allocation11 + $0x35c] sm:$0xff]
        %v2556 = vld [vmem:[#allocation11 + $0x364] sm:$0xff]
        %v2557 = vld [vmem:[#allocation11 + $0x36c] sm:$0xf]
        %v2558 = vld [vmem:[#allocation11 + $0x370] sm:$0xff]
        %v2559 = vld [vmem:[#allocation11 + $0x378] sm:$0xff]
        %v2560 = vld [vmem:[#allocation11 + $0x380] sm:$0xf]
        %v2561 = vld [vmem:[#allocation11 + $0x384] sm:$0xff]
        %v2562 = vld [vmem:[#allocation11 + $0x38c] sm:$0xff]
        %v2563 = vld [vmem:[#allocation11 + $0x394] sm:$0xf]
        %v2564 = vld [vmem:[#allocation11 + $0x398] sm:$0xff]
        %v2565 = vld [vmem:[#allocation11 + $0x3a0] sm:$0xff]
        %v2566 = vld [vmem:[#allocation11 + $0x3a8] sm:$0xf]
        %v2567 = vld [vmem:[#allocation11 + $0x3ac] sm:$0xff]
        %v2568 = vld [vmem:[#allocation11 + $0x3b4] sm:$0xff]
        %v2569 = vld [vmem:[#allocation11 + $0x3bc] sm:$0xf]
        %v2570 = vld [vmem:[#allocation3] sm:$0xfe]
        %v2571 = vld [vmem:[#allocation3 + $0x8] sm:$0xfe]
        %v2572 = vld [vmem:[#allocation3 + $0x10] sm:$0xfe]
        %v2573 = vld [vmem:[#allocation3 + $0xa8] sm:$0x7f]
        %v2574 = vld [vmem:[#allocation3 + $0xb0] sm:$0x7f]
        %v2575 = vld [vmem:[#allocation3 + $0xb8] sm:$0x7f]
        %v2576 = vpack.c.bf16 %v2393, %v2570
        %v2577 = vpack.c.bf16 %v2394, %v2571
        %v2578 = vpack.c.bf16 %v2395, %v2572
        %v2579 = vpack.c.bf16 %v2573, %v2408
        %v2580 = vpack.c.bf16 %v2574, %v2409
        %v2581 = vpack.c.bf16 %v2575, %v2410
        %s2582 = scalar_lea.vmem [#allocation11], 960
        %v2583 = vld [vmem:[%s2582] sm:$0xff]
        %v2584 = vld [vmem:[%s2582 + $0x8] sm:$0xff]
        %v2585 = vld [vmem:[%s2582 + $0x10] sm:$0xf]
        %v2586 = vld [vmem:[%s2582 + $0x14] sm:$0xff]
        %v2587 = vld [vmem:[%s2582 + $0x1c] sm:$0xff]
        %v2588 = vld [vmem:[%s2582 + $0x24] sm:$0xf]
        %v2589 = vld [vmem:[%s2582 + $0x28] sm:$0xff]
        %v2590 = vld [vmem:[%s2582 + $0x30] sm:$0xff]
        %v2591 = vld [vmem:[%s2582 + $0x38] sm:$0xf]
        %v2592 = vld [vmem:[%s2582 + $0x3c] sm:$0xff]
        %v2593 = vld [vmem:[%s2582 + $0x44] sm:$0xff]
        %v2594 = vld [vmem:[%s2582 + $0x4c] sm:$0xf]
        %v2595 = vld [vmem:[%s2582 + $0x50] sm:$0xff]
        %v2596 = vld [vmem:[%s2582 + $0x58] sm:$0xff]
        %v2597 = vld [vmem:[%s2582 + $0x60] sm:$0xf]
        %v2598 = vld [vmem:[%s2582 + $0x64] sm:$0xff]
        %v2599 = vld [vmem:[%s2582 + $0x6c] sm:$0xff]
        %v2600 = vld [vmem:[%s2582 + $0x74] sm:$0xf]
        %v2601 = vld [vmem:[%s2582 + $0x78] sm:$0xff]
        %v2602 = vld [vmem:[%s2582 + $0x80] sm:$0xff]
        %v2603 = vld [vmem:[%s2582 + $0x88] sm:$0xf]
        %v2604 = vld [vmem:[%s2582 + $0x8c] sm:$0xff]
        %v2605 = vld [vmem:[%s2582 + $0x94] sm:$0xff]
        %v2606 = vld [vmem:[%s2582 + $0x9c] sm:$0xf]
        %v2607 = vld [vmem:[%s2582 + $0xa0] sm:$0xff]
        %v2608 = vld [vmem:[%s2582 + $0xa8] sm:$0xff]
        %v2609 = vld [vmem:[%s2582 + $0xb0] sm:$0xf]
        %v2610 = vld [vmem:[%s2582 + $0xb4] sm:$0xff]
        %v2611 = vld [vmem:[%s2582 + $0xbc] sm:$0xff]
        %v2612 = vld [vmem:[%s2582 + $0xc4] sm:$0xf]
        %v2613 = vld [vmem:[%s2582 + $0xc8] sm:$0xff]
        %v2614 = vld [vmem:[%s2582 + $0xd0] sm:$0xff]
        %v2615 = vld [vmem:[%s2582 + $0xd8] sm:$0xf]
        %v2616 = vld [vmem:[%s2582 + $0xdc] sm:$0xff]
        %v2617 = vld [vmem:[%s2582 + $0xe4] sm:$0xff]
        %v2618 = vld [vmem:[%s2582 + $0xec] sm:$0xf]
        %v2619 = vld [vmem:[%s2582 + $0xf0] sm:$0xff]
        %v2620 = vld [vmem:[%s2582 + $0xf8] sm:$0xff]
        %v2621 = vld [vmem:[%s2582 + $0x100] sm:$0xf]
        %v2622 = vld [vmem:[%s2582 + $0x104] sm:$0xff]
        %v2623 = vld [vmem:[%s2582 + $0x10c] sm:$0xff]
        %v2624 = vld [vmem:[%s2582 + $0x114] sm:$0xf]
        %v2625 = vld [vmem:[%s2582 + $0x118] sm:$0xff]
        %v2626 = vld [vmem:[%s2582 + $0x120] sm:$0xff]
        %v2627 = vld [vmem:[%s2582 + $0x128] sm:$0xf]
        %v2628 = vld [vmem:[%s2582 + $0x12c] sm:$0xff]
        %v2629 = vld [vmem:[%s2582 + $0x134] sm:$0xff]
        %v2630 = vld [vmem:[%s2582 + $0x13c] sm:$0xf]
        %v2631 = vld [vmem:[%s2582 + $0x140] sm:$0xff]
        %v2632 = vld [vmem:[%s2582 + $0x148] sm:$0xff]
        %v2633 = vld [vmem:[%s2582 + $0x150] sm:$0xf]
        %v2634 = vld [vmem:[%s2582 + $0x154] sm:$0xff]
        %v2635 = vld [vmem:[%s2582 + $0x15c] sm:$0xff]
        %v2636 = vld [vmem:[%s2582 + $0x164] sm:$0xf]
        %v2637 = vld [vmem:[%s2582 + $0x168] sm:$0xff]
        %v2638 = vld [vmem:[%s2582 + $0x170] sm:$0xff]
        %v2639 = vld [vmem:[%s2582 + $0x178] sm:$0xf]
        %v2640 = vld [vmem:[%s2582 + $0x17c] sm:$0xff]
        %v2641 = vld [vmem:[%s2582 + $0x184] sm:$0xff]
        %v2642 = vld [vmem:[%s2582 + $0x18c] sm:$0xf]
        %v2643 = vld [vmem:[%s2582 + $0x190] sm:$0xff]
        %v2644 = vld [vmem:[%s2582 + $0x198] sm:$0xff]
        %v2645 = vld [vmem:[%s2582 + $0x1a0] sm:$0xf]
        %v2646 = vld [vmem:[%s2582 + $0x1a4] sm:$0xff]
        %v2647 = vld [vmem:[%s2582 + $0x1ac] sm:$0xff]
        %v2648 = vld [vmem:[%s2582 + $0x1b4] sm:$0xf]
        %v2649 = vld [vmem:[%s2582 + $0x1b8] sm:$0xff]
        %v2650 = vld [vmem:[%s2582 + $0x1c0] sm:$0xff]
        %v2651 = vld [vmem:[%s2582 + $0x1c8] sm:$0xf]
        %v2652 = vld [vmem:[%s2582 + $0x1cc] sm:$0xff]
        %v2653 = vld [vmem:[%s2582 + $0x1d4] sm:$0xff]
        %v2654 = vld [vmem:[%s2582 + $0x1dc] sm:$0xf]
        %v2655 = vld [vmem:[%s2582 + $0x1e0] sm:$0xff]
        %v2656 = vld [vmem:[%s2582 + $0x1e8] sm:$0xff]
        %v2657 = vld [vmem:[%s2582 + $0x1f0] sm:$0xf]
        %v2658 = vld [vmem:[%s2582 + $0x1f4] sm:$0xff]
        %v2659 = vld [vmem:[%s2582 + $0x1fc] sm:$0xff]
        %v2660 = vld [vmem:[%s2582 + $0x204] sm:$0xf]
        %v2661 = vld [vmem:[%s2582 + $0x208] sm:$0xff]
        %v2662 = vld [vmem:[%s2582 + $0x210] sm:$0xff]
        %v2663 = vld [vmem:[%s2582 + $0x218] sm:$0xf]
        %v2664 = vld [vmem:[%s2582 + $0x21c] sm:$0xff]
        %v2665 = vld [vmem:[%s2582 + $0x224] sm:$0xff]
        %v2666 = vld [vmem:[%s2582 + $0x22c] sm:$0xf]
        %v2667 = vld [vmem:[%s2582 + $0x230] sm:$0xff]
        %v2668 = vld [vmem:[%s2582 + $0x238] sm:$0xff]
        %v2669 = vld [vmem:[%s2582 + $0x240] sm:$0xf]
        %v2670 = vld [vmem:[%s2582 + $0x244] sm:$0xff]
        %v2671 = vld [vmem:[%s2582 + $0x24c] sm:$0xff]
        %v2672 = vld [vmem:[%s2582 + $0x254] sm:$0xf]
        %v2673 = vld [vmem:[%s2582 + $0x258] sm:$0xff]
        %v2674 = vld [vmem:[%s2582 + $0x260] sm:$0xff]
        %v2675 = vld [vmem:[%s2582 + $0x268] sm:$0xf]
        %v2676 = vld [vmem:[%s2582 + $0x26c] sm:$0xff]
        %v2677 = vld [vmem:[%s2582 + $0x274] sm:$0xff]
        %v2678 = vld [vmem:[%s2582 + $0x27c] sm:$0xf]
        %v2679 = vld [vmem:[%s2582 + $0x280] sm:$0xff]
        %v2680 = vld [vmem:[%s2582 + $0x288] sm:$0xff]
        %v2681 = vld [vmem:[%s2582 + $0x290] sm:$0xf]
        %v2682 = vld [vmem:[%s2582 + $0x294] sm:$0xff]
        %v2683 = vld [vmem:[%s2582 + $0x29c] sm:$0xff]
        %v2684 = vld [vmem:[%s2582 + $0x2a4] sm:$0xf]
        %v2685 = vld [vmem:[%s2582 + $0x2a8] sm:$0xff]
        %v2686 = vld [vmem:[%s2582 + $0x2b0] sm:$0xff]
        %v2687 = vld [vmem:[%s2582 + $0x2b8] sm:$0xf]
        %v2688 = vld [vmem:[%s2582 + $0x2bc] sm:$0xff]
        %v2689 = vld [vmem:[%s2582 + $0x2c4] sm:$0xff]
        %v2690 = vld [vmem:[%s2582 + $0x2cc] sm:$0xf]
        %v2691 = vld [vmem:[%s2582 + $0x2d0] sm:$0xff]
        %v2692 = vld [vmem:[%s2582 + $0x2d8] sm:$0xff]
        %v2693 = vld [vmem:[%s2582 + $0x2e0] sm:$0xf]
        %v2694 = vld [vmem:[%s2582 + $0x2e4] sm:$0xff]
        %v2695 = vld [vmem:[%s2582 + $0x2ec] sm:$0xff]
        %v2696 = vld [vmem:[%s2582 + $0x2f4] sm:$0xf]
        %v2697 = vld [vmem:[%s2582 + $0x2f8] sm:$0xff]
        %v2698 = vld [vmem:[%s2582 + $0x300] sm:$0xff]
        %v2699 = vld [vmem:[%s2582 + $0x308] sm:$0xf]
        %v2700 = vld [vmem:[%s2582 + $0x30c] sm:$0xff]
        %v2701 = vld [vmem:[%s2582 + $0x314] sm:$0xff]
        %v2702 = vld [vmem:[%s2582 + $0x31c] sm:$0xf]
        %v2703 = vld [vmem:[%s2582 + $0x320] sm:$0xff]
        %v2704 = vld [vmem:[%s2582 + $0x328] sm:$0xff]
        %v2705 = vld [vmem:[%s2582 + $0x330] sm:$0xf]
        %v2706 = vld [vmem:[%s2582 + $0x334] sm:$0xff]
        %v2707 = vld [vmem:[%s2582 + $0x33c] sm:$0xff]
        %v2708 = vld [vmem:[%s2582 + $0x344] sm:$0xf]
        %v2709 = vld [vmem:[%s2582 + $0x348] sm:$0xff]
        %v2710 = vld [vmem:[%s2582 + $0x350] sm:$0xff]
        %v2711 = vld [vmem:[%s2582 + $0x358] sm:$0xf]
        %v2712 = vld [vmem:[%s2582 + $0x35c] sm:$0xff]
        %v2713 = vld [vmem:[%s2582 + $0x364] sm:$0xff]
        %v2714 = vld [vmem:[%s2582 + $0x36c] sm:$0xf]
        %v2715 = vld [vmem:[%s2582 + $0x370] sm:$0xff]
        %v2716 = vld [vmem:[%s2582 + $0x378] sm:$0xff]
        %v2717 = vld [vmem:[%s2582 + $0x380] sm:$0xf]
        %v2718 = vld [vmem:[%s2582 + $0x384] sm:$0xff]
        %v2719 = vld [vmem:[%s2582 + $0x38c] sm:$0xff]
        %v2720 = vld [vmem:[%s2582 + $0x394] sm:$0xf]
        %v2721 = vld [vmem:[%s2582 + $0x398] sm:$0xff]
        %v2722 = vld [vmem:[%s2582 + $0x3a0] sm:$0xff]
        %v2723 = vld [vmem:[%s2582 + $0x3a8] sm:$0xf]
        %v2724 = vld [vmem:[%s2582 + $0x3ac] sm:$0xff]
        %v2725 = vld [vmem:[%s2582 + $0x3b4] sm:$0xff]
        %v2726 = vld [vmem:[%s2582 + $0x3bc] sm:$0xf]
        %v2728 = vshrl.u32 %v2576, 16
        %v2730 = vshll.u32 %v2576, 16
        %v2732 = vrot.slane %v2730, 1
        %v2733 = vor.u32 %v2728, %v2732
        %v2735 = vshll.u32 %v2417, 16
        %v2737 = vrot.slane %v2735, 1
        %v2738 = vsel %vm998, %v2733, %v2737
        %v2740 = vshrl.u32 %v2577, 16
        %v2742 = vshll.u32 %v2577, 16
        %v2744 = vrot.slane %v2742, 1
        %v2745 = vor.u32 %v2740, %v2744
        %v2747 = vshll.u32 %v2418, 16
        %v2749 = vrot.slane %v2747, 1
        %v2750 = vsel %vm998, %v2745, %v2749
        %v2752 = vshrl.u32 %v2578, 16
        %v2754 = vshll.u32 %v2578, 16
        %v2756 = vrot.slane %v2754, 1
        %v2757 = vor.u32 %v2752, %v2756
        %v2759 = vshll.u32 %v2419, 16
        %v2761 = vrot.slane %v2759, 1
        %v2762 = vsel %vm998, %v2757, %v2761
        %v2763 = vshrl.u32 %v2417, 16
        %v2765 = vor.u32 %v2763, %v2737
        %v2767 = vshll.u32 %v2420, 16
        %v2769 = vrot.slane %v2767, 1
        %v2770 = vsel %vm998, %v2765, %v2769
        %v2771 = vshrl.u32 %v2418, 16
        %v2773 = vor.u32 %v2771, %v2749
        %v2775 = vshll.u32 %v2421, 16
        %v2777 = vrot.slane %v2775, 1
        %v2778 = vsel %vm998, %v2773, %v2777
        %v2779 = vshrl.u32 %v2419, 16
        %v2781 = vor.u32 %v2779, %v2761
        %v2783 = vshll.u32 %v2422, 16
        %v2785 = vrot.slane %v2783, 1
        %v2786 = vsel %vm998, %v2781, %v2785
        %v2787 = vshrl.u32 %v2420, 16
        %v2789 = vor.u32 %v2787, %v2769
        %v2791 = vshll.u32 %v2579, 16
        %v2793 = vrot.slane %v2791, 1
        %v2794 = vsel %vm998, %v2789, %v2793
        %v2795 = vshrl.u32 %v2421, 16
        %v2797 = vor.u32 %v2795, %v2777
        %v2799 = vshll.u32 %v2580, 16
        %v2801 = vrot.slane %v2799, 1
        %v2802 = vsel %vm998, %v2797, %v2801
        %v2803 = vshrl.u32 %v2422, 16
        %v2805 = vor.u32 %v2803, %v2785
        %v2807 = vshll.u32 %v2581, 16
        %v2809 = vrot.slane %v2807, 1
        %v2810 = vsel %vm998, %v2805, %v2809
        %v2811 = vshrl.u32 %v2579, 16
        %v2813 = vor.u32 %v2811, %v2793
        %v2814 = vshrl.u32 %v2580, 16
        %v2816 = vor.u32 %v2814, %v2801
        %v2817 = vshrl.u32 %v2581, 16
        %v2819 = vor.u32 %v2817, %v2809
        %v2976 = vunpack.c.l.b16 %v2583
        %v2977 = vunpack.c.h.b16 %v2583
        %v2978 = vunpack.c.l.b16 %v2584
        %v2979 = vunpack.c.h.b16 %v2584
        %v2980 = vunpack.c.l.b16 %v2585
        %v2981 = vunpack.c.l.b16 %v2586
        %v2982 = vunpack.c.h.b16 %v2586
        %v2983 = vunpack.c.l.b16 %v2587
        %v2984 = vunpack.c.h.b16 %v2587
        %v2985 = vunpack.c.l.b16 %v2588
        %v2986 = vunpack.c.l.b16 %v2589
        %v2987 = vunpack.c.h.b16 %v2589
        %v2988 = vunpack.c.l.b16 %v2590
        %v2989 = vunpack.c.h.b16 %v2590
        %v2990 = vunpack.c.l.b16 %v2591
        %v2991 = vunpack.c.l.b16 %v2592
        %v2992 = vunpack.c.h.b16 %v2592
        %v2993 = vunpack.c.l.b16 %v2593
        %v2994 = vunpack.c.h.b16 %v2593
        %v2995 = vunpack.c.l.b16 %v2594
        %v2996 = vunpack.c.l.b16 %v2595
        %v2997 = vunpack.c.h.b16 %v2595
        %v2998 = vunpack.c.l.b16 %v2596
        %v2999 = vunpack.c.h.b16 %v2596
        %v3000 = vunpack.c.l.b16 %v2597
        %v3001 = vunpack.c.l.b16 %v2598
        %v3002 = vunpack.c.h.b16 %v2598
        %v3003 = vunpack.c.l.b16 %v2599
        %v3004 = vunpack.c.h.b16 %v2599
        %v3005 = vunpack.c.l.b16 %v2600
        %v3006 = vunpack.c.l.b16 %v2601
        %v3007 = vunpack.c.h.b16 %v2601
        %v3008 = vunpack.c.l.b16 %v2602
        %v3009 = vunpack.c.h.b16 %v2602
        %v3010 = vunpack.c.l.b16 %v2603
        %v3011 = vunpack.c.l.b16 %v2604
        %v3012 = vunpack.c.h.b16 %v2604
        %v3013 = vunpack.c.l.b16 %v2605
        %v3014 = vunpack.c.h.b16 %v2605
        %v3015 = vunpack.c.l.b16 %v2606
        %v3016 = vunpack.c.l.b16 %v2607
        %v3017 = vunpack.c.h.b16 %v2607
        %v3018 = vunpack.c.l.b16 %v2608
        %v3019 = vunpack.c.h.b16 %v2608
        %v3020 = vunpack.c.l.b16 %v2609
        %v3021 = vunpack.c.l.b16 %v2610
        %v3022 = vunpack.c.h.b16 %v2610
        %v3023 = vunpack.c.l.b16 %v2611
        %v3024 = vunpack.c.h.b16 %v2611
        %v3025 = vunpack.c.l.b16 %v2612
        %v3026 = vunpack.c.l.b16 %v2613
        %v3027 = vunpack.c.h.b16 %v2613
        %v3028 = vunpack.c.l.b16 %v2614
        %v3029 = vunpack.c.h.b16 %v2614
        %v3030 = vunpack.c.l.b16 %v2615
        %v3031 = vunpack.c.l.b16 %v2616
        %v3032 = vunpack.c.h.b16 %v2616
        %v3033 = vunpack.c.l.b16 %v2617
        %v3034 = vunpack.c.h.b16 %v2617
        %v3035 = vunpack.c.l.b16 %v2618
        %v3036 = vunpack.c.l.b16 %v2619
        %v3037 = vunpack.c.h.b16 %v2619
        %v3038 = vunpack.c.l.b16 %v2620
        %v3039 = vunpack.c.h.b16 %v2620
        %v3040 = vunpack.c.l.b16 %v2621
        %v3041 = vunpack.c.l.b16 %v2622
        %v3042 = vunpack.c.h.b16 %v2622
        %v3043 = vunpack.c.l.b16 %v2623
        %v3044 = vunpack.c.h.b16 %v2623
        %v3045 = vunpack.c.l.b16 %v2624
        %v3046 = vunpack.c.l.b16 %v2625
        %v3047 = vunpack.c.h.b16 %v2625
        %v3048 = vunpack.c.l.b16 %v2626
        %v3049 = vunpack.c.h.b16 %v2626
        %v3050 = vunpack.c.l.b16 %v2627
        %v3051 = vunpack.c.l.b16 %v2628
        %v3052 = vunpack.c.h.b16 %v2628
        %v3053 = vunpack.c.l.b16 %v2629
        %v3054 = vunpack.c.h.b16 %v2629
        %v3055 = vunpack.c.l.b16 %v2630
        %v3056 = vunpack.c.l.b16 %v2631
        %v3057 = vunpack.c.h.b16 %v2631
        %v3058 = vunpack.c.l.b16 %v2632
        %v3059 = vunpack.c.h.b16 %v2632
        %v3060 = vunpack.c.l.b16 %v2633
        %v3061 = vunpack.c.l.b16 %v2634
        %v3062 = vunpack.c.h.b16 %v2634
        %v3063 = vunpack.c.l.b16 %v2635
        %v3064 = vunpack.c.h.b16 %v2635
        %v3065 = vunpack.c.l.b16 %v2636
        %v3066 = vunpack.c.l.b16 %v2637
        %v3067 = vunpack.c.h.b16 %v2637
        %v3068 = vunpack.c.l.b16 %v2638
        %v3069 = vunpack.c.h.b16 %v2638
        %v3070 = vunpack.c.l.b16 %v2639
        %v3071 = vunpack.c.l.b16 %v2640
        %v3072 = vunpack.c.h.b16 %v2640
        %v3073 = vunpack.c.l.b16 %v2641
        %v3074 = vunpack.c.h.b16 %v2641
        %v3075 = vunpack.c.l.b16 %v2642
        %v3076 = vunpack.c.l.b16 %v2643
        %v3077 = vunpack.c.h.b16 %v2643
        %v3078 = vunpack.c.l.b16 %v2644
        %v3079 = vunpack.c.h.b16 %v2644
        %v3080 = vunpack.c.l.b16 %v2645
        %v3081 = vunpack.c.l.b16 %v2646
        %v3082 = vunpack.c.h.b16 %v2646
        %v3083 = vunpack.c.l.b16 %v2647
        %v3084 = vunpack.c.h.b16 %v2647
        %v3085 = vunpack.c.l.b16 %v2648
        %v3086 = vunpack.c.l.b16 %v2649
        %v3087 = vunpack.c.h.b16 %v2649
        %v3088 = vunpack.c.l.b16 %v2650
        %v3089 = vunpack.c.h.b16 %v2650
        %v3090 = vunpack.c.l.b16 %v2651
        %v3091 = vunpack.c.l.b16 %v2652
        %v3092 = vunpack.c.h.b16 %v2652
        %v3093 = vunpack.c.l.b16 %v2653
        %v3094 = vunpack.c.h.b16 %v2653
        %v3095 = vunpack.c.l.b16 %v2654
        %v3096 = vunpack.c.l.b16 %v2655
        %v3097 = vunpack.c.h.b16 %v2655
        %v3098 = vunpack.c.l.b16 %v2656
        %v3099 = vunpack.c.h.b16 %v2656
        %v3100 = vunpack.c.l.b16 %v2657
        %v3101 = vunpack.c.l.b16 %v2658
        %v3102 = vunpack.c.h.b16 %v2658
        %v3103 = vunpack.c.l.b16 %v2659
        %v3104 = vunpack.c.h.b16 %v2659
        %v3105 = vunpack.c.l.b16 %v2660
        %v3106 = vunpack.c.l.b16 %v2661
        %v3107 = vunpack.c.h.b16 %v2661
        %v3108 = vunpack.c.l.b16 %v2662
        %v3109 = vunpack.c.h.b16 %v2662
        %v3110 = vunpack.c.l.b16 %v2663
        %v3111 = vunpack.c.l.b16 %v2664
        %v3112 = vunpack.c.h.b16 %v2664
        %v3113 = vunpack.c.l.b16 %v2665
        %v3114 = vunpack.c.h.b16 %v2665
        %v3115 = vunpack.c.l.b16 %v2666
        %v3116 = vunpack.c.l.b16 %v2667
        %v3117 = vunpack.c.h.b16 %v2667
        %v3118 = vunpack.c.l.b16 %v2668
        %v3119 = vunpack.c.h.b16 %v2668
        %v3120 = vunpack.c.l.b16 %v2669
        %v3121 = vunpack.c.l.b16 %v2670
        %v3122 = vunpack.c.h.b16 %v2670
        %v3123 = vunpack.c.l.b16 %v2671
        %v3124 = vunpack.c.h.b16 %v2671
        %v3125 = vunpack.c.l.b16 %v2672
        %v3126 = vunpack.c.l.b16 %v2673
        %v3127 = vunpack.c.h.b16 %v2673
        %v3128 = vunpack.c.l.b16 %v2674
        %v3129 = vunpack.c.h.b16 %v2674
        %v3130 = vunpack.c.l.b16 %v2675
        %v3131 = vunpack.c.l.b16 %v2676
        %v3132 = vunpack.c.h.b16 %v2676
        %v3133 = vunpack.c.l.b16 %v2677
        %v3134 = vunpack.c.h.b16 %v2677
        %v3135 = vunpack.c.l.b16 %v2678
        %v3136 = vunpack.c.l.b16 %v2679
        %v3137 = vunpack.c.h.b16 %v2679
        %v3138 = vunpack.c.l.b16 %v2680
        %v3139 = vunpack.c.h.b16 %v2680
        %v3140 = vunpack.c.l.b16 %v2681
        %v3141 = vunpack.c.l.b16 %v2682
        %v3142 = vunpack.c.h.b16 %v2682
        %v3143 = vunpack.c.l.b16 %v2683
        %v3144 = vunpack.c.h.b16 %v2683
        %v3145 = vunpack.c.l.b16 %v2684
        %v3146 = vunpack.c.l.b16 %v2685
        %v3147 = vunpack.c.h.b16 %v2685
        %v3148 = vunpack.c.l.b16 %v2686
        %v3149 = vunpack.c.h.b16 %v2686
        %v3150 = vunpack.c.l.b16 %v2687
        %v3151 = vunpack.c.l.b16 %v2688
        %v3152 = vunpack.c.h.b16 %v2688
        %v3153 = vunpack.c.l.b16 %v2689
        %v3154 = vunpack.c.h.b16 %v2689
        %v3155 = vunpack.c.l.b16 %v2690
        %v3156 = vunpack.c.l.b16 %v2691
        %v3157 = vunpack.c.h.b16 %v2691
        %v3158 = vunpack.c.l.b16 %v2692
        %v3159 = vunpack.c.h.b16 %v2692
        %v3160 = vunpack.c.l.b16 %v2693
        %v3161 = vunpack.c.l.b16 %v2694
        %v3162 = vunpack.c.h.b16 %v2694
        %v3163 = vunpack.c.l.b16 %v2695
        %v3164 = vunpack.c.h.b16 %v2695
        %v3165 = vunpack.c.l.b16 %v2696
        %v3166 = vunpack.c.l.b16 %v2697
        %v3167 = vunpack.c.h.b16 %v2697
        %v3168 = vunpack.c.l.b16 %v2698
        %v3169 = vunpack.c.h.b16 %v2698
        %v3170 = vunpack.c.l.b16 %v2699
        %v3171 = vunpack.c.l.b16 %v2700
        %v3172 = vunpack.c.h.b16 %v2700
        %v3173 = vunpack.c.l.b16 %v2701
        %v3174 = vunpack.c.h.b16 %v2701
        %v3175 = vunpack.c.l.b16 %v2702
        %v3176 = vunpack.c.l.b16 %v2703
        %v3177 = vunpack.c.h.b16 %v2703
        %v3178 = vunpack.c.l.b16 %v2704
        %v3179 = vunpack.c.h.b16 %v2704
        %v3180 = vunpack.c.l.b16 %v2705
        %v3181 = vunpack.c.l.b16 %v2706
        %v3182 = vunpack.c.h.b16 %v2706
        %v3183 = vunpack.c.l.b16 %v2707
        %v3184 = vunpack.c.h.b16 %v2707
        %v3185 = vunpack.c.l.b16 %v2708
        %v3186 = vunpack.c.l.b16 %v2709
        %v3187 = vunpack.c.h.b16 %v2709
        %v3188 = vunpack.c.l.b16 %v2710
        %v3189 = vunpack.c.h.b16 %v2710
        %v3190 = vunpack.c.l.b16 %v2711
        %v3191 = vunpack.c.l.b16 %v2712
        %v3192 = vunpack.c.h.b16 %v2712
        %v3193 = vunpack.c.l.b16 %v2713
        %v3194 = vunpack.c.h.b16 %v2713
        %v3195 = vunpack.c.l.b16 %v2714
        %v3196 = vunpack.c.l.b16 %v2715
        %v3197 = vunpack.c.h.b16 %v2715
        %v3198 = vunpack.c.l.b16 %v2716
        %v3199 = vunpack.c.h.b16 %v2716
        %v3200 = vunpack.c.l.b16 %v2717
        %v3201 = vunpack.c.l.b16 %v2718
        %v3202 = vunpack.c.h.b16 %v2718
        %v3203 = vunpack.c.l.b16 %v2719
        %v3204 = vunpack.c.h.b16 %v2719
        %v3205 = vunpack.c.l.b16 %v2720
        %v3206 = vunpack.c.l.b16 %v2721
        %v3207 = vunpack.c.h.b16 %v2721
        %v3208 = vunpack.c.l.b16 %v2722
        %v3209 = vunpack.c.h.b16 %v2722
        %v3210 = vunpack.c.l.b16 %v2723
        %v3211 = vunpack.c.l.b16 %v2724
        %v3212 = vunpack.c.h.b16 %v2724
        %v3213 = vunpack.c.l.b16 %v2725
        %v3214 = vunpack.c.h.b16 %v2725
        %v3215 = vunpack.c.l.b16 %v2726
        %v3216 = vpack.c.b16 %v2981, %v2976
        %v3217 = vpack.c.b16 %v2982, %v2977
        %v3218 = vpack.c.b16 %v2983, %v2978
        %v3219 = vpack.c.b16 %v2984, %v2979
        %v3220 = vpack.c.b16 %v2985, %v2980
        %v3221 = vpack.c.b16 %v2991, %v2986
        %v3222 = vpack.c.b16 %v2992, %v2987
        %v3223 = vpack.c.b16 %v2993, %v2988
        %v3224 = vpack.c.b16 %v2994, %v2989
        %v3225 = vpack.c.b16 %v2995, %v2990
        %v3226 = vpack.c.b16 %v3001, %v2996
        %v3227 = vpack.c.b16 %v3002, %v2997
        %v3228 = vpack.c.b16 %v3003, %v2998
        %v3229 = vpack.c.b16 %v3004, %v2999
        %v3230 = vpack.c.b16 %v3005, %v3000
        %v3231 = vpack.c.b16 %v3011, %v3006
        %v3232 = vpack.c.b16 %v3012, %v3007
        %v3233 = vpack.c.b16 %v3013, %v3008
        %v3234 = vpack.c.b16 %v3014, %v3009
        %v3235 = vpack.c.b16 %v3015, %v3010
        %v3236 = vpack.c.b16 %v3021, %v3016
        %v3237 = vpack.c.b16 %v3022, %v3017
        %v3238 = vpack.c.b16 %v3023, %v3018
        %v3239 = vpack.c.b16 %v3024, %v3019
        %v3240 = vpack.c.b16 %v3025, %v3020
        %v3241 = vpack.c.b16 %v3031, %v3026
        %v3242 = vpack.c.b16 %v3032, %v3027
        %v3243 = vpack.c.b16 %v3033, %v3028
        %v3244 = vpack.c.b16 %v3034, %v3029
        %v3245 = vpack.c.b16 %v3035, %v3030
        %v3246 = vpack.c.b16 %v3041, %v3036
        %v3247 = vpack.c.b16 %v3042, %v3037
        %v3248 = vpack.c.b16 %v3043, %v3038
        %v3249 = vpack.c.b16 %v3044, %v3039
        %v3250 = vpack.c.b16 %v3045, %v3040
        %v3251 = vpack.c.b16 %v3051, %v3046
        %v3252 = vpack.c.b16 %v3052, %v3047
        %v3253 = vpack.c.b16 %v3053, %v3048
        %v3254 = vpack.c.b16 %v3054, %v3049
        %v3255 = vpack.c.b16 %v3055, %v3050
        %v3256 = vpack.c.b16 %v3061, %v3056
        %v3257 = vpack.c.b16 %v3062, %v3057
        %v3258 = vpack.c.b16 %v3063, %v3058
        %v3259 = vpack.c.b16 %v3064, %v3059
        %v3260 = vpack.c.b16 %v3065, %v3060
        %v3261 = vpack.c.b16 %v3071, %v3066
        %v3262 = vpack.c.b16 %v3072, %v3067
        %v3263 = vpack.c.b16 %v3073, %v3068
        %v3264 = vpack.c.b16 %v3074, %v3069
        %v3265 = vpack.c.b16 %v3075, %v3070
        %v3266 = vpack.c.b16 %v3081, %v3076
        %v3267 = vpack.c.b16 %v3082, %v3077
        %v3268 = vpack.c.b16 %v3083, %v3078
        %v3269 = vpack.c.b16 %v3084, %v3079
        %v3270 = vpack.c.b16 %v3085, %v3080
        %v3271 = vpack.c.b16 %v3091, %v3086
        %v3272 = vpack.c.b16 %v3092, %v3087
        %v3273 = vpack.c.b16 %v3093, %v3088
        %v3274 = vpack.c.b16 %v3094, %v3089
        %v3275 = vpack.c.b16 %v3095, %v3090
        %v3276 = vpack.c.b16 %v3101, %v3096
        %v3277 = vpack.c.b16 %v3102, %v3097
        %v3278 = vpack.c.b16 %v3103, %v3098
        %v3279 = vpack.c.b16 %v3104, %v3099
        %v3280 = vpack.c.b16 %v3105, %v3100
        %v3281 = vpack.c.b16 %v3111, %v3106
        %v3282 = vpack.c.b16 %v3112, %v3107
        %v3283 = vpack.c.b16 %v3113, %v3108
        %v3284 = vpack.c.b16 %v3114, %v3109
        %v3285 = vpack.c.b16 %v3115, %v3110
        %v3286 = vpack.c.b16 %v3121, %v3116
        %v3287 = vpack.c.b16 %v3122, %v3117
        %v3288 = vpack.c.b16 %v3123, %v3118
        %v3289 = vpack.c.b16 %v3124, %v3119
        %v3290 = vpack.c.b16 %v3125, %v3120
        %v3291 = vpack.c.b16 %v3131, %v3126
        %v3292 = vpack.c.b16 %v3132, %v3127
        %v3293 = vpack.c.b16 %v3133, %v3128
        %v3294 = vpack.c.b16 %v3134, %v3129
        %v3295 = vpack.c.b16 %v3135, %v3130
        %v3296 = vpack.c.b16 %v3141, %v3136
        %v3297 = vpack.c.b16 %v3142, %v3137
        %v3298 = vpack.c.b16 %v3143, %v3138
        %v3299 = vpack.c.b16 %v3144, %v3139
        %v3300 = vpack.c.b16 %v3145, %v3140
        %v3301 = vpack.c.b16 %v3151, %v3146
        %v3302 = vpack.c.b16 %v3152, %v3147
        %v3303 = vpack.c.b16 %v3153, %v3148
        %v3304 = vpack.c.b16 %v3154, %v3149
        %v3305 = vpack.c.b16 %v3155, %v3150
        %v3306 = vpack.c.b16 %v3161, %v3156
        %v3307 = vpack.c.b16 %v3162, %v3157
        %v3308 = vpack.c.b16 %v3163, %v3158
        %v3309 = vpack.c.b16 %v3164, %v3159
        %v3310 = vpack.c.b16 %v3165, %v3160
        %v3311 = vpack.c.b16 %v3171, %v3166
        %v3312 = vpack.c.b16 %v3172, %v3167
        %v3313 = vpack.c.b16 %v3173, %v3168
        %v3314 = vpack.c.b16 %v3174, %v3169
        %v3315 = vpack.c.b16 %v3175, %v3170
        %v3316 = vpack.c.b16 %v3181, %v3176
        %v3317 = vpack.c.b16 %v3182, %v3177
        %v3318 = vpack.c.b16 %v3183, %v3178
        %v3319 = vpack.c.b16 %v3184, %v3179
        %v3320 = vpack.c.b16 %v3185, %v3180
        %v3321 = vpack.c.b16 %v3191, %v3186
        %v3322 = vpack.c.b16 %v3192, %v3187
        %v3323 = vpack.c.b16 %v3193, %v3188
        %v3324 = vpack.c.b16 %v3194, %v3189
        %v3325 = vpack.c.b16 %v3195, %v3190
        %v3326 = vpack.c.b16 %v3201, %v3196
        %v3327 = vpack.c.b16 %v3202, %v3197
        %v3328 = vpack.c.b16 %v3203, %v3198
        %v3329 = vpack.c.b16 %v3204, %v3199
        %v3330 = vpack.c.b16 %v3205, %v3200
        %v3331 = vpack.c.b16 %v3211, %v3206
        %v3332 = vpack.c.b16 %v3212, %v3207
        %v3333 = vpack.c.b16 %v3213, %v3208
        %v3334 = vpack.c.b16 %v3214, %v3209
        %v3335 = vpack.c.b16 %v3215, %v3210
        %3456 = vmatprep.subr.bf16.mxu0 %v3217
        %3457 = vmatpush1.bf16.msra.mxu0 %v3216
        %3458 = vmatprep.subr.bf16.mxu0 %v3222
        %3459 = vmatpush1.bf16.msra.mxu0 %v3221
        %3460 = vmatprep.subr.bf16.mxu0 %v3227
        %3461 = vmatpush1.bf16.msra.mxu0 %v3226
        %3462 = vmatprep.subr.bf16.mxu0 %v3232
        %3463 = vmatpush1.bf16.msra.mxu0 %v3231
        %3464 = vmatprep.subr.bf16.mxu0 %v3237
        %3465 = vmatpush1.bf16.msra.mxu0 %v3236
        %3466 = vmatprep.subr.bf16.mxu0 %v3242
        %3467 = vmatpush1.bf16.msra.mxu0 %v3241
        %3468 = vmatprep.subr.bf16.mxu0 %v3247
        %3469 = vmatpush1.bf16.msra.mxu0 %v3246
        %3470 = vmatprep.subr.bf16.mxu0 %v3252
        %3471 = vmatpush1.bf16.msra.mxu0 %v3251
        %3472 = vmatprep.subr.bf16.mxu0 %v3257
        %3473 = vmatpush1.bf16.msra.mxu0 %v3256
        %3474 = vmatprep.subr.bf16.mxu0 %v3262
        %3475 = vmatpush1.bf16.msra.mxu0 %v3261
        %3476 = vmatprep.subr.bf16.mxu0 %v3267
        %3477 = vmatpush1.bf16.msra.mxu0 %v3266
        %3478 = vmatprep.subr.bf16.mxu0 %v3272
        %3479 = vmatpush1.bf16.msra.mxu0 %v3271
        %3480 = vmatprep.subr.bf16.mxu0 %v3277
        %3481 = vmatpush1.bf16.msra.mxu0 %v3276
        %3482 = vmatprep.subr.bf16.mxu0 %v3282
        %3483 = vmatpush1.bf16.msra.mxu0 %v3281
        %3484 = vmatprep.subr.bf16.mxu0 %v3287
        %3485 = vmatpush1.bf16.msra.mxu0 %v3286
        %3486 = vmatprep.subr.bf16.mxu0 %v3292
        %3487 = vmatpush1.bf16.msra.mxu0 %v3291
        %3488 = vmatprep.mubr.bf16.mxu0 %v2750
        %3489 = vmatmul.mubr.bf16.gmra.mrb[0].mxu0 %v2738
        %v3490 = vpop.f32.mrb[0].mxu0
        %v3491 = vadd.f32 0.0, %v3490
        %v3492 = vpop.f32.mrb[0].mxu0
        %v3493 = vadd.f32 0.0, %v3492
        %v3494 = vpop.f32.mrb[0].mxu0
        %v3495 = vadd.f32 0.0, %v3494
        %v3496 = vpop.f32.mrb[0].mxu0
        %v3497 = vadd.f32 0.0, %v3496
        %3498 = vmatprep.mubr.bf16.mxu0 %v2778
        %3499 = vmatmul.mubr.bf16.gmra.mrb[0].mxu0 %v2770
        %v3500 = vpop.f32.mrb[0].mxu0
        %v3501 = vadd.f32 0.0, %v3500
        %v3502 = vpop.f32.mrb[0].mxu0
        %v3503 = vadd.f32 0.0, %v3502
        %v3504 = vpop.f32.mrb[0].mxu0
        %v3505 = vadd.f32 0.0, %v3504
        %v3506 = vpop.f32.mrb[0].mxu0
        %v3507 = vadd.f32 0.0, %v3506
        %3508 = vmatprep.mubr.bf16.mxu0 %v2802
        %3509 = vmatmul.mubr.bf16.gmra.mrb[0].mxu0 %v2794
        %v3510 = vpop.f32.mrb[0].mxu0
        %v3511 = vadd.f32 0.0, %v3510
        %v3512 = vpop.f32.mrb[0].mxu0
        %v3513 = vadd.f32 0.0, %v3512
        %v3514 = vpop.f32.mrb[0].mxu0
        %v3515 = vadd.f32 0.0, %v3514
        %v3516 = vpop.f32.mrb[0].mxu0
        %v3517 = vadd.f32 0.0, %v3516
        %3518 = vmatprep.mubr.bf16.mxu0 %v2816
        %3519 = vmatmul.mubr.bf16.gmra.mrb[0].mxu0 %v2813
        %v3520 = vpop.f32.mrb[0].mxu0
        %v3521 = vadd.f32 0.0, %v3520
        %v3522 = vpop.f32.mrb[0].mxu0
        %v3523 = vadd.f32 0.0, %v3522
        %v3524 = vpop.f32.mrb[0].mxu0
        %v3525 = vadd.f32 0.0, %v3524
        %v3526 = vpop.f32.mrb[0].mxu0
        %v3527 = vadd.f32 0.0, %v3526
        %3528 = vdwg.mxu0
        %3529 = vmatprep.subr.bf16.mxu0 %v3297
        %3530 = vmatpush1.bf16.msra.mxu0 %v3296
        %3531 = vmatprep.subr.bf16.mxu0 %v3302
        %3532 = vmatpush1.bf16.msra.mxu0 %v3301
        %3533 = vmatprep.subr.bf16.mxu0 %v3307
        %3534 = vmatpush1.bf16.msra.mxu0 %v3306
        %3535 = vmatprep.subr.bf16.mxu0 %v3312
        %3536 = vmatpush1.bf16.msra.mxu0 %v3311
        %3537 = vmatprep.subr.bf16.mxu0 %v3317
        %3538 = vmatpush1.bf16.msra.mxu0 %v3316
        %3539 = vmatprep.subr.bf16.mxu0 %v3322
        %3540 = vmatpush1.bf16.msra.mxu0 %v3321
        %3541 = vmatprep.subr.bf16.mxu0 %v3327
        %3542 = vmatpush1.bf16.msra.mxu0 %v3326
        %3543 = vmatprep.subr.bf16.mxu0 %v3332
        %3544 = vmatpush1.bf16.msra.mxu0 %v3331
        %3545 = vmatprep.subr.bf16.mxu0 0
        %3546 = vmatpush1.bf16.msra.mxu0 0
        %3547 = vmatprep.subr.bf16.mxu0 0
        %3548 = vmatpush1.bf16.msra.mxu0 0
        %3549 = vmatprep.subr.bf16.mxu0 0
        %3550 = vmatpush1.bf16.msra.mxu0 0
        %3551 = vmatprep.subr.bf16.mxu0 0
        %3552 = vmatpush1.bf16.msra.mxu0 0
        %3553 = vmatprep.subr.bf16.mxu0 0
        %3554 = vmatpush1.bf16.msra.mxu0 0
        %3555 = vmatprep.subr.bf16.mxu0 0
        %3556 = vmatpush1.bf16.msra.mxu0 0
        %3557 = vmatprep.subr.bf16.mxu0 0
        %3558 = vmatpush1.bf16.msra.mxu0 0
        %3559 = vmatprep.subr.bf16.mxu0 0
        %3560 = vmatpush1.bf16.msra.mxu0 0
        %3561 = vmatprep.mubr.bf16.mxu0 0
        %3562 = vmatmul.mubr.bf16.gmra.mrb[0].mxu0 %v2762
        %v3563 = vpop.f32.mrb[0].mxu0
        %v3564 = vadd.f32 %v3491, %v3563
        %v3565 = vpop.f32.mrb[0].mxu0
        %v3566 = vadd.f32 %v3493, %v3565
        %v3567 = vpop.f32.mrb[0].mxu0
        %v3568 = vadd.f32 %v3495, %v3567
        %v3569 = vpop.f32.mrb[0].mxu0
        %v3570 = vadd.f32 %v3497, %v3569
        %3571 = vmatprep.mubr.bf16.mxu0 0
        %3572 = vmatmul.mubr.bf16.gmra.mrb[0].mxu0 %v2786
        %v3573 = vpop.f32.mrb[0].mxu0
        %v3574 = vadd.f32 %v3501, %v3573
        %v3575 = vpop.f32.mrb[0].mxu0
        %v3576 = vadd.f32 %v3503, %v3575
        %v3577 = vpop.f32.mrb[0].mxu0
        %v3578 = vadd.f32 %v3505, %v3577
        %v3579 = vpop.f32.mrb[0].mxu0
        %v3580 = vadd.f32 %v3507, %v3579
        %3581 = vmatprep.mubr.bf16.mxu0 0
        %3582 = vmatmul.mubr.bf16.gmra.mrb[0].mxu0 %v2810
        %v3583 = vpop.f32.mrb[0].mxu0
        %v3584 = vadd.f32 %v3511, %v3583
        %v3585 = vpop.f32.mrb[0].mxu0
        %v3586 = vadd.f32 %v3513, %v3585
        %v3587 = vpop.f32.mrb[0].mxu0
        %v3588 = vadd.f32 %v3515, %v3587
        %v3589 = vpop.f32.mrb[0].mxu0
        %v3590 = vadd.f32 %v3517, %v3589
        %3591 = vmatprep.mubr.bf16.mxu0 0
        %3592 = vmatmul.mubr.bf16.gmra.mrb[0].mxu0 %v2819
        %v3593 = vpop.f32.mrb[0].mxu0
        %v3594 = vadd.f32 %v3521, %v3593
        %v3595 = vpop.f32.mrb[0].mxu0
        %v3596 = vadd.f32 %v3523, %v3595
        %v3597 = vpop.f32.mrb[0].mxu0
        %v3598 = vadd.f32 %v3525, %v3597
        %v3599 = vpop.f32.mrb[0].mxu0
        %v3600 = vadd.f32 %v3527, %v3599
        %3601 = vdwg.mxu0
        %3602 = vmatprep.subr.bf16.mxu0 %v3219
        %3603 = vmatpush1.bf16.msra.mxu0 %v3218
        %3604 = vmatprep.subr.bf16.mxu0 %v3224
        %3605 = vmatpush1.bf16.msra.mxu0 %v3223
        %3606 = vmatprep.subr.bf16.mxu0 %v3229
        %3607 = vmatpush1.bf16.msra.mxu0 %v3228
        %3608 = vmatprep.subr.bf16.mxu0 %v3234
        %3609 = vmatpush1.bf16.msra.mxu0 %v3233
        %3610 = vmatprep.subr.bf16.mxu0 %v3239
        %3611 = vmatpush1.bf16.msra.mxu0 %v3238
        %3612 = vmatprep.subr.bf16.mxu0 %v3244
        %3613 = vmatpush1.bf16.msra.mxu0 %v3243
        %3614 = vmatprep.subr.bf16.mxu0 %v3249
        %3615 = vmatpush1.bf16.msra.mxu0 %v3248
        %3616 = vmatprep.subr.bf16.mxu0 %v3254
        %3617 = vmatpush1.bf16.msra.mxu0 %v3253
        %3618 = vmatprep.subr.bf16.mxu0 %v3259
        %3619 = vmatpush1.bf16.msra.mxu0 %v3258
        %3620 = vmatprep.subr.bf16.mxu0 %v3264
        %3621 = vmatpush1.bf16.msra.mxu0 %v3263
        %3622 = vmatprep.subr.bf16.mxu0 %v3269
        %3623 = vmatpush1.bf16.msra.mxu0 %v3268
        %3624 = vmatprep.subr.bf16.mxu0 %v3274
        %3625 = vmatpush1.bf16.msra.mxu0 %v3273
        %3626 = vmatprep.subr.bf16.mxu0 %v3279
        %3627 = vmatpush1.bf16.msra.mxu0 %v3278
        %3628 = vmatprep.subr.bf16.mxu0 %v3284
        %3629 = vmatpush1.bf16.msra.mxu0 %v3283
        %3630 = vmatprep.subr.bf16.mxu0 %v3289
        %3631 = vmatpush1.bf16.msra.mxu0 %v3288
        %3632 = vmatprep.subr.bf16.mxu0 %v3294
        %3633 = vmatpush1.bf16.msra.mxu0 %v3293
        %3634 = vmatprep.mubr.bf16.mxu0 %v2750
        %3635 = vmatmul.mubr.bf16.gmra.mrb[0].mxu0 %v2738
        %v3636 = vpop.f32.mrb[0].mxu0
        %v3637 = vadd.f32 0.0, %v3636
        %v3638 = vpop.f32.mrb[0].mxu0
        %v3639 = vadd.f32 0.0, %v3638
        %v3640 = vpop.f32.mrb[0].mxu0
        %v3641 = vadd.f32 0.0, %v3640
        %v3642 = vpop.f32.mrb[0].mxu0
        %v3643 = vadd.f32 0.0, %v3642
        %3644 = vmatprep.mubr.bf16.mxu0 %v2778
        %3645 = vmatmul.mubr.bf16.gmra.mrb[0].mxu0 %v2770
        %v3646 = vpop.f32.mrb[0].mxu0
        %v3647 = vadd.f32 0.0, %v3646
        %v3648 = vpop.f32.mrb[0].mxu0
        %v3649 = vadd.f32 0.0, %v3648
        %v3650 = vpop.f32.mrb[0].mxu0
        %v3651 = vadd.f32 0.0, %v3650
        %v3652 = vpop.f32.mrb[0].mxu0
        %v3653 = vadd.f32 0.0, %v3652
        %3654 = vmatprep.mubr.bf16.mxu0 %v2802
        %3655 = vmatmul.mubr.bf16.gmra.mrb[0].mxu0 %v2794
        %v3656 = vpop.f32.mrb[0].mxu0
        %v3657 = vadd.f32 0.0, %v3656
        %v3658 = vpop.f32.mrb[0].mxu0
        %v3659 = vadd.f32 0.0, %v3658
        %v3660 = vpop.f32.mrb[0].mxu0
        %v3661 = vadd.f32 0.0, %v3660
        %v3662 = vpop.f32.mrb[0].mxu0
        %v3663 = vadd.f32 0.0, %v3662
        %3664 = vmatprep.mubr.bf16.mxu0 %v2816
        %3665 = vmatmul.mubr.bf16.gmra.mrb[0].mxu0 %v2813
        %v3666 = vpop.f32.mrb[0].mxu0
        %v3667 = vadd.f32 0.0, %v3666
        %v3668 = vpop.f32.mrb[0].mxu0
        %v3669 = vadd.f32 0.0, %v3668
        %v3670 = vpop.f32.mrb[0].mxu0
        %v3671 = vadd.f32 0.0, %v3670
        %v3672 = vpop.f32.mrb[0].mxu0
        %v3673 = vadd.f32 0.0, %v3672
        %3674 = vdwg.mxu0
        %3675 = vmatprep.subr.bf16.mxu0 %v3299
        %3676 = vmatpush1.bf16.msra.mxu0 %v3298
        %3677 = vmatprep.subr.bf16.mxu0 %v3304
        %3678 = vmatpush1.bf16.msra.mxu0 %v3303
        %3679 = vmatprep.subr.bf16.mxu0 %v3309
        %3680 = vmatpush1.bf16.msra.mxu0 %v3308
        %3681 = vmatprep.subr.bf16.mxu0 %v3314
        %3682 = vmatpush1.bf16.msra.mxu0 %v3313
        %3683 = vmatprep.subr.bf16.mxu0 %v3319
        %3684 = vmatpush1.bf16.msra.mxu0 %v3318
        %3685 = vmatprep.subr.bf16.mxu0 %v3324
        %3686 = vmatpush1.bf16.msra.mxu0 %v3323
        %3687 = vmatprep.subr.bf16.mxu0 %v3329
        %3688 = vmatpush1.bf16.msra.mxu0 %v3328
        %3689 = vmatprep.subr.bf16.mxu0 %v3334
        %3690 = vmatpush1.bf16.msra.mxu0 %v3333
        %3691 = vmatprep.subr.bf16.mxu0 0
        %3692 = vmatpush1.bf16.msra.mxu0 0
        %3693 = vmatprep.subr.bf16.mxu0 0
        %3694 = vmatpush1.bf16.msra.mxu0 0
        %3695 = vmatprep.subr.bf16.mxu0 0
        %3696 = vmatpush1.bf16.msra.mxu0 0
        %3697 = vmatprep.subr.bf16.mxu0 0
        %3698 = vmatpush1.bf16.msra.mxu0 0
        %3699 = vmatprep.subr.bf16.mxu0 0
        %3700 = vmatpush1.bf16.msra.mxu0 0
        %3701 = vmatprep.subr.bf16.mxu0 0
        %3702 = vmatpush1.bf16.msra.mxu0 0
        %3703 = vmatprep.subr.bf16.mxu0 0
        %3704 = vmatpush1.bf16.msra.mxu0 0
        %3705 = vmatprep.subr.bf16.mxu0 0
        %3706 = vmatpush1.bf16.msra.mxu0 0
        %3707 = vmatprep.mubr.bf16.mxu0 0
        %3708 = vmatmul.mubr.bf16.gmra.mrb[0].mxu0 %v2762
        %v3709 = vpop.f32.mrb[0].mxu0
        %v3710 = vadd.f32 %v3637, %v3709
        %v3711 = vpop.f32.mrb[0].mxu0
        %v3712 = vadd.f32 %v3639, %v3711
        %v3713 = vpop.f32.mrb[0].mxu0
        %v3714 = vadd.f32 %v3641, %v3713
        %v3715 = vpop.f32.mrb[0].mxu0
        %v3716 = vadd.f32 %v3643, %v3715
        %3717 = vmatprep.mubr.bf16.mxu0 0
        %3718 = vmatmul.mubr.bf16.gmra.mrb[0].mxu0 %v2786
        %v3719 = vpop.f32.mrb[0].mxu0
        %v3720 = vadd.f32 %v3647, %v3719
        %v3721 = vpop.f32.mrb[0].mxu0
        %v3722 = vadd.f32 %v3649, %v3721
        %v3723 = vpop.f32.mrb[0].mxu0
        %v3724 = vadd.f32 %v3651, %v3723
        %v3725 = vpop.f32.mrb[0].mxu0
        %v3726 = vadd.f32 %v3653, %v3725
        %3727 = vmatprep.mubr.bf16.mxu0 0
        %3728 = vmatmul.mubr.bf16.gmra.mrb[0].mxu0 %v2810
        %v3729 = vpop.f32.mrb[0].mxu0
        %v3730 = vadd.f32 %v3657, %v3729
        %v3731 = vpop.f32.mrb[0].mxu0
        %v3732 = vadd.f32 %v3659, %v3731
        %v3733 = vpop.f32.mrb[0].mxu0
        %v3734 = vadd.f32 %v3661, %v3733
        %v3735 = vpop.f32.mrb[0].mxu0
        %v3736 = vadd.f32 %v3663, %v3735
        %3737 = vmatprep.mubr.bf16.mxu0 0
        %3738 = vmatmul.mubr.bf16.gmra.mrb[0].mxu0 %v2819
        %v3739 = vpop.f32.mrb[0].mxu0
        %v3740 = vadd.f32 %v3667, %v3739
        %v3741 = vpop.f32.mrb[0].mxu0
        %v3742 = vadd.f32 %v3669, %v3741
        %v3743 = vpop.f32.mrb[0].mxu0
        %v3744 = vadd.f32 %v3671, %v3743
        %v3745 = vpop.f32.mrb[0].mxu0
        %v3746 = vadd.f32 %v3673, %v3745
        %3747 = vdwg.mxu0
        %3748 = vmatprep.subr.bf16.mxu0 0
        %3749 = vmatpush1.bf16.msra.mxu0 %v3220
        %3750 = vmatprep.subr.bf16.mxu0 0
        %3751 = vmatpush1.bf16.msra.mxu0 %v3225
        %3752 = vmatprep.subr.bf16.mxu0 0
        %3753 = vmatpush1.bf16.msra.mxu0 %v3230
        %3754 = vmatprep.subr.bf16.mxu0 0
        %3755 = vmatpush1.bf16.msra.mxu0 %v3235
        %3756 = vmatprep.subr.bf16.mxu0 0
        %3757 = vmatpush1.bf16.msra.mxu0 %v3240
        %3758 = vmatprep.subr.bf16.mxu0 0
        %3759 = vmatpush1.bf16.msra.mxu0 %v3245
        %3760 = vmatprep.subr.bf16.mxu0 0
        %3761 = vmatpush1.bf16.msra.mxu0 %v3250
        %3762 = vmatprep.subr.bf16.mxu0 0
        %3763 = vmatpush1.bf16.msra.mxu0 %v3255
        %3764 = vmatprep.subr.bf16.mxu0 0
        %3765 = vmatpush1.bf16.msra.mxu0 %v3260
        %3766 = vmatprep.subr.bf16.mxu0 0
        %3767 = vmatpush1.bf16.msra.mxu0 %v3265
        %3768 = vmatprep.subr.bf16.mxu0 0
        %3769 = vmatpush1.bf16.msra.mxu0 %v3270
        %3770 = vmatprep.subr.bf16.mxu0 0
        %3771 = vmatpush1.bf16.msra.mxu0 %v3275
        %3772 = vmatprep.subr.bf16.mxu0 0
        %3773 = vmatpush1.bf16.msra.mxu0 %v3280
        %3774 = vmatprep.subr.bf16.mxu0 0
        %3775 = vmatpush1.bf16.msra.mxu0 %v3285
        %3776 = vmatprep.subr.bf16.mxu0 0
        %3777 = vmatpush1.bf16.msra.mxu0 %v3290
        %3778 = vmatprep.subr.bf16.mxu0 0
        %3779 = vmatpush1.bf16.msra.mxu0 %v3295
        %3780 = vmatprep.mubr.bf16.mxu0 %v2750
        %3781 = vmatmul.mubr.bf16.gmra.mrb[0].mxu0 %v2738
        %v3782 = vpop.f32.mrb[0].mxu0
        %v3783 = vadd.f32 0.0, %v3782
        %v3784 = vpop.f32.mrb[0].mxu0
        %v3785 = vpop.f32.mrb[0].mxu0
        %v3786 = vadd.f32 0.0, %v3785
        %v3787 = vpop.f32.mrb[0].mxu0
        %3788 = vmatprep.mubr.bf16.mxu0 %v2778
        %3789 = vmatmul.mubr.bf16.gmra.mrb[0].mxu0 %v2770
        %v3790 = vpop.f32.mrb[0].mxu0
        %v3791 = vadd.f32 0.0, %v3790
        %v3792 = vpop.f32.mrb[0].mxu0
        %v3793 = vpop.f32.mrb[0].mxu0
        %v3794 = vadd.f32 0.0, %v3793
        %v3795 = vpop.f32.mrb[0].mxu0
        %3796 = vmatprep.mubr.bf16.mxu0 %v2802
        %3797 = vmatmul.mubr.bf16.gmra.mrb[0].mxu0 %v2794
        %v3798 = vpop.f32.mrb[0].mxu0
        %v3799 = vadd.f32 0.0, %v3798
        %v3800 = vpop.f32.mrb[0].mxu0
        %v3801 = vpop.f32.mrb[0].mxu0
        %v3802 = vadd.f32 0.0, %v3801
        %v3803 = vpop.f32.mrb[0].mxu0
        %3804 = vmatprep.mubr.bf16.mxu0 %v2816
        %3805 = vmatmul.mubr.bf16.gmra.mrb[0].mxu0 %v2813
        %v3806 = vpop.f32.mrb[0].mxu0
        %v3807 = vadd.f32 0.0, %v3806
        %v3808 = vpop.f32.mrb[0].mxu0
        %v3809 = vpop.f32.mrb[0].mxu0
        %v3810 = vadd.f32 0.0, %v3809
        %v3811 = vpop.f32.mrb[0].mxu0
        %3812 = vdwg.mxu0
        %3813 = vmatprep.subr.bf16.mxu0 0
        %3814 = vmatpush1.bf16.msra.mxu0 %v3300
        %3815 = vmatprep.subr.bf16.mxu0 0
        %3816 = vmatpush1.bf16.msra.mxu0 %v3305
        %3817 = vmatprep.subr.bf16.mxu0 0
        %3818 = vmatpush1.bf16.msra.mxu0 %v3310
        %3819 = vmatprep.subr.bf16.mxu0 0
        %3820 = vmatpush1.bf16.msra.mxu0 %v3315
        %3821 = vmatprep.subr.bf16.mxu0 0
        %3822 = vmatpush1.bf16.msra.mxu0 %v3320
        %3823 = vmatprep.subr.bf16.mxu0 0
        %3824 = vmatpush1.bf16.msra.mxu0 %v3325
        %3825 = vmatprep.subr.bf16.mxu0 0
        %3826 = vmatpush1.bf16.msra.mxu0 %v3330
        %3827 = vmatprep.subr.bf16.mxu0 0
        %3828 = vmatpush1.bf16.msra.mxu0 %v3335
        %3829 = vmatprep.subr.bf16.mxu0 0
        %3830 = vmatpush1.bf16.msra.mxu0 0
        %3831 = vmatprep.subr.bf16.mxu0 0
        %3832 = vmatpush1.bf16.msra.mxu0 0
        %3833 = vmatprep.subr.bf16.mxu0 0
        %3834 = vmatpush1.bf16.msra.mxu0 0
        %3835 = vmatprep.subr.bf16.mxu0 0
        %3836 = vmatpush1.bf16.msra.mxu0 0
        %3837 = vmatprep.subr.bf16.mxu0 0
        %3838 = vmatpush1.bf16.msra.mxu0 0
        %3839 = vmatprep.subr.bf16.mxu0 0
        %3840 = vmatpush1.bf16.msra.mxu0 0
        %3841 = vmatprep.subr.bf16.mxu0 0
        %3842 = vmatpush1.bf16.msra.mxu0 0
        %3843 = vmatprep.subr.bf16.mxu0 0
        %3844 = vmatpush1.bf16.msra.mxu0 0
        %3845 = vmatprep.mubr.bf16.mxu0 0
        %3846 = vmatmul.mubr.bf16.gmra.mrb[0].mxu0 %v2762
        %v3847 = vpop.f32.mrb[0].mxu0
        %v3848 = vadd.f32 %v3783, %v3847
        %v3849 = vpop.f32.mrb[0].mxu0
        %v3850 = vpop.f32.mrb[0].mxu0
        %v3851 = vadd.f32 %v3786, %v3850
        %v3852 = vpop.f32.mrb[0].mxu0
        %3853 = vmatprep.mubr.bf16.mxu0 0
        %3854 = vmatmul.mubr.bf16.gmra.mrb[0].mxu0 %v2786
        %v3855 = vpop.f32.mrb[0].mxu0
        %v3856 = vadd.f32 %v3791, %v3855
        %v3857 = vpop.f32.mrb[0].mxu0
        %v3858 = vpop.f32.mrb[0].mxu0
        %v3859 = vadd.f32 %v3794, %v3858
        %v3860 = vpop.f32.mrb[0].mxu0
        %3861 = vmatprep.mubr.bf16.mxu0 0
        %3862 = vmatmul.mubr.bf16.gmra.mrb[0].mxu0 %v2810
        %v3863 = vpop.f32.mrb[0].mxu0
        %v3864 = vadd.f32 %v3799, %v3863
        %v3865 = vpop.f32.mrb[0].mxu0
        %v3866 = vpop.f32.mrb[0].mxu0
        %v3867 = vadd.f32 %v3802, %v3866
        %v3868 = vpop.f32.mrb[0].mxu0
        %3869 = vmatprep.mubr.bf16.mxu0 0
        %3870 = vmatmul.mubr.bf16.gmra.mrb[0].mxu0 %v2819
        %v3871 = vpop.f32.mrb[0].mxu0
        %v3872 = vadd.f32 %v3807, %v3871
        %v3873 = vpop.f32.mrb[0].mxu0
        %v3874 = vpop.f32.mrb[0].mxu0
        %v3875 = vadd.f32 %v3810, %v3874
        %v3876 = vpop.f32.mrb[0].mxu0
        %3877 = vdwg.mxu0
        %v4022 = vunpack.c.l.b16 %v2426
        %v4023 = vunpack.c.h.b16 %v2426
        %v4024 = vunpack.c.l.b16 %v2427
        %v4025 = vunpack.c.h.b16 %v2427
        %v4026 = vunpack.c.l.b16 %v2428
        %v4027 = vunpack.c.l.b16 %v2429
        %v4028 = vunpack.c.h.b16 %v2429
        %v4029 = vunpack.c.l.b16 %v2430
        %v4030 = vunpack.c.h.b16 %v2430
        %v4031 = vunpack.c.l.b16 %v2431
        %v4032 = vunpack.c.l.b16 %v2432
        %v4033 = vunpack.c.h.b16 %v2432
        %v4034 = vunpack.c.l.b16 %v2433
        %v4035 = vunpack.c.h.b16 %v2433
        %v4036 = vunpack.c.l.b16 %v2434
        %v4037 = vunpack.c.l.b16 %v2435
        %v4038 = vunpack.c.h.b16 %v2435
        %v4039 = vunpack.c.l.b16 %v2436
        %v4040 = vunpack.c.h.b16 %v2436
        %v4041 = vunpack.c.l.b16 %v2437
        %v4042 = vunpack.c.l.b16 %v2438
        %v4043 = vunpack.c.h.b16 %v2438
        %v4044 = vunpack.c.l.b16 %v2439
        %v4045 = vunpack.c.h.b16 %v2439
        %v4046 = vunpack.c.l.b16 %v2440
        %v4047 = vunpack.c.l.b16 %v2441
        %v4048 = vunpack.c.h.b16 %v2441
        %v4049 = vunpack.c.l.b16 %v2442
        %v4050 = vunpack.c.h.b16 %v2442
        %v4051 = vunpack.c.l.b16 %v2443
        %v4052 = vunpack.c.l.b16 %v2444
        %v4053 = vunpack.c.h.b16 %v2444
        %v4054 = vunpack.c.l.b16 %v2445
        %v4055 = vunpack.c.h.b16 %v2445
        %v4056 = vunpack.c.l.b16 %v2446
        %v4057 = vunpack.c.l.b16 %v2447
        %v4058 = vunpack.c.h.b16 %v2447
        %v4059 = vunpack.c.l.b16 %v2448
        %v4060 = vunpack.c.h.b16 %v2448
        %v4061 = vunpack.c.l.b16 %v2449
        %v4062 = vunpack.c.l.b16 %v2450
        %v4063 = vunpack.c.h.b16 %v2450
        %v4064 = vunpack.c.l.b16 %v2451
        %v4065 = vunpack.c.h.b16 %v2451
        %v4066 = vunpack.c.l.b16 %v2452
        %v4067 = vunpack.c.l.b16 %v2453
        %v4068 = vunpack.c.h.b16 %v2453
        %v4069 = vunpack.c.l.b16 %v2454
        %v4070 = vunpack.c.h.b16 %v2454
        %v4071 = vunpack.c.l.b16 %v2455
        %v4072 = vunpack.c.l.b16 %v2456
        %v4073 = vunpack.c.h.b16 %v2456
        %v4074 = vunpack.c.l.b16 %v2457
        %v4075 = vunpack.c.h.b16 %v2457
        %v4076 = vunpack.c.l.b16 %v2458
        %v4077 = vunpack.c.l.b16 %v2459
        %v4078 = vunpack.c.h.b16 %v2459
        %v4079 = vunpack.c.l.b16 %v2460
        %v4080 = vunpack.c.h.b16 %v2460
        %v4081 = vunpack.c.l.b16 %v2461
        %v4082 = vunpack.c.l.b16 %v2462
        %v4083 = vunpack.c.h.b16 %v2462
        %v4084 = vunpack.c.l.b16 %v2463
        %v4085 = vunpack.c.h.b16 %v2463
        %v4086 = vunpack.c.l.b16 %v2464
        %v4087 = vunpack.c.l.b16 %v2465
        %v4088 = vunpack.c.h.b16 %v2465
        %v4089 = vunpack.c.l.b16 %v2466
        %v4090 = vunpack.c.h.b16 %v2466
        %v4091 = vunpack.c.l.b16 %v2467
        %v4092 = vunpack.c.l.b16 %v2468
        %v4093 = vunpack.c.h.b16 %v2468
        %v4094 = vunpack.c.l.b16 %v2469
        %v4095 = vunpack.c.h.b16 %v2469
        %v4096 = vunpack.c.l.b16 %v2470
        %v4097 = vunpack.c.l.b16 %v2471
        %v4098 = vunpack.c.h.b16 %v2471
        %v4099 = vunpack.c.l.b16 %v2472
        %v4100 = vunpack.c.h.b16 %v2472
        %v4101 = vunpack.c.l.b16 %v2473
        %v4102 = vunpack.c.l.b16 %v2474
        %v4103 = vunpack.c.h.b16 %v2474
        %v4104 = vunpack.c.l.b16 %v2475
        %v4105 = vunpack.c.h.b16 %v2475
        %v4106 = vunpack.c.l.b16 %v2476
        %v4107 = vunpack.c.l.b16 %v2477
        %v4108 = vunpack.c.h.b16 %v2477
        %v4109 = vunpack.c.l.b16 %v2478
        %v4110 = vunpack.c.h.b16 %v2478
        %v4111 = vunpack.c.l.b16 %v2479
        %v4112 = vunpack.c.l.b16 %v2480
        %v4113 = vunpack.c.h.b16 %v2480
        %v4114 = vunpack.c.l.b16 %v2481
        %v4115 = vunpack.c.h.b16 %v2481
        %v4116 = vunpack.c.l.b16 %v2482
        %v4117 = vunpack.c.l.b16 %v2483
        %v4118 = vunpack.c.h.b16 %v2483
        %v4119 = vunpack.c.l.b16 %v2484
        %v4120 = vunpack.c.h.b16 %v2484
        %v4121 = vunpack.c.l.b16 %v2485
        %v4122 = vunpack.c.l.b16 %v2486
        %v4123 = vunpack.c.h.b16 %v2486
        %v4124 = vunpack.c.l.b16 %v2487
        %v4125 = vunpack.c.h.b16 %v2487
        %v4126 = vunpack.c.l.b16 %v2488
        %v4127 = vunpack.c.l.b16 %v2489
        %v4128 = vunpack.c.h.b16 %v2489
        %v4129 = vunpack.c.l.b16 %v2490
        %v4130 = vunpack.c.h.b16 %v2490
        %v4131 = vunpack.c.l.b16 %v2491
        %v4132 = vunpack.c.l.b16 %v2492
        %v4133 = vunpack.c.h.b16 %v2492
        %v4134 = vunpack.c.l.b16 %v2493
        %v4135 = vunpack.c.h.b16 %v2493
        %v4136 = vunpack.c.l.b16 %v2494
        %v4137 = vunpack.c.l.b16 %v2495
        %v4138 = vunpack.c.h.b16 %v2495
        %v4139 = vunpack.c.l.b16 %v2496
        %v4140 = vunpack.c.h.b16 %v2496
        %v4141 = vunpack.c.l.b16 %v2497
        %v4142 = vunpack.c.l.b16 %v2498
        %v4143 = vunpack.c.h.b16 %v2498
        %v4144 = vunpack.c.l.b16 %v2499
        %v4145 = vunpack.c.h.b16 %v2499
        %v4146 = vunpack.c.l.b16 %v2500
        %v4147 = vunpack.c.l.b16 %v2501
        %v4148 = vunpack.c.h.b16 %v2501
        %v4149 = vunpack.c.l.b16 %v2502
        %v4150 = vunpack.c.h.b16 %v2502
        %v4151 = vunpack.c.l.b16 %v2503
        %v4152 = vunpack.c.l.b16 %v2504
        %v4153 = vunpack.c.h.b16 %v2504
        %v4154 = vunpack.c.l.b16 %v2505
        %v4155 = vunpack.c.h.b16 %v2505
        %v4156 = vunpack.c.l.b16 %v2506
        %v4157 = vunpack.c.l.b16 %v2507
        %v4158 = vunpack.c.h.b16 %v2507
        %v4159 = vunpack.c.l.b16 %v2508
        %v4160 = vunpack.c.h.b16 %v2508
        %v4161 = vunpack.c.l.b16 %v2509
        %v4162 = vunpack.c.l.b16 %v2510
        %v4163 = vunpack.c.h.b16 %v2510
        %v4164 = vunpack.c.l.b16 %v2511
        %v4165 = vunpack.c.h.b16 %v2511
        %v4166 = vunpack.c.l.b16 %v2512
        %v4167 = vunpack.c.l.b16 %v2513
        %v4168 = vunpack.c.h.b16 %v2513
        %v4169 = vunpack.c.l.b16 %v2514
        %v4170 = vunpack.c.h.b16 %v2514
        %v4171 = vunpack.c.l.b16 %v2515
        %v4172 = vunpack.c.l.b16 %v2516
        %v4173 = vunpack.c.h.b16 %v2516
        %v4174 = vunpack.c.l.b16 %v2517
        %v4175 = vunpack.c.h.b16 %v2517
        %v4176 = vunpack.c.l.b16 %v2518
        %v4177 = vunpack.c.l.b16 %v2519
        %v4178 = vunpack.c.h.b16 %v2519
        %v4179 = vunpack.c.l.b16 %v2520
        %v4180 = vunpack.c.h.b16 %v2520
        %v4181 = vunpack.c.l.b16 %v2521
        %v4182 = vunpack.c.l.b16 %v2522
        %v4183 = vunpack.c.h.b16 %v2522
        %v4184 = vunpack.c.l.b16 %v2523
        %v4185 = vunpack.c.h.b16 %v2523
        %v4186 = vunpack.c.l.b16 %v2524
        %v4187 = vunpack.c.l.b16 %v2525
        %v4188 = vunpack.c.h.b16 %v2525
        %v4189 = vunpack.c.l.b16 %v2526
        %v4190 = vunpack.c.h.b16 %v2526
        %v4191 = vunpack.c.l.b16 %v2527
        %v4192 = vunpack.c.l.b16 %v2528
        %v4193 = vunpack.c.h.b16 %v2528
        %v4194 = vunpack.c.l.b16 %v2529
        %v4195 = vunpack.c.h.b16 %v2529
        %v4196 = vunpack.c.l.b16 %v2530
        %v4197 = vunpack.c.l.b16 %v2531
        %v4198 = vunpack.c.h.b16 %v2531
        %v4199 = vunpack.c.l.b16 %v2532
        %v4200 = vunpack.c.h.b16 %v2532
        %v4201 = vunpack.c.l.b16 %v2533
        %v4202 = vunpack.c.l.b16 %v2534
        %v4203 = vunpack.c.h.b16 %v2534
        %v4204 = vunpack.c.l.b16 %v2535
        %v4205 = vunpack.c.h.b16 %v2535
        %v4206 = vunpack.c.l.b16 %v2536
        %v4207 = vunpack.c.l.b16 %v2537
        %v4208 = vunpack.c.h.b16 %v2537
        %v4209 = vunpack.c.l.b16 %v2538
        %v4210 = vunpack.c.h.b16 %v2538
        %v4211 = vunpack.c.l.b16 %v2539
        %v4212 = vunpack.c.l.b16 %v2540
        %v4213 = vunpack.c.h.b16 %v2540
        %v4214 = vunpack.c.l.b16 %v2541
        %v4215 = vunpack.c.h.b16 %v2541
        %v4216 = vunpack.c.l.b16 %v2542
        %v4217 = vunpack.c.l.b16 %v2543
        %v4218 = vunpack.c.h.b16 %v2543
        %v4219 = vunpack.c.l.b16 %v2544
        %v4220 = vunpack.c.h.b16 %v2544
        %v4221 = vunpack.c.l.b16 %v2545
        %v4222 = vunpack.c.l.b16 %v2546
        %v4223 = vunpack.c.h.b16 %v2546
        %v4224 = vunpack.c.l.b16 %v2547
        %v4225 = vunpack.c.h.b16 %v2547
        %v4226 = vunpack.c.l.b16 %v2548
        %v4227 = vunpack.c.l.b16 %v2549
        %v4228 = vunpack.c.h.b16 %v2549
        %v4229 = vunpack.c.l.b16 %v2550
        %v4230 = vunpack.c.h.b16 %v2550
        %v4231 = vunpack.c.l.b16 %v2551
        %v4232 = vunpack.c.l.b16 %v2552
        %v4233 = vunpack.c.h.b16 %v2552
        %v4234 = vunpack.c.l.b16 %v2553
        %v4235 = vunpack.c.h.b16 %v2553
        %v4236 = vunpack.c.l.b16 %v2554
        %v4237 = vunpack.c.l.b16 %v2555
        %v4238 = vunpack.c.h.b16 %v2555
        %v4239 = vunpack.c.l.b16 %v2556
        %v4240 = vunpack.c.h.b16 %v2556
        %v4241 = vunpack.c.l.b16 %v2557
        %v4242 = vunpack.c.l.b16 %v2558
        %v4243 = vunpack.c.h.b16 %v2558
        %v4244 = vunpack.c.l.b16 %v2559
        %v4245 = vunpack.c.h.b16 %v2559
        %v4246 = vunpack.c.l.b16 %v2560
        %v4247 = vunpack.c.l.b16 %v2561
        %v4248 = vunpack.c.h.b16 %v2561
        %v4249 = vunpack.c.l.b16 %v2562
        %v4250 = vunpack.c.h.b16 %v2562
        %v4251 = vunpack.c.l.b16 %v2563
        %v4252 = vunpack.c.l.b16 %v2564
        %v4253 = vunpack.c.h.b16 %v2564
        %v4254 = vunpack.c.l.b16 %v2565
        %v4255 = vunpack.c.h.b16 %v2565
        %v4256 = vunpack.c.l.b16 %v2566
        %v4257 = vunpack.c.l.b16 %v2567
        %v4258 = vunpack.c.h.b16 %v2567
        %v4259 = vunpack.c.l.b16 %v2568
        %v4260 = vunpack.c.h.b16 %v2568
        %v4261 = vunpack.c.l.b16 %v2569
        %v4262 = vpack.c.b16 %v4027, %v4022
        %v4263 = vpack.c.b16 %v4028, %v4023
        %v4264 = vpack.c.b16 %v4029, %v4024
        %v4265 = vpack.c.b16 %v4030, %v4025
        %v4266 = vpack.c.b16 %v4031, %v4026
        %v4267 = vpack.c.b16 %v4037, %v4032
        %v4268 = vpack.c.b16 %v4038, %v4033
        %v4269 = vpack.c.b16 %v4039, %v4034
        %v4270 = vpack.c.b16 %v4040, %v4035
        %v4271 = vpack.c.b16 %v4041, %v4036
        %v4272 = vpack.c.b16 %v4047, %v4042
        %v4273 = vpack.c.b16 %v4048, %v4043
        %v4274 = vpack.c.b16 %v4049, %v4044
        %v4275 = vpack.c.b16 %v4050, %v4045
        %v4276 = vpack.c.b16 %v4051, %v4046
        %v4277 = vpack.c.b16 %v4057, %v4052
        %v4278 = vpack.c.b16 %v4058, %v4053
        %v4279 = vpack.c.b16 %v4059, %v4054
        %v4280 = vpack.c.b16 %v4060, %v4055
        %v4281 = vpack.c.b16 %v4061, %v4056
        %v4282 = vpack.c.b16 %v4067, %v4062
        %v4283 = vpack.c.b16 %v4068, %v4063
        %v4284 = vpack.c.b16 %v4069, %v4064
        %v4285 = vpack.c.b16 %v4070, %v4065
        %v4286 = vpack.c.b16 %v4071, %v4066
        %v4287 = vpack.c.b16 %v4077, %v4072
        %v4288 = vpack.c.b16 %v4078, %v4073
        %v4289 = vpack.c.b16 %v4079, %v4074
        %v4290 = vpack.c.b16 %v4080, %v4075
        %v4291 = vpack.c.b16 %v4081, %v4076
        %v4292 = vpack.c.b16 %v4087, %v4082
        %v4293 = vpack.c.b16 %v4088, %v4083
        %v4294 = vpack.c.b16 %v4089, %v4084
        %v4295 = vpack.c.b16 %v4090, %v4085
        %v4296 = vpack.c.b16 %v4091, %v4086
        %v4297 = vpack.c.b16 %v4097, %v4092
        %v4298 = vpack.c.b16 %v4098, %v4093
        %v4299 = vpack.c.b16 %v4099, %v4094
        %v4300 = vpack.c.b16 %v4100, %v4095
        %v4301 = vpack.c.b16 %v4101, %v4096
        %v4302 = vpack.c.b16 %v4107, %v4102
        %v4303 = vpack.c.b16 %v4108, %v4103
        %v4304 = vpack.c.b16 %v4109, %v4104
        %v4305 = vpack.c.b16 %v4110, %v4105
        %v4306 = vpack.c.b16 %v4111, %v4106
        %v4307 = vpack.c.b16 %v4117, %v4112
        %v4308 = vpack.c.b16 %v4118, %v4113
        %v4309 = vpack.c.b16 %v4119, %v4114
        %v4310 = vpack.c.b16 %v4120, %v4115
        %v4311 = vpack.c.b16 %v4121, %v4116
        %v4312 = vpack.c.b16 %v4127, %v4122
        %v4313 = vpack.c.b16 %v4128, %v4123
        %v4314 = vpack.c.b16 %v4129, %v4124
        %v4315 = vpack.c.b16 %v4130, %v4125
        %v4316 = vpack.c.b16 %v4131, %v4126
        %v4317 = vpack.c.b16 %v4137, %v4132
        %v4318 = vpack.c.b16 %v4138, %v4133
        %v4319 = vpack.c.b16 %v4139, %v4134
        %v4320 = vpack.c.b16 %v4140, %v4135
        %v4321 = vpack.c.b16 %v4141, %v4136
        %v4322 = vpack.c.b16 %v4147, %v4142
        %v4323 = vpack.c.b16 %v4148, %v4143
        %v4324 = vpack.c.b16 %v4149, %v4144
        %v4325 = vpack.c.b16 %v4150, %v4145
        %v4326 = vpack.c.b16 %v4151, %v4146
        %v4327 = vpack.c.b16 %v4157, %v4152
        %v4328 = vpack.c.b16 %v4158, %v4153
        %v4329 = vpack.c.b16 %v4159, %v4154
        %v4330 = vpack.c.b16 %v4160, %v4155
        %v4331 = vpack.c.b16 %v4161, %v4156
        %v4332 = vpack.c.b16 %v4167, %v4162
        %v4333 = vpack.c.b16 %v4168, %v4163
        %v4334 = vpack.c.b16 %v4169, %v4164
        %v4335 = vpack.c.b16 %v4170, %v4165
        %v4336 = vpack.c.b16 %v4171, %v4166
        %v4337 = vpack.c.b16 %v4177, %v4172
        %v4338 = vpack.c.b16 %v4178, %v4173
        %v4339 = vpack.c.b16 %v4179, %v4174
        %v4340 = vpack.c.b16 %v4180, %v4175
        %v4341 = vpack.c.b16 %v4181, %v4176
        %v4342 = vpack.c.b16 %v4187, %v4182
        %v4343 = vpack.c.b16 %v4188, %v4183
        %v4344 = vpack.c.b16 %v4189, %v4184
        %v4345 = vpack.c.b16 %v4190, %v4185
        %v4346 = vpack.c.b16 %v4191, %v4186
        %v4347 = vpack.c.b16 %v4197, %v4192
        %v4348 = vpack.c.b16 %v4198, %v4193
        %v4349 = vpack.c.b16 %v4199, %v4194
        %v4350 = vpack.c.b16 %v4200, %v4195
        %v4351 = vpack.c.b16 %v4201, %v4196
        %v4352 = vpack.c.b16 %v4207, %v4202
        %v4353 = vpack.c.b16 %v4208, %v4203
        %v4354 = vpack.c.b16 %v4209, %v4204
        %v4355 = vpack.c.b16 %v4210, %v4205
        %v4356 = vpack.c.b16 %v4211, %v4206
        %v4357 = vpack.c.b16 %v4217, %v4212
        %v4358 = vpack.c.b16 %v4218, %v4213
        %v4359 = vpack.c.b16 %v4219, %v4214
        %v4360 = vpack.c.b16 %v4220, %v4215
        %v4361 = vpack.c.b16 %v4221, %v4216
        %v4362 = vpack.c.b16 %v4227, %v4222
        %v4363 = vpack.c.b16 %v4228, %v4223
        %v4364 = vpack.c.b16 %v4229, %v4224
        %v4365 = vpack.c.b16 %v4230, %v4225
        %v4366 = vpack.c.b16 %v4231, %v4226
        %v4367 = vpack.c.b16 %v4237, %v4232
        %v4368 = vpack.c.b16 %v4238, %v4233
        %v4369 = vpack.c.b16 %v4239, %v4234
        %v4370 = vpack.c.b16 %v4240, %v4235
        %v4371 = vpack.c.b16 %v4241, %v4236
        %v4372 = vpack.c.b16 %v4247, %v4242
        %v4373 = vpack.c.b16 %v4248, %v4243
        %v4374 = vpack.c.b16 %v4249, %v4244
        %v4375 = vpack.c.b16 %v4250, %v4245
        %v4376 = vpack.c.b16 %v4251, %v4246
        %v4377 = vpack.c.b16 %v4257, %v4252
        %v4378 = vpack.c.b16 %v4258, %v4253
        %v4379 = vpack.c.b16 %v4259, %v4254
        %v4380 = vpack.c.b16 %v4260, %v4255
        %v4381 = vpack.c.b16 %v4261, %v4256
        %4502 = vmatprep.subr.bf16.mxu0 %v4263
        %4503 = vmatpush1.bf16.msra.mxu0 %v4262
        %4504 = vmatprep.subr.bf16.mxu0 %v4268
        %4505 = vmatpush1.bf16.msra.mxu0 %v4267
        %4506 = vmatprep.subr.bf16.mxu0 %v4273
        %4507 = vmatpush1.bf16.msra.mxu0 %v4272
        %4508 = vmatprep.subr.bf16.mxu0 %v4278
        %4509 = vmatpush1.bf16.msra.mxu0 %v4277
        %4510 = vmatprep.subr.bf16.mxu0 %v4283
        %4511 = vmatpush1.bf16.msra.mxu0 %v4282
        %4512 = vmatprep.subr.bf16.mxu0 %v4288
        %4513 = vmatpush1.bf16.msra.mxu0 %v4287
        %4514 = vmatprep.subr.bf16.mxu0 %v4293
        %4515 = vmatpush1.bf16.msra.mxu0 %v4292
        %4516 = vmatprep.subr.bf16.mxu0 %v4298
        %4517 = vmatpush1.bf16.msra.mxu0 %v4297
        %4518 = vmatprep.subr.bf16.mxu0 %v4303
        %4519 = vmatpush1.bf16.msra.mxu0 %v4302
        %4520 = vmatprep.subr.bf16.mxu0 %v4308
        %4521 = vmatpush1.bf16.msra.mxu0 %v4307
        %4522 = vmatprep.subr.bf16.mxu0 %v4313
        %4523 = vmatpush1.bf16.msra.mxu0 %v4312
        %4524 = vmatprep.subr.bf16.mxu0 %v4318
        %4525 = vmatpush1.bf16.msra.mxu0 %v4317
        %4526 = vmatprep.subr.bf16.mxu0 %v4323
        %4527 = vmatpush1.bf16.msra.mxu0 %v4322
        %4528 = vmatprep.subr.bf16.mxu0 %v4328
        %4529 = vmatpush1.bf16.msra.mxu0 %v4327
        %4530 = vmatprep.subr.bf16.mxu0 %v4333
        %4531 = vmatpush1.bf16.msra.mxu0 %v4332
        %4532 = vmatprep.subr.bf16.mxu0 %v4338
        %4533 = vmatpush1.bf16.msra.mxu0 %v4337
        %4534 = vmatprep.mubr.bf16.mxu0 %v2415
        %4535 = vmatmul.mubr.bf16.gmra.mrb[0].mxu0 %v2414
        %v4536 = vpop.f32.mrb[0].mxu0
        %v4537 = vadd.f32 %v3564, %v4536
        %v4538 = vpop.f32.mrb[0].mxu0
        %v4539 = vadd.f32 %v3566, %v4538
        %v4540 = vpop.f32.mrb[0].mxu0
        %v4541 = vadd.f32 %v3568, %v4540
        %v4542 = vpop.f32.mrb[0].mxu0
        %v4543 = vadd.f32 %v3570, %v4542
        %4544 = vmatprep.mubr.bf16.mxu0 %v2418
        %4545 = vmatmul.mubr.bf16.gmra.mrb[0].mxu0 %v2417
        %v4546 = vpop.f32.mrb[0].mxu0
        %v4547 = vadd.f32 %v3574, %v4546
        %v4548 = vpop.f32.mrb[0].mxu0
        %v4549 = vadd.f32 %v3576, %v4548
        %v4550 = vpop.f32.mrb[0].mxu0
        %v4551 = vadd.f32 %v3578, %v4550
        %v4552 = vpop.f32.mrb[0].mxu0
        %v4553 = vadd.f32 %v3580, %v4552
        %4554 = vmatprep.mubr.bf16.mxu0 %v2421
        %4555 = vmatmul.mubr.bf16.gmra.mrb[0].mxu0 %v2420
        %v4556 = vpop.f32.mrb[0].mxu0
        %v4557 = vadd.f32 %v3584, %v4556
        %v4558 = vpop.f32.mrb[0].mxu0
        %v4559 = vadd.f32 %v3586, %v4558
        %v4560 = vpop.f32.mrb[0].mxu0
        %v4561 = vadd.f32 %v3588, %v4560
        %v4562 = vpop.f32.mrb[0].mxu0
        %v4563 = vadd.f32 %v3590, %v4562
        %4564 = vmatprep.mubr.bf16.mxu0 %v2424
        %4565 = vmatmul.mubr.bf16.gmra.mrb[0].mxu0 %v2423
        %v4566 = vpop.f32.mrb[0].mxu0
        %v4567 = vadd.f32 %v3594, %v4566
        %v4568 = vpop.f32.mrb[0].mxu0
        %v4569 = vadd.f32 %v3596, %v4568
        %v4570 = vpop.f32.mrb[0].mxu0
        %v4571 = vadd.f32 %v3598, %v4570
        %v4572 = vpop.f32.mrb[0].mxu0
        %v4573 = vadd.f32 %v3600, %v4572
        %4574 = vdwg.mxu0
        %4575 = vmatprep.subr.bf16.mxu0 %v4343
        %4576 = vmatpush1.bf16.msra.mxu0 %v4342
        %4577 = vmatprep.subr.bf16.mxu0 %v4348
        %4578 = vmatpush1.bf16.msra.mxu0 %v4347
        %4579 = vmatprep.subr.bf16.mxu0 %v4353
        %4580 = vmatpush1.bf16.msra.mxu0 %v4352
        %4581 = vmatprep.subr.bf16.mxu0 %v4358
        %4582 = vmatpush1.bf16.msra.mxu0 %v4357
        %4583 = vmatprep.subr.bf16.mxu0 %v4363
        %4584 = vmatpush1.bf16.msra.mxu0 %v4362
        %4585 = vmatprep.subr.bf16.mxu0 %v4368
        %4586 = vmatpush1.bf16.msra.mxu0 %v4367
        %4587 = vmatprep.subr.bf16.mxu0 %v4373
        %4588 = vmatpush1.bf16.msra.mxu0 %v4372
        %4589 = vmatprep.subr.bf16.mxu0 %v4378
        %4590 = vmatpush1.bf16.msra.mxu0 %v4377
        %4591 = vmatprep.subr.bf16.mxu0 0
        %4592 = vmatpush1.bf16.msra.mxu0 0
        %4593 = vmatprep.subr.bf16.mxu0 0
        %4594 = vmatpush1.bf16.msra.mxu0 0
        %4595 = vmatprep.subr.bf16.mxu0 0
        %4596 = vmatpush1.bf16.msra.mxu0 0
        %4597 = vmatprep.subr.bf16.mxu0 0
        %4598 = vmatpush1.bf16.msra.mxu0 0
        %4599 = vmatprep.subr.bf16.mxu0 0
        %4600 = vmatpush1.bf16.msra.mxu0 0
        %4601 = vmatprep.subr.bf16.mxu0 0
        %4602 = vmatpush1.bf16.msra.mxu0 0
        %4603 = vmatprep.subr.bf16.mxu0 0
        %4604 = vmatpush1.bf16.msra.mxu0 0
        %4605 = vmatprep.subr.bf16.mxu0 0
        %4606 = vmatpush1.bf16.msra.mxu0 0
        %4607 = vmatprep.mubr.bf16.mxu0 0
        %4608 = vmatmul.mubr.bf16.gmra.mrb[0].mxu0 %v2416
        %v4609 = vpop.f32.mrb[0].mxu0
        %v4610 = vadd.f32 %v4537, %v4609
        %v4611 = vpop.f32.mrb[0].mxu0
        %v4612 = vadd.f32 %v4539, %v4611
        %v4613 = vpop.f32.mrb[0].mxu0
        %v4614 = vadd.f32 %v4541, %v4613
        %v4615 = vpop.f32.mrb[0].mxu0
        %v4616 = vadd.f32 %v4543, %v4615
        %4617 = vmatprep.mubr.bf16.mxu0 0
        %4618 = vmatmul.mubr.bf16.gmra.mrb[0].mxu0 %v2419
        %v4619 = vpop.f32.mrb[0].mxu0
        %v4620 = vadd.f32 %v4547, %v4619
        %v4621 = vpop.f32.mrb[0].mxu0
        %v4622 = vadd.f32 %v4549, %v4621
        %v4623 = vpop.f32.mrb[0].mxu0
        %v4624 = vadd.f32 %v4551, %v4623
        %v4625 = vpop.f32.mrb[0].mxu0
        %v4626 = vadd.f32 %v4553, %v4625
        %4627 = vmatprep.mubr.bf16.mxu0 0
        %4628 = vmatmul.mubr.bf16.gmra.mrb[0].mxu0 %v2422
        %v4629 = vpop.f32.mrb[0].mxu0
        %v4630 = vadd.f32 %v4557, %v4629
        %v4631 = vpop.f32.mrb[0].mxu0
        %v4632 = vadd.f32 %v4559, %v4631
        %v4633 = vpop.f32.mrb[0].mxu0
        %v4634 = vadd.f32 %v4561, %v4633
        %v4635 = vpop.f32.mrb[0].mxu0
        %v4636 = vadd.f32 %v4563, %v4635
        %4637 = vmatprep.mubr.bf16.mxu0 0
        %4638 = vmatmul.mubr.bf16.gmra.mrb[0].mxu0 %v2425
        %v4639 = vpop.f32.mrb[0].mxu0
        %v4640 = vadd.f32 %v4567, %v4639
        %v4641 = vpop.f32.mrb[0].mxu0
        %v4642 = vadd.f32 %v4569, %v4641
        %v4643 = vpop.f32.mrb[0].mxu0
        %v4644 = vadd.f32 %v4571, %v4643
        %v4645 = vpop.f32.mrb[0].mxu0
        %v4646 = vadd.f32 %v4573, %v4645
        %4647 = vdwg.mxu0
        %4648 = vmatprep.subr.bf16.mxu0 %v4265
        %4649 = vmatpush1.bf16.msra.mxu0 %v4264
        %4650 = vmatprep.subr.bf16.mxu0 %v4270
        %4651 = vmatpush1.bf16.msra.mxu0 %v4269
        %4652 = vmatprep.subr.bf16.mxu0 %v4275
        %4653 = vmatpush1.bf16.msra.mxu0 %v4274
        %4654 = vmatprep.subr.bf16.mxu0 %v4280
        %4655 = vmatpush1.bf16.msra.mxu0 %v4279
        %4656 = vmatprep.subr.bf16.mxu0 %v4285
        %4657 = vmatpush1.bf16.msra.mxu0 %v4284
        %4658 = vmatprep.subr.bf16.mxu0 %v4290
        %4659 = vmatpush1.bf16.msra.mxu0 %v4289
        %4660 = vmatprep.subr.bf16.mxu0 %v4295
        %4661 = vmatpush1.bf16.msra.mxu0 %v4294
        %4662 = vmatprep.subr.bf16.mxu0 %v4300
        %4663 = vmatpush1.bf16.msra.mxu0 %v4299
        %4664 = vmatprep.subr.bf16.mxu0 %v4305
        %4665 = vmatpush1.bf16.msra.mxu0 %v4304
        %4666 = vmatprep.subr.bf16.mxu0 %v4310
        %4667 = vmatpush1.bf16.msra.mxu0 %v4309
        %4668 = vmatprep.subr.bf16.mxu0 %v4315
        %4669 = vmatpush1.bf16.msra.mxu0 %v4314
        %4670 = vmatprep.subr.bf16.mxu0 %v4320
        %4671 = vmatpush1.bf16.msra.mxu0 %v4319
        %4672 = vmatprep.subr.bf16.mxu0 %v4325
        %4673 = vmatpush1.bf16.msra.mxu0 %v4324
        %4674 = vmatprep.subr.bf16.mxu0 %v4330
        %4675 = vmatpush1.bf16.msra.mxu0 %v4329
        %4676 = vmatprep.subr.bf16.mxu0 %v4335
        %4677 = vmatpush1.bf16.msra.mxu0 %v4334
        %4678 = vmatprep.subr.bf16.mxu0 %v4340
        %4679 = vmatpush1.bf16.msra.mxu0 %v4339
        %4680 = vmatprep.mubr.bf16.mxu0 %v2415
        %4681 = vmatmul.mubr.bf16.gmra.mrb[0].mxu0 %v2414
        %v4682 = vpop.f32.mrb[0].mxu0
        %v4683 = vadd.f32 %v3710, %v4682
        %v4684 = vpop.f32.mrb[0].mxu0
        %v4685 = vadd.f32 %v3712, %v4684
        %v4686 = vpop.f32.mrb[0].mxu0
        %v4687 = vadd.f32 %v3714, %v4686
        %v4688 = vpop.f32.mrb[0].mxu0
        %v4689 = vadd.f32 %v3716, %v4688
        %4690 = vmatprep.mubr.bf16.mxu0 %v2418
        %4691 = vmatmul.mubr.bf16.gmra.mrb[0].mxu0 %v2417
        %v4692 = vpop.f32.mrb[0].mxu0
        %v4693 = vadd.f32 %v3720, %v4692
        %v4694 = vpop.f32.mrb[0].mxu0
        %v4695 = vadd.f32 %v3722, %v4694
        %v4696 = vpop.f32.mrb[0].mxu0
        %v4697 = vadd.f32 %v3724, %v4696
        %v4698 = vpop.f32.mrb[0].mxu0
        %v4699 = vadd.f32 %v3726, %v4698
        %4700 = vmatprep.mubr.bf16.mxu0 %v2421
        %4701 = vmatmul.mubr.bf16.gmra.mrb[0].mxu0 %v2420
        %v4702 = vpop.f32.mrb[0].mxu0
        %v4703 = vadd.f32 %v3730, %v4702
        %v4704 = vpop.f32.mrb[0].mxu0
        %v4705 = vadd.f32 %v3732, %v4704
        %v4706 = vpop.f32.mrb[0].mxu0
        %v4707 = vadd.f32 %v3734, %v4706
        %v4708 = vpop.f32.mrb[0].mxu0
        %v4709 = vadd.f32 %v3736, %v4708
        %4710 = vmatprep.mubr.bf16.mxu0 %v2424
        %4711 = vmatmul.mubr.bf16.gmra.mrb[0].mxu0 %v2423
        %v4712 = vpop.f32.mrb[0].mxu0
        %v4713 = vadd.f32 %v3740, %v4712
        %v4714 = vpop.f32.mrb[0].mxu0
        %v4715 = vadd.f32 %v3742, %v4714
        %v4716 = vpop.f32.mrb[0].mxu0
        %v4717 = vadd.f32 %v3744, %v4716
        %v4718 = vpop.f32.mrb[0].mxu0
        %v4719 = vadd.f32 %v3746, %v4718
        %4720 = vdwg.mxu0
        %4721 = vmatprep.subr.bf16.mxu0 %v4345
        %4722 = vmatpush1.bf16.msra.mxu0 %v4344
        %4723 = vmatprep.subr.bf16.mxu0 %v4350
        %4724 = vmatpush1.bf16.msra.mxu0 %v4349
        %4725 = vmatprep.subr.bf16.mxu0 %v4355
        %4726 = vmatpush1.bf16.msra.mxu0 %v4354
        %4727 = vmatprep.subr.bf16.mxu0 %v4360
        %4728 = vmatpush1.bf16.msra.mxu0 %v4359
        %4729 = vmatprep.subr.bf16.mxu0 %v4365
        %4730 = vmatpush1.bf16.msra.mxu0 %v4364
        %4731 = vmatprep.subr.bf16.mxu0 %v4370
        %4732 = vmatpush1.bf16.msra.mxu0 %v4369
        %4733 = vmatprep.subr.bf16.mxu0 %v4375
        %4734 = vmatpush1.bf16.msra.mxu0 %v4374
        %4735 = vmatprep.subr.bf16.mxu0 %v4380
        %4736 = vmatpush1.bf16.msra.mxu0 %v4379
        %4737 = vmatprep.subr.bf16.mxu0 0
        %4738 = vmatpush1.bf16.msra.mxu0 0
        %4739 = vmatprep.subr.bf16.mxu0 0
        %4740 = vmatpush1.bf16.msra.mxu0 0
        %4741 = vmatprep.subr.bf16.mxu0 0
        %4742 = vmatpush1.bf16.msra.mxu0 0
        %4743 = vmatprep.subr.bf16.mxu0 0
        %4744 = vmatpush1.bf16.msra.mxu0 0
        %4745 = vmatprep.subr.bf16.mxu0 0
        %4746 = vmatpush1.bf16.msra.mxu0 0
        %4747 = vmatprep.subr.bf16.mxu0 0
        %4748 = vmatpush1.bf16.msra.mxu0 0
        %4749 = vmatprep.subr.bf16.mxu0 0
        %4750 = vmatpush1.bf16.msra.mxu0 0
        %4751 = vmatprep.subr.bf16.mxu0 0
        %4752 = vmatpush1.bf16.msra.mxu0 0
        %4753 = vmatprep.mubr.bf16.mxu0 0
        %4754 = vmatmul.mubr.bf16.gmra.mrb[0].mxu0 %v2416
        %v4755 = vpop.f32.mrb[0].mxu0
        %v4756 = vadd.f32 %v4683, %v4755
        %v4757 = vpop.f32.mrb[0].mxu0
        %v4758 = vadd.f32 %v4685, %v4757
        %v4759 = vpop.f32.mrb[0].mxu0
        %v4760 = vadd.f32 %v4687, %v4759
        %v4761 = vpop.f32.mrb[0].mxu0
        %v4762 = vadd.f32 %v4689, %v4761
        %4763 = vmatprep.mubr.bf16.mxu0 0
        %4764 = vmatmul.mubr.bf16.gmra.mrb[0].mxu0 %v2419
        %v4765 = vpop.f32.mrb[0].mxu0
        %v4766 = vadd.f32 %v4693, %v4765
        %v4767 = vpop.f32.mrb[0].mxu0
        %v4768 = vadd.f32 %v4695, %v4767
        %v4769 = vpop.f32.mrb[0].mxu0
        %v4770 = vadd.f32 %v4697, %v4769
        %v4771 = vpop.f32.mrb[0].mxu0
        %v4772 = vadd.f32 %v4699, %v4771
        %4773 = vmatprep.mubr.bf16.mxu0 0
        %4774 = vmatmul.mubr.bf16.gmra.mrb[0].mxu0 %v2422
        %v4775 = vpop.f32.mrb[0].mxu0
        %v4776 = vadd.f32 %v4703, %v4775
        %v4777 = vpop.f32.mrb[0].mxu0
        %v4778 = vadd.f32 %v4705, %v4777
        %v4779 = vpop.f32.mrb[0].mxu0
        %v4780 = vadd.f32 %v4707, %v4779
        %v4781 = vpop.f32.mrb[0].mxu0
        %v4782 = vadd.f32 %v4709, %v4781
        %4783 = vmatprep.mubr.bf16.mxu0 0
        %4784 = vmatmul.mubr.bf16.gmra.mrb[0].mxu0 %v2425
        %v4785 = vpop.f32.mrb[0].mxu0
        %v4786 = vadd.f32 %v4713, %v4785
        %v4787 = vpop.f32.mrb[0].mxu0
        %v4788 = vadd.f32 %v4715, %v4787
        %v4789 = vpop.f32.mrb[0].mxu0
        %v4790 = vadd.f32 %v4717, %v4789
        %v4791 = vpop.f32.mrb[0].mxu0
        %v4792 = vadd.f32 %v4719, %v4791
        %4793 = vdwg.mxu0
        %4794 = vmatprep.subr.bf16.mxu0 0
        %4795 = vmatpush1.bf16.msra.mxu0 %v4266
        %4796 = vmatprep.subr.bf16.mxu0 0
        %4797 = vmatpush1.bf16.msra.mxu0 %v4271
        %4798 = vmatprep.subr.bf16.mxu0 0
        %4799 = vmatpush1.bf16.msra.mxu0 %v4276
        %4800 = vmatprep.subr.bf16.mxu0 0
        %4801 = vmatpush1.bf16.msra.mxu0 %v4281
        %4802 = vmatprep.subr.bf16.mxu0 0
        %4803 = vmatpush1.bf16.msra.mxu0 %v4286
        %4804 = vmatprep.subr.bf16.mxu0 0
        %4805 = vmatpush1.bf16.msra.mxu0 %v4291
        %4806 = vmatprep.subr.bf16.mxu0 0
        %4807 = vmatpush1.bf16.msra.mxu0 %v4296
        %4808 = vmatprep.subr.bf16.mxu0 0
        %4809 = vmatpush1.bf16.msra.mxu0 %v4301
        %4810 = vmatprep.subr.bf16.mxu0 0
        %4811 = vmatpush1.bf16.msra.mxu0 %v4306
        %4812 = vmatprep.subr.bf16.mxu0 0
        %4813 = vmatpush1.bf16.msra.mxu0 %v4311
        %4814 = vmatprep.subr.bf16.mxu0 0
        %4815 = vmatpush1.bf16.msra.mxu0 %v4316
        %4816 = vmatprep.subr.bf16.mxu0 0
        %4817 = vmatpush1.bf16.msra.mxu0 %v4321
        %4818 = vmatprep.subr.bf16.mxu0 0
        %4819 = vmatpush1.bf16.msra.mxu0 %v4326
        %4820 = vmatprep.subr.bf16.mxu0 0
        %4821 = vmatpush1.bf16.msra.mxu0 %v4331
        %4822 = vmatprep.subr.bf16.mxu0 0
        %4823 = vmatpush1.bf16.msra.mxu0 %v4336
        %4824 = vmatprep.subr.bf16.mxu0 0
        %4825 = vmatpush1.bf16.msra.mxu0 %v4341
        %4826 = vmatprep.mubr.bf16.mxu0 %v2415
        %4827 = vmatmul.mubr.bf16.gmra.mrb[0].mxu0 %v2414
        %v4828 = vpop.f32.mrb[0].mxu0
        %v4829 = vadd.f32 %v3848, %v4828
        %v4830 = vpop.f32.mrb[0].mxu0
        %v4831 = vpop.f32.mrb[0].mxu0
        %v4832 = vadd.f32 %v3851, %v4831
        %v4833 = vpop.f32.mrb[0].mxu0
        %4834 = vmatprep.mubr.bf16.mxu0 %v2418
        %4835 = vmatmul.mubr.bf16.gmra.mrb[0].mxu0 %v2417
        %v4836 = vpop.f32.mrb[0].mxu0
        %v4837 = vadd.f32 %v3856, %v4836
        %v4838 = vpop.f32.mrb[0].mxu0
        %v4839 = vpop.f32.mrb[0].mxu0
        %v4840 = vadd.f32 %v3859, %v4839
        %v4841 = vpop.f32.mrb[0].mxu0
        %4842 = vmatprep.mubr.bf16.mxu0 %v2421
        %4843 = vmatmul.mubr.bf16.gmra.mrb[0].mxu0 %v2420
        %v4844 = vpop.f32.mrb[0].mxu0
        %v4845 = vadd.f32 %v3864, %v4844
        %v4846 = vpop.f32.mrb[0].mxu0
        %v4847 = vpop.f32.mrb[0].mxu0
        %v4848 = vadd.f32 %v3867, %v4847
        %v4849 = vpop.f32.mrb[0].mxu0
        %4850 = vmatprep.mubr.bf16.mxu0 %v2424
        %4851 = vmatmul.mubr.bf16.gmra.mrb[0].mxu0 %v2423
        %v4852 = vpop.f32.mrb[0].mxu0
        %v4853 = vadd.f32 %v3872, %v4852
        %v4854 = vpop.f32.mrb[0].mxu0
        %v4855 = vpop.f32.mrb[0].mxu0
        %v4856 = vadd.f32 %v3875, %v4855
        %v4857 = vpop.f32.mrb[0].mxu0
        %4858 = vdwg.mxu0
        %4859 = vmatprep.subr.bf16.mxu0 0
        %4860 = vmatpush1.bf16.msra.mxu0 %v4346
        %4861 = vmatprep.subr.bf16.mxu0 0
        %4862 = vmatpush1.bf16.msra.mxu0 %v4351
        %4863 = vmatprep.subr.bf16.mxu0 0
        %4864 = vmatpush1.bf16.msra.mxu0 %v4356
        %4865 = vmatprep.subr.bf16.mxu0 0
        %4866 = vmatpush1.bf16.msra.mxu0 %v4361
        %4867 = vmatprep.subr.bf16.mxu0 0
        %4868 = vmatpush1.bf16.msra.mxu0 %v4366
        %4869 = vmatprep.subr.bf16.mxu0 0
        %4870 = vmatpush1.bf16.msra.mxu0 %v4371
        %4871 = vmatprep.subr.bf16.mxu0 0
        %4872 = vmatpush1.bf16.msra.mxu0 %v4376
        %4873 = vmatprep.subr.bf16.mxu0 0
        %4874 = vmatpush1.bf16.msra.mxu0 %v4381
        %4875 = vmatprep.subr.bf16.mxu0 0
        %4876 = vmatpush1.bf16.msra.mxu0 0
        %4877 = vmatprep.subr.bf16.mxu0 0
        %4878 = vmatpush1.bf16.msra.mxu0 0
        %4879 = vmatprep.subr.bf16.mxu0 0
        %4880 = vmatpush1.bf16.msra.mxu0 0
        %4881 = vmatprep.subr.bf16.mxu0 0
        %4882 = vmatpush1.bf16.msra.mxu0 0
        %4883 = vmatprep.subr.bf16.mxu0 0
        %4884 = vmatpush1.bf16.msra.mxu0 0
        %4885 = vmatprep.subr.bf16.mxu0 0
        %4886 = vmatpush1.bf16.msra.mxu0 0
        %4887 = vmatprep.subr.bf16.mxu0 0
        %4888 = vmatpush1.bf16.msra.mxu0 0
        %4889 = vmatprep.subr.bf16.mxu0 0
        %4890 = vmatpush1.bf16.msra.mxu0 0
        %4891 = vmatprep.mubr.bf16.mxu0 0
        %4892 = vmatmul.mubr.bf16.gmra.mrb[0].mxu0 %v2416
        %v4893 = vpop.f32.mrb[0].mxu0
        %v4894 = vadd.f32 %v4829, %v4893
        %v4895 = vpop.f32.mrb[0].mxu0
        %v4896 = vpop.f32.mrb[0].mxu0
        %v4897 = vadd.f32 %v4832, %v4896
        %v4898 = vpop.f32.mrb[0].mxu0
        %4899 = vmatprep.mubr.bf16.mxu0 0
        %4900 = vmatmul.mubr.bf16.gmra.mrb[0].mxu0 %v2419
        %v4901 = vpop.f32.mrb[0].mxu0
        %v4902 = vadd.f32 %v4837, %v4901
        %v4903 = vpop.f32.mrb[0].mxu0
        %v4904 = vpop.f32.mrb[0].mxu0
        %v4905 = vadd.f32 %v4840, %v4904
        %v4906 = vpop.f32.mrb[0].mxu0
        %4907 = vmatprep.mubr.bf16.mxu0 0
        %4908 = vmatmul.mubr.bf16.gmra.mrb[0].mxu0 %v2422
        %v4909 = vpop.f32.mrb[0].mxu0
        %v4910 = vadd.f32 %v4845, %v4909
        %v4911 = vpop.f32.mrb[0].mxu0
        %v4912 = vpop.f32.mrb[0].mxu0
        %v4913 = vadd.f32 %v4848, %v4912
        %v4914 = vpop.f32.mrb[0].mxu0
        %4915 = vmatprep.mubr.bf16.mxu0 0
        %4916 = vmatmul.mubr.bf16.gmra.mrb[0].mxu0 %v2425
        %v4917 = vpop.f32.mrb[0].mxu0
        %v4918 = vadd.f32 %v4853, %v4917
        %v4919 = vpop.f32.mrb[0].mxu0
        %v4920 = vpop.f32.mrb[0].mxu0
        %v4921 = vadd.f32 %v4856, %v4920
        %v4922 = vpop.f32.mrb[0].mxu0
        %4923 = vdwg.mxu0
        %v4924 = vld [vmem:[#allocation3] sm:$0xfc]
        %v4925 = vld [vmem:[#allocation3 + $0x8] sm:$0xfc]
        %v4926 = vld [vmem:[#allocation3 + $0x10] sm:$0xfc]
        %v4927 = vld [vmem:[#allocation3 + $0xa8] sm:$0xff]
        %v4928 = vld [vmem:[#allocation3 + $0xb0] sm:$0xff]
        %v4929 = vld [vmem:[#allocation3 + $0xb8] sm:$0xff]
        %v4930 = vpack.c.bf16 %v2393, %v4924
        %v4931 = vpack.c.bf16 %v2394, %v4925
        %v4932 = vpack.c.bf16 %v2395, %v4926
        %v4933 = vpack.c.bf16 %v4927, %v2408
        %v4934 = vpack.c.bf16 %v4928, %v2409
        %v4935 = vpack.c.bf16 %v4929, %v2410
        %s4936 = scalar_lea.vmem [#allocation11], 1920
        %v4937 = vld [vmem:[%s4936] sm:$0xff]
        %v4938 = vld [vmem:[%s4936 + $0x8] sm:$0xff]
        %v4939 = vld [vmem:[%s4936 + $0x10] sm:$0xf]
        %v4940 = vld [vmem:[%s4936 + $0x14] sm:$0xff]
        %v4941 = vld [vmem:[%s4936 + $0x1c] sm:$0xff]
        %v4942 = vld [vmem:[%s4936 + $0x24] sm:$0xf]
        %v4943 = vld [vmem:[%s4936 + $0x28] sm:$0xff]
        %v4944 = vld [vmem:[%s4936 + $0x30] sm:$0xff]
        %v4945 = vld [vmem:[%s4936 + $0x38] sm:$0xf]
        %v4946 = vld [vmem:[%s4936 + $0x3c] sm:$0xff]
        %v4947 = vld [vmem:[%s4936 + $0x44] sm:$0xff]
        %v4948 = vld [vmem:[%s4936 + $0x4c] sm:$0xf]
        %v4949 = vld [vmem:[%s4936 + $0x50] sm:$0xff]
        %v4950 = vld [vmem:[%s4936 + $0x58] sm:$0xff]
        %v4951 = vld [vmem:[%s4936 + $0x60] sm:$0xf]
        %v4952 = vld [vmem:[%s4936 + $0x64] sm:$0xff]
        %v4953 = vld [vmem:[%s4936 + $0x6c] sm:$0xff]
        %v4954 = vld [vmem:[%s4936 + $0x74] sm:$0xf]
        %v4955 = vld [vmem:[%s4936 + $0x78] sm:$0xff]
        %v4956 = vld [vmem:[%s4936 + $0x80] sm:$0xff]
        %v4957 = vld [vmem:[%s4936 + $0x88] sm:$0xf]
        %v4958 = vld [vmem:[%s4936 + $0x8c] sm:$0xff]
        %v4959 = vld [vmem:[%s4936 + $0x94] sm:$0xff]
        %v4960 = vld [vmem:[%s4936 + $0x9c] sm:$0xf]
        %v4961 = vld [vmem:[%s4936 + $0xa0] sm:$0xff]
        %v4962 = vld [vmem:[%s4936 + $0xa8] sm:$0xff]
        %v4963 = vld [vmem:[%s4936 + $0xb0] sm:$0xf]
        %v4964 = vld [vmem:[%s4936 + $0xb4] sm:$0xff]
        %v4965 = vld [vmem:[%s4936 + $0xbc] sm:$0xff]
        %v4966 = vld [vmem:[%s4936 + $0xc4] sm:$0xf]
        %v4967 = vld [vmem:[%s4936 + $0xc8] sm:$0xff]
        %v4968 = vld [vmem:[%s4936 + $0xd0] sm:$0xff]
        %v4969 = vld [vmem:[%s4936 + $0xd8] sm:$0xf]
        %v4970 = vld [vmem:[%s4936 + $0xdc] sm:$0xff]
        %v4971 = vld [vmem:[%s4936 + $0xe4] sm:$0xff]
        %v4972 = vld [vmem:[%s4936 + $0xec] sm:$0xf]
        %v4973 = vld [vmem:[%s4936 + $0xf0] sm:$0xff]
        %v4974 = vld [vmem:[%s4936 + $0xf8] sm:$0xff]
        %v4975 = vld [vmem:[%s4936 + $0x100] sm:$0xf]
        %v4976 = vld [vmem:[%s4936 + $0x104] sm:$0xff]
        %v4977 = vld [vmem:[%s4936 + $0x10c] sm:$0xff]
        %v4978 = vld [vmem:[%s4936 + $0x114] sm:$0xf]
        %v4979 = vld [vmem:[%s4936 + $0x118] sm:$0xff]
        %v4980 = vld [vmem:[%s4936 + $0x120] sm:$0xff]
        %v4981 = vld [vmem:[%s4936 + $0x128] sm:$0xf]
        %v4982 = vld [vmem:[%s4936 + $0x12c] sm:$0xff]
        %v4983 = vld [vmem:[%s4936 + $0x134] sm:$0xff]
        %v4984 = vld [vmem:[%s4936 + $0x13c] sm:$0xf]
        %v4985 = vld [vmem:[%s4936 + $0x140] sm:$0xff]
        %v4986 = vld [vmem:[%s4936 + $0x148] sm:$0xff]
        %v4987 = vld [vmem:[%s4936 + $0x150] sm:$0xf]
        %v4988 = vld [vmem:[%s4936 + $0x154] sm:$0xff]
        %v4989 = vld [vmem:[%s4936 + $0x15c] sm:$0xff]
        %v4990 = vld [vmem:[%s4936 + $0x164] sm:$0xf]
        %v4991 = vld [vmem:[%s4936 + $0x168] sm:$0xff]
        %v4992 = vld [vmem:[%s4936 + $0x170] sm:$0xff]
        %v4993 = vld [vmem:[%s4936 + $0x178] sm:$0xf]
        %v4994 = vld [vmem:[%s4936 + $0x17c] sm:$0xff]
        %v4995 = vld [vmem:[%s4936 + $0x184] sm:$0xff]
        %v4996 = vld [vmem:[%s4936 + $0x18c] sm:$0xf]
        %v4997 = vld [vmem:[%s4936 + $0x190] sm:$0xff]
        %v4998 = vld [vmem:[%s4936 + $0x198] sm:$0xff]
        %v4999 = vld [vmem:[%s4936 + $0x1a0] sm:$0xf]
        %v5000 = vld [vmem:[%s4936 + $0x1a4] sm:$0xff]
        %v5001 = vld [vmem:[%s4936 + $0x1ac] sm:$0xff]
        %v5002 = vld [vmem:[%s4936 + $0x1b4] sm:$0xf]
        %v5003 = vld [vmem:[%s4936 + $0x1b8] sm:$0xff]
        %v5004 = vld [vmem:[%s4936 + $0x1c0] sm:$0xff]
        %v5005 = vld [vmem:[%s4936 + $0x1c8] sm:$0xf]
        %v5006 = vld [vmem:[%s4936 + $0x1cc] sm:$0xff]
        %v5007 = vld [vmem:[%s4936 + $0x1d4] sm:$0xff]
        %v5008 = vld [vmem:[%s4936 + $0x1dc] sm:$0xf]
        %v5009 = vld [vmem:[%s4936 + $0x1e0] sm:$0xff]
        %v5010 = vld [vmem:[%s4936 + $0x1e8] sm:$0xff]
        %v5011 = vld [vmem:[%s4936 + $0x1f0] sm:$0xf]
        %v5012 = vld [vmem:[%s4936 + $0x1f4] sm:$0xff]
        %v5013 = vld [vmem:[%s4936 + $0x1fc] sm:$0xff]
        %v5014 = vld [vmem:[%s4936 + $0x204] sm:$0xf]
        %v5015 = vld [vmem:[%s4936 + $0x208] sm:$0xff]
        %v5016 = vld [vmem:[%s4936 + $0x210] sm:$0xff]
        %v5017 = vld [vmem:[%s4936 + $0x218] sm:$0xf]
        %v5018 = vld [vmem:[%s4936 + $0x21c] sm:$0xff]
        %v5019 = vld [vmem:[%s4936 + $0x224] sm:$0xff]
        %v5020 = vld [vmem:[%s4936 + $0x22c] sm:$0xf]
        %v5021 = vld [vmem:[%s4936 + $0x230] sm:$0xff]
        %v5022 = vld [vmem:[%s4936 + $0x238] sm:$0xff]
        %v5023 = vld [vmem:[%s4936 + $0x240] sm:$0xf]
        %v5024 = vld [vmem:[%s4936 + $0x244] sm:$0xff]
        %v5025 = vld [vmem:[%s4936 + $0x24c] sm:$0xff]
        %v5026 = vld [vmem:[%s4936 + $0x254] sm:$0xf]
        %v5027 = vld [vmem:[%s4936 + $0x258] sm:$0xff]
        %v5028 = vld [vmem:[%s4936 + $0x260] sm:$0xff]
        %v5029 = vld [vmem:[%s4936 + $0x268] sm:$0xf]
        %v5030 = vld [vmem:[%s4936 + $0x26c] sm:$0xff]
        %v5031 = vld [vmem:[%s4936 + $0x274] sm:$0xff]
        %v5032 = vld [vmem:[%s4936 + $0x27c] sm:$0xf]
        %v5033 = vld [vmem:[%s4936 + $0x280] sm:$0xff]
        %v5034 = vld [vmem:[%s4936 + $0x288] sm:$0xff]
        %v5035 = vld [vmem:[%s4936 + $0x290] sm:$0xf]
        %v5036 = vld [vmem:[%s4936 + $0x294] sm:$0xff]
        %v5037 = vld [vmem:[%s4936 + $0x29c] sm:$0xff]
        %v5038 = vld [vmem:[%s4936 + $0x2a4] sm:$0xf]
        %v5039 = vld [vmem:[%s4936 + $0x2a8] sm:$0xff]
        %v5040 = vld [vmem:[%s4936 + $0x2b0] sm:$0xff]
        %v5041 = vld [vmem:[%s4936 + $0x2b8] sm:$0xf]
        %v5042 = vld [vmem:[%s4936 + $0x2bc] sm:$0xff]
        %v5043 = vld [vmem:[%s4936 + $0x2c4] sm:$0xff]
        %v5044 = vld [vmem:[%s4936 + $0x2cc] sm:$0xf]
        %v5045 = vld [vmem:[%s4936 + $0x2d0] sm:$0xff]
        %v5046 = vld [vmem:[%s4936 + $0x2d8] sm:$0xff]
        %v5047 = vld [vmem:[%s4936 + $0x2e0] sm:$0xf]
        %v5048 = vld [vmem:[%s4936 + $0x2e4] sm:$0xff]
        %v5049 = vld [vmem:[%s4936 + $0x2ec] sm:$0xff]
        %v5050 = vld [vmem:[%s4936 + $0x2f4] sm:$0xf]
        %v5051 = vld [vmem:[%s4936 + $0x2f8] sm:$0xff]
        %v5052 = vld [vmem:[%s4936 + $0x300] sm:$0xff]
        %v5053 = vld [vmem:[%s4936 + $0x308] sm:$0xf]
        %v5054 = vld [vmem:[%s4936 + $0x30c] sm:$0xff]
        %v5055 = vld [vmem:[%s4936 + $0x314] sm:$0xff]
        %v5056 = vld [vmem:[%s4936 + $0x31c] sm:$0xf]
        %v5057 = vld [vmem:[%s4936 + $0x320] sm:$0xff]
        %v5058 = vld [vmem:[%s4936 + $0x328] sm:$0xff]
        %v5059 = vld [vmem:[%s4936 + $0x330] sm:$0xf]
        %v5060 = vld [vmem:[%s4936 + $0x334] sm:$0xff]
        %v5061 = vld [vmem:[%s4936 + $0x33c] sm:$0xff]
        %v5062 = vld [vmem:[%s4936 + $0x344] sm:$0xf]
        %v5063 = vld [vmem:[%s4936 + $0x348] sm:$0xff]
        %v5064 = vld [vmem:[%s4936 + $0x350] sm:$0xff]
        %v5065 = vld [vmem:[%s4936 + $0x358] sm:$0xf]
        %v5066 = vld [vmem:[%s4936 + $0x35c] sm:$0xff]
        %v5067 = vld [vmem:[%s4936 + $0x364] sm:$0xff]
        %v5068 = vld [vmem:[%s4936 + $0x36c] sm:$0xf]
        %v5069 = vld [vmem:[%s4936 + $0x370] sm:$0xff]
        %v5070 = vld [vmem:[%s4936 + $0x378] sm:$0xff]
        %v5071 = vld [vmem:[%s4936 + $0x380] sm:$0xf]
        %v5072 = vld [vmem:[%s4936 + $0x384] sm:$0xff]
        %v5073 = vld [vmem:[%s4936 + $0x38c] sm:$0xff]
        %v5074 = vld [vmem:[%s4936 + $0x394] sm:$0xf]
        %v5075 = vld [vmem:[%s4936 + $0x398] sm:$0xff]
        %v5076 = vld [vmem:[%s4936 + $0x3a0] sm:$0xff]
        %v5077 = vld [vmem:[%s4936 + $0x3a8] sm:$0xf]
        %v5078 = vld [vmem:[%s4936 + $0x3ac] sm:$0xff]
        %v5079 = vld [vmem:[%s4936 + $0x3b4] sm:$0xff]
        %v5080 = vld [vmem:[%s4936 + $0x3bc] sm:$0xf]
        %v5093 = vrot.slane %v4930, 1
        %v5094 = vrot.slane %v2417, 1
        %v5095 = vsel %vm1884, %v5093, %v5094
        %v5096 = vrot.slane %v4931, 1
        %v5097 = vrot.slane %v2418, 1
        %v5098 = vsel %vm1884, %v5096, %v5097
        %v5099 = vrot.slane %v4932, 1
        %v5100 = vrot.slane %v2419, 1
        %v5101 = vsel %vm1884, %v5099, %v5100
        %v5102 = vrot.slane %v2420, 1
        %v5103 = vsel %vm1884, %v5094, %v5102
        %v5104 = vrot.slane %v2421, 1
        %v5105 = vsel %vm1884, %v5097, %v5104
        %v5106 = vrot.slane %v2422, 1
        %v5107 = vsel %vm1884, %v5100, %v5106
        %v5108 = vrot.slane %v4933, 1
        %v5109 = vsel %vm1884, %v5102, %v5108
        %v5110 = vrot.slane %v4934, 1
        %v5111 = vsel %vm1884, %v5104, %v5110
        %v5112 = vrot.slane %v4935, 1
        %v5113 = vsel %vm1884, %v5106, %v5112
        %v5270 = vunpack.c.l.b16 %v4937
        %v5271 = vunpack.c.h.b16 %v4937
        %v5272 = vunpack.c.l.b16 %v4938
        %v5273 = vunpack.c.h.b16 %v4938
        %v5274 = vunpack.c.l.b16 %v4939
        %v5275 = vunpack.c.l.b16 %v4940
        %v5276 = vunpack.c.h.b16 %v4940
        %v5277 = vunpack.c.l.b16 %v4941
        %v5278 = vunpack.c.h.b16 %v4941
        %v5279 = vunpack.c.l.b16 %v4942
        %v5280 = vunpack.c.l.b16 %v4943
        %v5281 = vunpack.c.h.b16 %v4943
        %v5282 = vunpack.c.l.b16 %v4944
        %v5283 = vunpack.c.h.b16 %v4944
        %v5284 = vunpack.c.l.b16 %v4945
        %v5285 = vunpack.c.l.b16 %v4946
        %v5286 = vunpack.c.h.b16 %v4946
        %v5287 = vunpack.c.l.b16 %v4947
        %v5288 = vunpack.c.h.b16 %v4947
        %v5289 = vunpack.c.l.b16 %v4948
        %v5290 = vunpack.c.l.b16 %v4949
        %v5291 = vunpack.c.h.b16 %v4949
        %v5292 = vunpack.c.l.b16 %v4950
        %v5293 = vunpack.c.h.b16 %v4950
        %v5294 = vunpack.c.l.b16 %v4951
        %v5295 = vunpack.c.l.b16 %v4952
        %v5296 = vunpack.c.h.b16 %v4952
        %v5297 = vunpack.c.l.b16 %v4953
        %v5298 = vunpack.c.h.b16 %v4953
        %v5299 = vunpack.c.l.b16 %v4954
        %v5300 = vunpack.c.l.b16 %v4955
        %v5301 = vunpack.c.h.b16 %v4955
        %v5302 = vunpack.c.l.b16 %v4956
        %v5303 = vunpack.c.h.b16 %v4956
        %v5304 = vunpack.c.l.b16 %v4957
        %v5305 = vunpack.c.l.b16 %v4958
        %v5306 = vunpack.c.h.b16 %v4958
        %v5307 = vunpack.c.l.b16 %v4959
        %v5308 = vunpack.c.h.b16 %v4959
        %v5309 = vunpack.c.l.b16 %v4960
        %v5310 = vunpack.c.l.b16 %v4961
        %v5311 = vunpack.c.h.b16 %v4961
        %v5312 = vunpack.c.l.b16 %v4962
        %v5313 = vunpack.c.h.b16 %v4962
        %v5314 = vunpack.c.l.b16 %v4963
        %v5315 = vunpack.c.l.b16 %v4964
        %v5316 = vunpack.c.h.b16 %v4964
        %v5317 = vunpack.c.l.b16 %v4965
        %v5318 = vunpack.c.h.b16 %v4965
        %v5319 = vunpack.c.l.b16 %v4966
        %v5320 = vunpack.c.l.b16 %v4967
        %v5321 = vunpack.c.h.b16 %v4967
        %v5322 = vunpack.c.l.b16 %v4968
        %v5323 = vunpack.c.h.b16 %v4968
        %v5324 = vunpack.c.l.b16 %v4969
        %v5325 = vunpack.c.l.b16 %v4970
        %v5326 = vunpack.c.h.b16 %v4970
        %v5327 = vunpack.c.l.b16 %v4971
        %v5328 = vunpack.c.h.b16 %v4971
        %v5329 = vunpack.c.l.b16 %v4972
        %v5330 = vunpack.c.l.b16 %v4973
        %v5331 = vunpack.c.h.b16 %v4973
        %v5332 = vunpack.c.l.b16 %v4974
        %v5333 = vunpack.c.h.b16 %v4974
        %v5334 = vunpack.c.l.b16 %v4975
        %v5335 = vunpack.c.l.b16 %v4976
        %v5336 = vunpack.c.h.b16 %v4976
        %v5337 = vunpack.c.l.b16 %v4977
        %v5338 = vunpack.c.h.b16 %v4977
        %v5339 = vunpack.c.l.b16 %v4978
        %v5340 = vunpack.c.l.b16 %v4979
        %v5341 = vunpack.c.h.b16 %v4979
        %v5342 = vunpack.c.l.b16 %v4980
        %v5343 = vunpack.c.h.b16 %v4980
        %v5344 = vunpack.c.l.b16 %v4981
        %v5345 = vunpack.c.l.b16 %v4982
        %v5346 = vunpack.c.h.b16 %v4982
        %v5347 = vunpack.c.l.b16 %v4983
        %v5348 = vunpack.c.h.b16 %v4983
        %v5349 = vunpack.c.l.b16 %v4984
        %v5350 = vunpack.c.l.b16 %v4985
        %v5351 = vunpack.c.h.b16 %v4985
        %v5352 = vunpack.c.l.b16 %v4986
        %v5353 = vunpack.c.h.b16 %v4986
        %v5354 = vunpack.c.l.b16 %v4987
        %v5355 = vunpack.c.l.b16 %v4988
        %v5356 = vunpack.c.h.b16 %v4988
        %v5357 = vunpack.c.l.b16 %v4989
        %v5358 = vunpack.c.h.b16 %v4989
        %v5359 = vunpack.c.l.b16 %v4990
        %v5360 = vunpack.c.l.b16 %v4991
        %v5361 = vunpack.c.h.b16 %v4991
        %v5362 = vunpack.c.l.b16 %v4992
        %v5363 = vunpack.c.h.b16 %v4992
        %v5364 = vunpack.c.l.b16 %v4993
        %v5365 = vunpack.c.l.b16 %v4994
        %v5366 = vunpack.c.h.b16 %v4994
        %v5367 = vunpack.c.l.b16 %v4995
        %v5368 = vunpack.c.h.b16 %v4995
        %v5369 = vunpack.c.l.b16 %v4996
        %v5370 = vunpack.c.l.b16 %v4997
        %v5371 = vunpack.c.h.b16 %v4997
        %v5372 = vunpack.c.l.b16 %v4998
        %v5373 = vunpack.c.h.b16 %v4998
        %v5374 = vunpack.c.l.b16 %v4999
        %v5375 = vunpack.c.l.b16 %v5000
        %v5376 = vunpack.c.h.b16 %v5000
        %v5377 = vunpack.c.l.b16 %v5001
        %v5378 = vunpack.c.h.b16 %v5001
        %v5379 = vunpack.c.l.b16 %v5002
        %v5380 = vunpack.c.l.b16 %v5003
        %v5381 = vunpack.c.h.b16 %v5003
        %v5382 = vunpack.c.l.b16 %v5004
        %v5383 = vunpack.c.h.b16 %v5004
        %v5384 = vunpack.c.l.b16 %v5005
        %v5385 = vunpack.c.l.b16 %v5006
        %v5386 = vunpack.c.h.b16 %v5006
        %v5387 = vunpack.c.l.b16 %v5007
        %v5388 = vunpack.c.h.b16 %v5007
        %v5389 = vunpack.c.l.b16 %v5008
        %v5390 = vunpack.c.l.b16 %v5009
        %v5391 = vunpack.c.h.b16 %v5009
        %v5392 = vunpack.c.l.b16 %v5010
        %v5393 = vunpack.c.h.b16 %v5010
        %v5394 = vunpack.c.l.b16 %v5011
        %v5395 = vunpack.c.l.b16 %v5012
        %v5396 = vunpack.c.h.b16 %v5012
        %v5397 = vunpack.c.l.b16 %v5013
        %v5398 = vunpack.c.h.b16 %v5013
        %v5399 = vunpack.c.l.b16 %v5014
        %v5400 = vunpack.c.l.b16 %v5015
        %v5401 = vunpack.c.h.b16 %v5015
        %v5402 = vunpack.c.l.b16 %v5016
        %v5403 = vunpack.c.h.b16 %v5016
        %v5404 = vunpack.c.l.b16 %v5017
        %v5405 = vunpack.c.l.b16 %v5018
        %v5406 = vunpack.c.h.b16 %v5018
        %v5407 = vunpack.c.l.b16 %v5019
        %v5408 = vunpack.c.h.b16 %v5019
        %v5409 = vunpack.c.l.b16 %v5020
        %v5410 = vunpack.c.l.b16 %v5021
        %v5411 = vunpack.c.h.b16 %v5021
        %v5412 = vunpack.c.l.b16 %v5022
        %v5413 = vunpack.c.h.b16 %v5022
        %v5414 = vunpack.c.l.b16 %v5023
        %v5415 = vunpack.c.l.b16 %v5024
        %v5416 = vunpack.c.h.b16 %v5024
        %v5417 = vunpack.c.l.b16 %v5025
        %v5418 = vunpack.c.h.b16 %v5025
        %v5419 = vunpack.c.l.b16 %v5026
        %v5420 = vunpack.c.l.b16 %v5027
        %v5421 = vunpack.c.h.b16 %v5027
        %v5422 = vunpack.c.l.b16 %v5028
        %v5423 = vunpack.c.h.b16 %v5028
        %v5424 = vunpack.c.l.b16 %v5029
        %v5425 = vunpack.c.l.b16 %v5030
        %v5426 = vunpack.c.h.b16 %v5030
        %v5427 = vunpack.c.l.b16 %v5031
        %v5428 = vunpack.c.h.b16 %v5031
        %v5429 = vunpack.c.l.b16 %v5032
        %v5430 = vunpack.c.l.b16 %v5033
        %v5431 = vunpack.c.h.b16 %v5033
        %v5432 = vunpack.c.l.b16 %v5034
        %v5433 = vunpack.c.h.b16 %v5034
        %v5434 = vunpack.c.l.b16 %v5035
        %v5435 = vunpack.c.l.b16 %v5036
        %v5436 = vunpack.c.h.b16 %v5036
        %v5437 = vunpack.c.l.b16 %v5037
        %v5438 = vunpack.c.h.b16 %v5037
        %v5439 = vunpack.c.l.b16 %v5038
        %v5440 = vunpack.c.l.b16 %v5039
        %v5441 = vunpack.c.h.b16 %v5039
        %v5442 = vunpack.c.l.b16 %v5040
        %v5443 = vunpack.c.h.b16 %v5040
        %v5444 = vunpack.c.l.b16 %v5041
        %v5445 = vunpack.c.l.b16 %v5042
        %v5446 = vunpack.c.h.b16 %v5042
        %v5447 = vunpack.c.l.b16 %v5043
        %v5448 = vunpack.c.h.b16 %v5043
        %v5449 = vunpack.c.l.b16 %v5044
        %v5450 = vunpack.c.l.b16 %v5045
        %v5451 = vunpack.c.h.b16 %v5045
        %v5452 = vunpack.c.l.b16 %v5046
        %v5453 = vunpack.c.h.b16 %v5046
        %v5454 = vunpack.c.l.b16 %v5047
        %v5455 = vunpack.c.l.b16 %v5048
        %v5456 = vunpack.c.h.b16 %v5048
        %v5457 = vunpack.c.l.b16 %v5049
        %v5458 = vunpack.c.h.b16 %v5049
        %v5459 = vunpack.c.l.b16 %v5050
        %v5460 = vunpack.c.l.b16 %v5051
        %v5461 = vunpack.c.h.b16 %v5051
        %v5462 = vunpack.c.l.b16 %v5052
        %v5463 = vunpack.c.h.b16 %v5052
        %v5464 = vunpack.c.l.b16 %v5053
        %v5465 = vunpack.c.l.b16 %v5054
        %v5466 = vunpack.c.h.b16 %v5054
        %v5467 = vunpack.c.l.b16 %v5055
        %v5468 = vunpack.c.h.b16 %v5055
        %v5469 = vunpack.c.l.b16 %v5056
        %v5470 = vunpack.c.l.b16 %v5057
        %v5471 = vunpack.c.h.b16 %v5057
        %v5472 = vunpack.c.l.b16 %v5058
        %v5473 = vunpack.c.h.b16 %v5058
        %v5474 = vunpack.c.l.b16 %v5059
        %v5475 = vunpack.c.l.b16 %v5060
        %v5476 = vunpack.c.h.b16 %v5060
        %v5477 = vunpack.c.l.b16 %v5061
        %v5478 = vunpack.c.h.b16 %v5061
        %v5479 = vunpack.c.l.b16 %v5062
        %v5480 = vunpack.c.l.b16 %v5063
        %v5481 = vunpack.c.h.b16 %v5063
        %v5482 = vunpack.c.l.b16 %v5064
        %v5483 = vunpack.c.h.b16 %v5064
        %v5484 = vunpack.c.l.b16 %v5065
        %v5485 = vunpack.c.l.b16 %v5066
        %v5486 = vunpack.c.h.b16 %v5066
        %v5487 = vunpack.c.l.b16 %v5067
        %v5488 = vunpack.c.h.b16 %v5067
        %v5489 = vunpack.c.l.b16 %v5068
        %v5490 = vunpack.c.l.b16 %v5069
        %v5491 = vunpack.c.h.b16 %v5069
        %v5492 = vunpack.c.l.b16 %v5070
        %v5493 = vunpack.c.h.b16 %v5070
        %v5494 = vunpack.c.l.b16 %v5071
        %v5495 = vunpack.c.l.b16 %v5072
        %v5496 = vunpack.c.h.b16 %v5072
        %v5497 = vunpack.c.l.b16 %v5073
        %v5498 = vunpack.c.h.b16 %v5073
        %v5499 = vunpack.c.l.b16 %v5074
        %v5500 = vunpack.c.l.b16 %v5075
        %v5501 = vunpack.c.h.b16 %v5075
        %v5502 = vunpack.c.l.b16 %v5076
        %v5503 = vunpack.c.h.b16 %v5076
        %v5504 = vunpack.c.l.b16 %v5077
        %v5505 = vunpack.c.l.b16 %v5078
        %v5506 = vunpack.c.h.b16 %v5078
        %v5507 = vunpack.c.l.b16 %v5079
        %v5508 = vunpack.c.h.b16 %v5079
        %v5509 = vunpack.c.l.b16 %v5080
        %v5510 = vpack.c.b16 %v5275, %v5270
        %v5511 = vpack.c.b16 %v5276, %v5271
        %v5512 = vpack.c.b16 %v5277, %v5272
        %v5513 = vpack.c.b16 %v5278, %v5273
        %v5514 = vpack.c.b16 %v5279, %v5274
        %v5515 = vpack.c.b16 %v5285, %v5280
        %v5516 = vpack.c.b16 %v5286, %v5281
        %v5517 = vpack.c.b16 %v5287, %v5282
        %v5518 = vpack.c.b16 %v5288, %v5283
        %v5519 = vpack.c.b16 %v5289, %v5284
        %v5520 = vpack.c.b16 %v5295, %v5290
        %v5521 = vpack.c.b16 %v5296, %v5291
        %v5522 = vpack.c.b16 %v5297, %v5292
        %v5523 = vpack.c.b16 %v5298, %v5293
        %v5524 = vpack.c.b16 %v5299, %v5294
        %v5525 = vpack.c.b16 %v5305, %v5300
        %v5526 = vpack.c.b16 %v5306, %v5301
        %v5527 = vpack.c.b16 %v5307, %v5302
        %v5528 = vpack.c.b16 %v5308, %v5303
        %v5529 = vpack.c.b16 %v5309, %v5304
        %v5530 = vpack.c.b16 %v5315, %v5310
        %v5531 = vpack.c.b16 %v5316, %v5311
        %v5532 = vpack.c.b16 %v5317, %v5312
        %v5533 = vpack.c.b16 %v5318, %v5313
        %v5534 = vpack.c.b16 %v5319, %v5314
        %v5535 = vpack.c.b16 %v5325, %v5320
        %v5536 = vpack.c.b16 %v5326, %v5321
        %v5537 = vpack.c.b16 %v5327, %v5322
        %v5538 = vpack.c.b16 %v5328, %v5323
        %v5539 = vpack.c.b16 %v5329, %v5324
        %v5540 = vpack.c.b16 %v5335, %v5330
        %v5541 = vpack.c.b16 %v5336, %v5331
        %v5542 = vpack.c.b16 %v5337, %v5332
        %v5543 = vpack.c.b16 %v5338, %v5333
        %v5544 = vpack.c.b16 %v5339, %v5334
        %v5545 = vpack.c.b16 %v5345, %v5340
        %v5546 = vpack.c.b16 %v5346, %v5341
        %v5547 = vpack.c.b16 %v5347, %v5342
        %v5548 = vpack.c.b16 %v5348, %v5343
        %v5549 = vpack.c.b16 %v5349, %v5344
        %v5550 = vpack.c.b16 %v5355, %v5350
        %v5551 = vpack.c.b16 %v5356, %v5351
        %v5552 = vpack.c.b16 %v5357, %v5352
        %v5553 = vpack.c.b16 %v5358, %v5353
        %v5554 = vpack.c.b16 %v5359, %v5354
        %v5555 = vpack.c.b16 %v5365, %v5360
        %v5556 = vpack.c.b16 %v5366, %v5361
        %v5557 = vpack.c.b16 %v5367, %v5362
        %v5558 = vpack.c.b16 %v5368, %v5363
        %v5559 = vpack.c.b16 %v5369, %v5364
        %v5560 = vpack.c.b16 %v5375, %v5370
        %v5561 = vpack.c.b16 %v5376, %v5371
        %v5562 = vpack.c.b16 %v5377, %v5372
        %v5563 = vpack.c.b16 %v5378, %v5373
        %v5564 = vpack.c.b16 %v5379, %v5374
        %v5565 = vpack.c.b16 %v5385, %v5380
        %v5566 = vpack.c.b16 %v5386, %v5381
        %v5567 = vpack.c.b16 %v5387, %v5382
        %v5568 = vpack.c.b16 %v5388, %v5383
        %v5569 = vpack.c.b16 %v5389, %v5384
        %v5570 = vpack.c.b16 %v5395, %v5390
        %v5571 = vpack.c.b16 %v5396, %v5391
        %v5572 = vpack.c.b16 %v5397, %v5392
        %v5573 = vpack.c.b16 %v5398, %v5393
        %v5574 = vpack.c.b16 %v5399, %v5394
        %v5575 = vpack.c.b16 %v5405, %v5400
        %v5576 = vpack.c.b16 %v5406, %v5401
        %v5577 = vpack.c.b16 %v5407, %v5402
        %v5578 = vpack.c.b16 %v5408, %v5403
        %v5579 = vpack.c.b16 %v5409, %v5404
        %v5580 = vpack.c.b16 %v5415, %v5410
        %v5581 = vpack.c.b16 %v5416, %v5411
        %v5582 = vpack.c.b16 %v5417, %v5412
        %v5583 = vpack.c.b16 %v5418, %v5413
        %v5584 = vpack.c.b16 %v5419, %v5414
        %v5585 = vpack.c.b16 %v5425, %v5420
        %v5586 = vpack.c.b16 %v5426, %v5421
        %v5587 = vpack.c.b16 %v5427, %v5422
        %v5588 = vpack.c.b16 %v5428, %v5423
        %v5589 = vpack.c.b16 %v5429, %v5424
        %v5590 = vpack.c.b16 %v5435, %v5430
        %v5591 = vpack.c.b16 %v5436, %v5431
        %v5592 = vpack.c.b16 %v5437, %v5432
        %v5593 = vpack.c.b16 %v5438, %v5433
        %v5594 = vpack.c.b16 %v5439, %v5434
        %v5595 = vpack.c.b16 %v5445, %v5440
        %v5596 = vpack.c.b16 %v5446, %v5441
        %v5597 = vpack.c.b16 %v5447, %v5442
        %v5598 = vpack.c.b16 %v5448, %v5443
        %v5599 = vpack.c.b16 %v5449, %v5444
        %v5600 = vpack.c.b16 %v5455, %v5450
        %v5601 = vpack.c.b16 %v5456, %v5451
        %v5602 = vpack.c.b16 %v5457, %v5452
        %v5603 = vpack.c.b16 %v5458, %v5453
        %v5604 = vpack.c.b16 %v5459, %v5454
        %v5605 = vpack.c.b16 %v5465, %v5460
        %v5606 = vpack.c.b16 %v5466, %v5461
        %v5607 = vpack.c.b16 %v5467, %v5462
        %v5608 = vpack.c.b16 %v5468, %v5463
        %v5609 = vpack.c.b16 %v5469, %v5464
        %v5610 = vpack.c.b16 %v5475, %v5470
        %v5611 = vpack.c.b16 %v5476, %v5471
        %v5612 = vpack.c.b16 %v5477, %v5472
        %v5613 = vpack.c.b16 %v5478, %v5473
        %v5614 = vpack.c.b16 %v5479, %v5474
        %v5615 = vpack.c.b16 %v5485, %v5480
        %v5616 = vpack.c.b16 %v5486, %v5481
        %v5617 = vpack.c.b16 %v5487, %v5482
        %v5618 = vpack.c.b16 %v5488, %v5483
        %v5619 = vpack.c.b16 %v5489, %v5484
        %v5620 = vpack.c.b16 %v5495, %v5490
        %v5621 = vpack.c.b16 %v5496, %v5491
        %v5622 = vpack.c.b16 %v5497, %v5492
        %v5623 = vpack.c.b16 %v5498, %v5493
        %v5624 = vpack.c.b16 %v5499, %v5494
        %v5625 = vpack.c.b16 %v5505, %v5500
        %v5626 = vpack.c.b16 %v5506, %v5501
        %v5627 = vpack.c.b16 %v5507, %v5502
        %v5628 = vpack.c.b16 %v5508, %v5503
        %v5629 = vpack.c.b16 %v5509, %v5504
        %5750 = vmatprep.subr.bf16.mxu0 %v5511
        %5751 = vmatpush1.bf16.msra.mxu0 %v5510
        %5752 = vmatprep.subr.bf16.mxu0 %v5516
        %5753 = vmatpush1.bf16.msra.mxu0 %v5515
        %5754 = vmatprep.subr.bf16.mxu0 %v5521
        %5755 = vmatpush1.bf16.msra.mxu0 %v5520
        %5756 = vmatprep.subr.bf16.mxu0 %v5526
        %5757 = vmatpush1.bf16.msra.mxu0 %v5525
        %5758 = vmatprep.subr.bf16.mxu0 %v5531
        %5759 = vmatpush1.bf16.msra.mxu0 %v5530
        %5760 = vmatprep.subr.bf16.mxu0 %v5536
        %5761 = vmatpush1.bf16.msra.mxu0 %v5535
        %5762 = vmatprep.subr.bf16.mxu0 %v5541
        %5763 = vmatpush1.bf16.msra.mxu0 %v5540
        %5764 = vmatprep.subr.bf16.mxu0 %v5546
        %5765 = vmatpush1.bf16.msra.mxu0 %v5545
        %5766 = vmatprep.subr.bf16.mxu0 %v5551
        %5767 = vmatpush1.bf16.msra.mxu0 %v5550
        %5768 = vmatprep.subr.bf16.mxu0 %v5556
        %5769 = vmatpush1.bf16.msra.mxu0 %v5555
        %5770 = vmatprep.subr.bf16.mxu0 %v5561
        %5771 = vmatpush1.bf16.msra.mxu0 %v5560
        %5772 = vmatprep.subr.bf16.mxu0 %v5566
        %5773 = vmatpush1.bf16.msra.mxu0 %v5565
        %5774 = vmatprep.subr.bf16.mxu0 %v5571
        %5775 = vmatpush1.bf16.msra.mxu0 %v5570
        %5776 = vmatprep.subr.bf16.mxu0 %v5576
        %5777 = vmatpush1.bf16.msra.mxu0 %v5575
        %5778 = vmatprep.subr.bf16.mxu0 %v5581
        %5779 = vmatpush1.bf16.msra.mxu0 %v5580
        %5780 = vmatprep.subr.bf16.mxu0 %v5586
        %5781 = vmatpush1.bf16.msra.mxu0 %v5585
        %5782 = vmatprep.mubr.bf16.mxu0 %v5098
        %5783 = vmatmul.mubr.bf16.gmra.mrb[0].mxu0 %v5095
        %v5784 = vpop.f32.mrb[0].mxu0
        %v5785 = vadd.f32 0.0, %v5784
        %v5786 = vpop.f32.mrb[0].mxu0
        %v5787 = vadd.f32 0.0, %v5786
        %v5788 = vpop.f32.mrb[0].mxu0
        %v5789 = vadd.f32 0.0, %v5788
        %v5790 = vpop.f32.mrb[0].mxu0
        %v5791 = vadd.f32 0.0, %v5790
        %5792 = vmatprep.mubr.bf16.mxu0 %v5105
        %5793 = vmatmul.mubr.bf16.gmra.mrb[0].mxu0 %v5103
        %v5794 = vpop.f32.mrb[0].mxu0
        %v5795 = vadd.f32 0.0, %v5794
        %v5796 = vpop.f32.mrb[0].mxu0
        %v5797 = vadd.f32 0.0, %v5796
        %v5798 = vpop.f32.mrb[0].mxu0
        %v5799 = vadd.f32 0.0, %v5798
        %v5800 = vpop.f32.mrb[0].mxu0
        %v5801 = vadd.f32 0.0, %v5800
        %5802 = vmatprep.mubr.bf16.mxu0 %v5111
        %5803 = vmatmul.mubr.bf16.gmra.mrb[0].mxu0 %v5109
        %v5804 = vpop.f32.mrb[0].mxu0
        %v5805 = vadd.f32 0.0, %v5804
        %v5806 = vpop.f32.mrb[0].mxu0
        %v5807 = vadd.f32 0.0, %v5806
        %v5808 = vpop.f32.mrb[0].mxu0
        %v5809 = vadd.f32 0.0, %v5808
        %v5810 = vpop.f32.mrb[0].mxu0
        %v5811 = vadd.f32 0.0, %v5810
        %5812 = vmatprep.mubr.bf16.mxu0 %v5110
        %5813 = vmatmul.mubr.bf16.gmra.mrb[0].mxu0 %v5108
        %v5814 = vpop.f32.mrb[0].mxu0
        %v5815 = vadd.f32 0.0, %v5814
        %v5816 = vpop.f32.mrb[0].mxu0
        %v5817 = vadd.f32 0.0, %v5816
        %v5818 = vpop.f32.mrb[0].mxu0
        %v5819 = vadd.f32 0.0, %v5818
        %v5820 = vpop.f32.mrb[0].mxu0
        %v5821 = vadd.f32 0.0, %v5820
        %5822 = vdwg.mxu0
        %5823 = vmatprep.subr.bf16.mxu0 %v5591
        %5824 = vmatpush1.bf16.msra.mxu0 %v5590
        %5825 = vmatprep.subr.bf16.mxu0 %v5596
        %5826 = vmatpush1.bf16.msra.mxu0 %v5595
        %5827 = vmatprep.subr.bf16.mxu0 %v5601
        %5828 = vmatpush1.bf16.msra.mxu0 %v5600
        %5829 = vmatprep.subr.bf16.mxu0 %v5606
        %5830 = vmatpush1.bf16.msra.mxu0 %v5605
        %5831 = vmatprep.subr.bf16.mxu0 %v5611
        %5832 = vmatpush1.bf16.msra.mxu0 %v5610
        %5833 = vmatprep.subr.bf16.mxu0 %v5616
        %5834 = vmatpush1.bf16.msra.mxu0 %v5615
        %5835 = vmatprep.subr.bf16.mxu0 %v5621
        %5836 = vmatpush1.bf16.msra.mxu0 %v5620
        %5837 = vmatprep.subr.bf16.mxu0 %v5626
        %5838 = vmatpush1.bf16.msra.mxu0 %v5625
        %5839 = vmatprep.subr.bf16.mxu0 0
        %5840 = vmatpush1.bf16.msra.mxu0 0
        %5841 = vmatprep.subr.bf16.mxu0 0
        %5842 = vmatpush1.bf16.msra.mxu0 0
        %5843 = vmatprep.subr.bf16.mxu0 0
        %5844 = vmatpush1.bf16.msra.mxu0 0
        %5845 = vmatprep.subr.bf16.mxu0 0
        %5846 = vmatpush1.bf16.msra.mxu0 0
        %5847 = vmatprep.subr.bf16.mxu0 0
        %5848 = vmatpush1.bf16.msra.mxu0 0
        %5849 = vmatprep.subr.bf16.mxu0 0
        %5850 = vmatpush1.bf16.msra.mxu0 0
        %5851 = vmatprep.subr.bf16.mxu0 0
        %5852 = vmatpush1.bf16.msra.mxu0 0
        %5853 = vmatprep.subr.bf16.mxu0 0
        %5854 = vmatpush1.bf16.msra.mxu0 0
        %5855 = vmatprep.mubr.bf16.mxu0 0
        %5856 = vmatmul.mubr.bf16.gmra.mrb[0].mxu0 %v5101
        %v5857 = vpop.f32.mrb[0].mxu0
        %v5858 = vadd.f32 %v5785, %v5857
        %v5859 = vpop.f32.mrb[0].mxu0
        %v5860 = vadd.f32 %v5787, %v5859
        %v5861 = vpop.f32.mrb[0].mxu0
        %v5862 = vadd.f32 %v5789, %v5861
        %v5863 = vpop.f32.mrb[0].mxu0
        %v5864 = vadd.f32 %v5791, %v5863
        %5865 = vmatprep.mubr.bf16.mxu0 0
        %5866 = vmatmul.mubr.bf16.gmra.mrb[0].mxu0 %v5107
        %v5867 = vpop.f32.mrb[0].mxu0
        %v5868 = vadd.f32 %v5795, %v5867
        %v5869 = vpop.f32.mrb[0].mxu0
        %v5870 = vadd.f32 %v5797, %v5869
        %v5871 = vpop.f32.mrb[0].mxu0
        %v5872 = vadd.f32 %v5799, %v5871
        %v5873 = vpop.f32.mrb[0].mxu0
        %v5874 = vadd.f32 %v5801, %v5873
        %5875 = vmatprep.mubr.bf16.mxu0 0
        %5876 = vmatmul.mubr.bf16.gmra.mrb[0].mxu0 %v5113
        %v5877 = vpop.f32.mrb[0].mxu0
        %v5878 = vadd.f32 %v5805, %v5877
        %v5879 = vpop.f32.mrb[0].mxu0
        %v5880 = vadd.f32 %v5807, %v5879
        %v5881 = vpop.f32.mrb[0].mxu0
        %v5882 = vadd.f32 %v5809, %v5881
        %v5883 = vpop.f32.mrb[0].mxu0
        %v5884 = vadd.f32 %v5811, %v5883
        %5885 = vmatprep.mubr.bf16.mxu0 0
        %5886 = vmatmul.mubr.bf16.gmra.mrb[0].mxu0 %v5112
        %v5887 = vpop.f32.mrb[0].mxu0
        %v5888 = vadd.f32 %v5815, %v5887
        %v5889 = vpop.f32.mrb[0].mxu0
        %v5890 = vadd.f32 %v5817, %v5889
        %v5891 = vpop.f32.mrb[0].mxu0
        %v5892 = vadd.f32 %v5819, %v5891
        %v5893 = vpop.f32.mrb[0].mxu0
        %v5894 = vadd.f32 %v5821, %v5893
        %5895 = vdwg.mxu0
        %5896 = vmatprep.subr.bf16.mxu0 %v5513
        %5897 = vmatpush1.bf16.msra.mxu0 %v5512
        %5898 = vmatprep.subr.bf16.mxu0 %v5518
        %5899 = vmatpush1.bf16.msra.mxu0 %v5517
        %5900 = vmatprep.subr.bf16.mxu0 %v5523
        %5901 = vmatpush1.bf16.msra.mxu0 %v5522
        %5902 = vmatprep.subr.bf16.mxu0 %v5528
        %5903 = vmatpush1.bf16.msra.mxu0 %v5527
        %5904 = vmatprep.subr.bf16.mxu0 %v5533
        %5905 = vmatpush1.bf16.msra.mxu0 %v5532
        %5906 = vmatprep.subr.bf16.mxu0 %v5538
        %5907 = vmatpush1.bf16.msra.mxu0 %v5537
        %5908 = vmatprep.subr.bf16.mxu0 %v5543
        %5909 = vmatpush1.bf16.msra.mxu0 %v5542
        %5910 = vmatprep.subr.bf16.mxu0 %v5548
        %5911 = vmatpush1.bf16.msra.mxu0 %v5547
        %5912 = vmatprep.subr.bf16.mxu0 %v5553
        %5913 = vmatpush1.bf16.msra.mxu0 %v5552
        %5914 = vmatprep.subr.bf16.mxu0 %v5558
        %5915 = vmatpush1.bf16.msra.mxu0 %v5557
        %5916 = vmatprep.subr.bf16.mxu0 %v5563
        %5917 = vmatpush1.bf16.msra.mxu0 %v5562
        %5918 = vmatprep.subr.bf16.mxu0 %v5568
        %5919 = vmatpush1.bf16.msra.mxu0 %v5567
        %5920 = vmatprep.subr.bf16.mxu0 %v5573
        %5921 = vmatpush1.bf16.msra.mxu0 %v5572
        %5922 = vmatprep.subr.bf16.mxu0 %v5578
        %5923 = vmatpush1.bf16.msra.mxu0 %v5577
        %5924 = vmatprep.subr.bf16.mxu0 %v5583
        %5925 = vmatpush1.bf16.msra.mxu0 %v5582
        %5926 = vmatprep.subr.bf16.mxu0 %v5588
        %5927 = vmatpush1.bf16.msra.mxu0 %v5587
        %5928 = vmatprep.mubr.bf16.mxu0 %v5098
        %5929 = vmatmul.mubr.bf16.gmra.mrb[0].mxu0 %v5095
        %v5930 = vpop.f32.mrb[0].mxu0
        %v5931 = vadd.f32 0.0, %v5930
        %v5932 = vpop.f32.mrb[0].mxu0
        %v5933 = vadd.f32 0.0, %v5932
        %v5934 = vpop.f32.mrb[0].mxu0
        %v5935 = vadd.f32 0.0, %v5934
        %v5936 = vpop.f32.mrb[0].mxu0
        %v5937 = vadd.f32 0.0, %v5936
        %5938 = vmatprep.mubr.bf16.mxu0 %v5105
        %5939 = vmatmul.mubr.bf16.gmra.mrb[0].mxu0 %v5103
        %v5940 = vpop.f32.mrb[0].mxu0
        %v5941 = vadd.f32 0.0, %v5940
        %v5942 = vpop.f32.mrb[0].mxu0
        %v5943 = vadd.f32 0.0, %v5942
        %v5944 = vpop.f32.mrb[0].mxu0
        %v5945 = vadd.f32 0.0, %v5944
        %v5946 = vpop.f32.mrb[0].mxu0
        %v5947 = vadd.f32 0.0, %v5946
        %5948 = vmatprep.mubr.bf16.mxu0 %v5111
        %5949 = vmatmul.mubr.bf16.gmra.mrb[0].mxu0 %v5109
        %v5950 = vpop.f32.mrb[0].mxu0
        %v5951 = vadd.f32 0.0, %v5950
        %v5952 = vpop.f32.mrb[0].mxu0
        %v5953 = vadd.f32 0.0, %v5952
        %v5954 = vpop.f32.mrb[0].mxu0
        %v5955 = vadd.f32 0.0, %v5954
        %v5956 = vpop.f32.mrb[0].mxu0
        %v5957 = vadd.f32 0.0, %v5956
        %5958 = vmatprep.mubr.bf16.mxu0 %v5110
        %5959 = vmatmul.mubr.bf16.gmra.mrb[0].mxu0 %v5108
        %v5960 = vpop.f32.mrb[0].mxu0
        %v5961 = vadd.f32 0.0, %v5960
        %v5962 = vpop.f32.mrb[0].mxu0
        %v5963 = vadd.f32 0.0, %v5962
        %v5964 = vpop.f32.mrb[0].mxu0
        %v5965 = vadd.f32 0.0, %v5964
        %v5966 = vpop.f32.mrb[0].mxu0
        %v5967 = vadd.f32 0.0, %v5966
        %5968 = vdwg.mxu0
        %5969 = vmatprep.subr.bf16.mxu0 %v5593
        %5970 = vmatpush1.bf16.msra.mxu0 %v5592
        %5971 = vmatprep.subr.bf16.mxu0 %v5598
        %5972 = vmatpush1.bf16.msra.mxu0 %v5597
        %5973 = vmatprep.subr.bf16.mxu0 %v5603
        %5974 = vmatpush1.bf16.msra.mxu0 %v5602
        %5975 = vmatprep.subr.bf16.mxu0 %v5608
        %5976 = vmatpush1.bf16.msra.mxu0 %v5607
        %5977 = vmatprep.subr.bf16.mxu0 %v5613
        %5978 = vmatpush1.bf16.msra.mxu0 %v5612
        %5979 = vmatprep.subr.bf16.mxu0 %v5618
        %5980 = vmatpush1.bf16.msra.mxu0 %v5617
        %5981 = vmatprep.subr.bf16.mxu0 %v5623
        %5982 = vmatpush1.bf16.msra.mxu0 %v5622
        %5983 = vmatprep.subr.bf16.mxu0 %v5628
        %5984 = vmatpush1.bf16.msra.mxu0 %v5627
        %5985 = vmatprep.subr.bf16.mxu0 0
        %5986 = vmatpush1.bf16.msra.mxu0 0
        %5987 = vmatprep.subr.bf16.mxu0 0
        %5988 = vmatpush1.bf16.msra.mxu0 0
        %5989 = vmatprep.subr.bf16.mxu0 0
        %5990 = vmatpush1.bf16.msra.mxu0 0
        %5991 = vmatprep.subr.bf16.mxu0 0
        %5992 = vmatpush1.bf16.msra.mxu0 0
        %5993 = vmatprep.subr.bf16.mxu0 0
        %5994 = vmatpush1.bf16.msra.mxu0 0
        %5995 = vmatprep.subr.bf16.mxu0 0
        %5996 = vmatpush1.bf16.msra.mxu0 0
        %5997 = vmatprep.subr.bf16.mxu0 0
        %5998 = vmatpush1.bf16.msra.mxu0 0
        %5999 = vmatprep.subr.bf16.mxu0 0
        %6000 = vmatpush1.bf16.msra.mxu0 0
        %6001 = vmatprep.mubr.bf16.mxu0 0
        %6002 = vmatmul.mubr.bf16.gmra.mrb[0].mxu0 %v5101
        %v6003 = vpop.f32.mrb[0].mxu0
        %v6004 = vadd.f32 %v5931, %v6003
        %v6005 = vpop.f32.mrb[0].mxu0
        %v6006 = vadd.f32 %v5933, %v6005
        %v6007 = vpop.f32.mrb[0].mxu0
        %v6008 = vadd.f32 %v5935, %v6007
        %v6009 = vpop.f32.mrb[0].mxu0
        %v6010 = vadd.f32 %v5937, %v6009
        %6011 = vmatprep.mubr.bf16.mxu0 0
        %6012 = vmatmul.mubr.bf16.gmra.mrb[0].mxu0 %v5107
        %v6013 = vpop.f32.mrb[0].mxu0
        %v6014 = vadd.f32 %v5941, %v6013
        %v6015 = vpop.f32.mrb[0].mxu0
        %v6016 = vadd.f32 %v5943, %v6015
        %v6017 = vpop.f32.mrb[0].mxu0
        %v6018 = vadd.f32 %v5945, %v6017
        %v6019 = vpop.f32.mrb[0].mxu0
        %v6020 = vadd.f32 %v5947, %v6019
        %6021 = vmatprep.mubr.bf16.mxu0 0
        %6022 = vmatmul.mubr.bf16.gmra.mrb[0].mxu0 %v5113
        %v6023 = vpop.f32.mrb[0].mxu0
        %v6024 = vadd.f32 %v5951, %v6023
        %v6025 = vpop.f32.mrb[0].mxu0
        %v6026 = vadd.f32 %v5953, %v6025
        %v6027 = vpop.f32.mrb[0].mxu0
        %v6028 = vadd.f32 %v5955, %v6027
        %v6029 = vpop.f32.mrb[0].mxu0
        %v6030 = vadd.f32 %v5957, %v6029
        %6031 = vmatprep.mubr.bf16.mxu0 0
        %6032 = vmatmul.mubr.bf16.gmra.mrb[0].mxu0 %v5112
        %v6033 = vpop.f32.mrb[0].mxu0
        %v6034 = vadd.f32 %v5961, %v6033
        %v6035 = vpop.f32.mrb[0].mxu0
        %v6036 = vadd.f32 %v5963, %v6035
        %v6037 = vpop.f32.mrb[0].mxu0
        %v6038 = vadd.f32 %v5965, %v6037
        %v6039 = vpop.f32.mrb[0].mxu0
        %v6040 = vadd.f32 %v5967, %v6039
        %6041 = vdwg.mxu0
        %6042 = vmatprep.subr.bf16.mxu0 0
        %6043 = vmatpush1.bf16.msra.mxu0 %v5514
        %6044 = vmatprep.subr.bf16.mxu0 0
        %6045 = vmatpush1.bf16.msra.mxu0 %v5519
        %6046 = vmatprep.subr.bf16.mxu0 0
        %6047 = vmatpush1.bf16.msra.mxu0 %v5524
        %6048 = vmatprep.subr.bf16.mxu0 0
        %6049 = vmatpush1.bf16.msra.mxu0 %v5529
        %6050 = vmatprep.subr.bf16.mxu0 0
        %6051 = vmatpush1.bf16.msra.mxu0 %v5534
        %6052 = vmatprep.subr.bf16.mxu0 0
        %6053 = vmatpush1.bf16.msra.mxu0 %v5539
        %6054 = vmatprep.subr.bf16.mxu0 0
        %6055 = vmatpush1.bf16.msra.mxu0 %v5544
        %6056 = vmatprep.subr.bf16.mxu0 0
        %6057 = vmatpush1.bf16.msra.mxu0 %v5549
        %6058 = vmatprep.subr.bf16.mxu0 0
        %6059 = vmatpush1.bf16.msra.mxu0 %v5554
        %6060 = vmatprep.subr.bf16.mxu0 0
        %6061 = vmatpush1.bf16.msra.mxu0 %v5559
        %6062 = vmatprep.subr.bf16.mxu0 0
        %6063 = vmatpush1.bf16.msra.mxu0 %v5564
        %6064 = vmatprep.subr.bf16.mxu0 0
        %6065 = vmatpush1.bf16.msra.mxu0 %v5569
        %6066 = vmatprep.subr.bf16.mxu0 0
        %6067 = vmatpush1.bf16.msra.mxu0 %v5574
        %6068 = vmatprep.subr.bf16.mxu0 0
        %6069 = vmatpush1.bf16.msra.mxu0 %v5579
        %6070 = vmatprep.subr.bf16.mxu0 0
        %6071 = vmatpush1.bf16.msra.mxu0 %v5584
        %6072 = vmatprep.subr.bf16.mxu0 0
        %6073 = vmatpush1.bf16.msra.mxu0 %v5589
        %6074 = vmatprep.mubr.bf16.mxu0 %v5098
        %6075 = vmatmul.mubr.bf16.gmra.mrb[0].mxu0 %v5095
        %v6076 = vpop.f32.mrb[0].mxu0
        %v6077 = vadd.f32 0.0, %v6076
        %v6078 = vpop.f32.mrb[0].mxu0
        %v6079 = vpop.f32.mrb[0].mxu0
        %v6080 = vadd.f32 0.0, %v6079
        %v6081 = vpop.f32.mrb[0].mxu0
        %6082 = vmatprep.mubr.bf16.mxu0 %v5105
        %6083 = vmatmul.mubr.bf16.gmra.mrb[0].mxu0 %v5103
        %v6084 = vpop.f32.mrb[0].mxu0
        %v6085 = vadd.f32 0.0, %v6084
        %v6086 = vpop.f32.mrb[0].mxu0
        %v6087 = vpop.f32.mrb[0].mxu0
        %v6088 = vadd.f32 0.0, %v6087
        %v6089 = vpop.f32.mrb[0].mxu0
        %6090 = vmatprep.mubr.bf16.mxu0 %v5111
        %6091 = vmatmul.mubr.bf16.gmra.mrb[0].mxu0 %v5109
        %v6092 = vpop.f32.mrb[0].mxu0
        %v6093 = vadd.f32 0.0, %v6092
        %v6094 = vpop.f32.mrb[0].mxu0
        %v6095 = vpop.f32.mrb[0].mxu0
        %v6096 = vadd.f32 0.0, %v6095
        %v6097 = vpop.f32.mrb[0].mxu0
        %6098 = vmatprep.mubr.bf16.mxu0 %v5110
        %6099 = vmatmul.mubr.bf16.gmra.mrb[0].mxu0 %v5108
        %v6100 = vpop.f32.mrb[0].mxu0
        %v6101 = vadd.f32 0.0, %v6100
        %v6102 = vpop.f32.mrb[0].mxu0
        %v6103 = vpop.f32.mrb[0].mxu0
        %v6104 = vadd.f32 0.0, %v6103
        %v6105 = vpop.f32.mrb[0].mxu0
        %6106 = vdwg.mxu0
        %6107 = vmatprep.subr.bf16.mxu0 0
        %6108 = vmatpush1.bf16.msra.mxu0 %v5594
        %6109 = vmatprep.subr.bf16.mxu0 0
        %6110 = vmatpush1.bf16.msra.mxu0 %v5599
        %6111 = vmatprep.subr.bf16.mxu0 0
        %6112 = vmatpush1.bf16.msra.mxu0 %v5604
        %6113 = vmatprep.subr.bf16.mxu0 0
        %6114 = vmatpush1.bf16.msra.mxu0 %v5609
        %6115 = vmatprep.subr.bf16.mxu0 0
        %6116 = vmatpush1.bf16.msra.mxu0 %v5614
        %6117 = vmatprep.subr.bf16.mxu0 0
        %6118 = vmatpush1.bf16.msra.mxu0 %v5619
        %6119 = vmatprep.subr.bf16.mxu0 0
        %6120 = vmatpush1.bf16.msra.mxu0 %v5624
        %6121 = vmatprep.subr.bf16.mxu0 0
        %6122 = vmatpush1.bf16.msra.mxu0 %v5629
        %6123 = vmatprep.subr.bf16.mxu0 0
        %6124 = vmatpush1.bf16.msra.mxu0 0
        %6125 = vmatprep.subr.bf16.mxu0 0
        %6126 = vmatpush1.bf16.msra.mxu0 0
        %6127 = vmatprep.subr.bf16.mxu0 0
        %6128 = vmatpush1.bf16.msra.mxu0 0
        %6129 = vmatprep.subr.bf16.mxu0 0
        %6130 = vmatpush1.bf16.msra.mxu0 0
        %6131 = vmatprep.subr.bf16.mxu0 0
        %6132 = vmatpush1.bf16.msra.mxu0 0
        %6133 = vmatprep.subr.bf16.mxu0 0
        %6134 = vmatpush1.bf16.msra.mxu0 0
        %6135 = vmatprep.subr.bf16.mxu0 0
        %6136 = vmatpush1.bf16.msra.mxu0 0
        %6137 = vmatprep.subr.bf16.mxu0 0
        %6138 = vmatpush1.bf16.msra.mxu0 0
        %6139 = vmatprep.mubr.bf16.mxu0 0
        %6140 = vmatmul.mubr.bf16.gmra.mrb[0].mxu0 %v5101
        %v6141 = vpop.f32.mrb[0].mxu0
        %v6142 = vadd.f32 %v6077, %v6141
        %v6143 = vpop.f32.mrb[0].mxu0
        %v6144 = vpop.f32.mrb[0].mxu0
        %v6145 = vadd.f32 %v6080, %v6144
        %v6146 = vpop.f32.mrb[0].mxu0
        %6147 = vmatprep.mubr.bf16.mxu0 0
        %6148 = vmatmul.mubr.bf16.gmra.mrb[0].mxu0 %v5107
        %v6149 = vpop.f32.mrb[0].mxu0
        %v6150 = vadd.f32 %v6085, %v6149
        %v6151 = vpop.f32.mrb[0].mxu0
        %v6152 = vpop.f32.mrb[0].mxu0
        %v6153 = vadd.f32 %v6088, %v6152
        %v6154 = vpop.f32.mrb[0].mxu0
        %6155 = vmatprep.mubr.bf16.mxu0 0
        %6156 = vmatmul.mubr.bf16.gmra.mrb[0].mxu0 %v5113
        %v6157 = vpop.f32.mrb[0].mxu0
        %v6158 = vadd.f32 %v6093, %v6157
        %v6159 = vpop.f32.mrb[0].mxu0
        %v6160 = vpop.f32.mrb[0].mxu0
        %v6161 = vadd.f32 %v6096, %v6160
        %v6162 = vpop.f32.mrb[0].mxu0
        %6163 = vmatprep.mubr.bf16.mxu0 0
        %6164 = vmatmul.mubr.bf16.gmra.mrb[0].mxu0 %v5112
        %v6165 = vpop.f32.mrb[0].mxu0
        %v6166 = vadd.f32 %v6101, %v6165
        %v6167 = vpop.f32.mrb[0].mxu0
        %v6168 = vpop.f32.mrb[0].mxu0
        %v6169 = vadd.f32 %v6104, %v6168
        %v6170 = vpop.f32.mrb[0].mxu0
        %6171 = vdwg.mxu0
        %v6172 = vadd.f32 %v4610, %v5858
        %v6173 = vadd.f32 %v4612, %v5860
        %v6174 = vadd.f32 %v4756, %v6004
        %v6175 = vadd.f32 %v4758, %v6006
        %v6176 = vadd.f32 %v4894, %v6142
        %v6177 = vadd.f32 %v4614, %v5862
        %v6178 = vadd.f32 %v4616, %v5864
        %v6179 = vadd.f32 %v4760, %v6008
        %v6180 = vadd.f32 %v4762, %v6010
        %v6181 = vadd.f32 %v4897, %v6145
        %v6182 = vadd.f32 %v4620, %v5868
        %v6183 = vadd.f32 %v4622, %v5870
        %v6184 = vadd.f32 %v4766, %v6014
        %v6185 = vadd.f32 %v4768, %v6016
        %v6186 = vadd.f32 %v4902, %v6150
        %v6187 = vadd.f32 %v4624, %v5872
        %v6188 = vadd.f32 %v4626, %v5874
        %v6189 = vadd.f32 %v4770, %v6018
        %v6190 = vadd.f32 %v4772, %v6020
        %v6191 = vadd.f32 %v4905, %v6153
        %v6192 = vadd.f32 %v4630, %v5878
        %v6193 = vadd.f32 %v4632, %v5880
        %v6194 = vadd.f32 %v4776, %v6024
        %v6195 = vadd.f32 %v4778, %v6026
        %v6196 = vadd.f32 %v4910, %v6158
        %v6197 = vadd.f32 %v4634, %v5882
        %v6198 = vadd.f32 %v4636, %v5884
        %v6199 = vadd.f32 %v4780, %v6028
        %v6200 = vadd.f32 %v4782, %v6030
        %v6201 = vadd.f32 %v4913, %v6161
        %v6202 = vadd.f32 %v4640, %v5888
        %v6203 = vadd.f32 %v4642, %v5890
        %v6204 = vadd.f32 %v4786, %v6034
        %v6205 = vadd.f32 %v4788, %v6036
        %v6206 = vadd.f32 %v4918, %v6166
        %v6207 = vadd.f32 %v4644, %v5892
        %v6208 = vadd.f32 %v4646, %v5894
        %v6209 = vadd.f32 %v4790, %v6038
        %v6210 = vadd.f32 %v4792, %v6040
        %v6211 = vadd.f32 %v4921, %v6169
        %v6212 = vld [vmem:[#allocation12] sm:$0x1f]
        %v6214 = vlaneseq
        %v6215 = vshrl.u32 %v6214, 7
        %v6216 = vsub.s32 0, %v6215
        %v6217 = vrot.slane %v6212, %v6216
        %v6218 = vlaneseq
        %v6219 = vshrl.u32 %v6218, 7
        %v6220 = vsub.s32 1, %v6219
        %v6221 = vrot.slane %v6212, %v6220
        %v6222 = vlaneseq
        %v6223 = vshrl.u32 %v6222, 7
        %v6224 = vsub.s32 2, %v6223
        %v6225 = vrot.slane %v6212, %v6224
        %v6226 = vlaneseq
        %v6227 = vshrl.u32 %v6226, 7
        %v6228 = vsub.s32 3, %v6227
        %v6229 = vrot.slane %v6212, %v6228
        %v6230 = vlaneseq
        %v6231 = vshrl.u32 %v6230, 7
        %v6232 = vsub.s32 4, %v6231
        %v6233 = vrot.slane %v6212, %v6232
        %v6239 = vadd.f32 %v6172, %v6217
        %v6240 = vadd.f32 %v6173, %v6221
        %v6241 = vadd.f32 %v6174, %v6225
        %v6242 = vadd.f32 %v6175, %v6229
        %v6243 = vadd.f32 %v6176, %v6233
        %v6244 = vadd.f32 %v6177, %v6217
        %v6245 = vadd.f32 %v6178, %v6221
        %v6246 = vadd.f32 %v6179, %v6225
        %v6247 = vadd.f32 %v6180, %v6229
        %v6248 = vadd.f32 %v6181, %v6233
        %v6249 = vadd.f32 %v6182, %v6217
        %v6250 = vadd.f32 %v6183, %v6221
        %v6251 = vadd.f32 %v6184, %v6225
        %v6252 = vadd.f32 %v6185, %v6229
        %v6253 = vadd.f32 %v6186, %v6233
        %v6254 = vadd.f32 %v6187, %v6217
        %v6255 = vadd.f32 %v6188, %v6221
        %v6256 = vadd.f32 %v6189, %v6225
        %v6257 = vadd.f32 %v6190, %v6229
        %v6258 = vadd.f32 %v6191, %v6233
        %v6259 = vadd.f32 %v6192, %v6217
        %v6260 = vadd.f32 %v6193, %v6221
        %v6261 = vadd.f32 %v6194, %v6225
        %v6262 = vadd.f32 %v6195, %v6229
        %v6263 = vadd.f32 %v6196, %v6233
        %v6264 = vadd.f32 %v6197, %v6217
        %v6265 = vadd.f32 %v6198, %v6221
        %v6266 = vadd.f32 %v6199, %v6225
        %v6267 = vadd.f32 %v6200, %v6229
        %v6268 = vadd.f32 %v6201, %v6233
        %v6269 = vadd.f32 %v6202, %v6217
        %v6270 = vadd.f32 %v6203, %v6221
        %v6271 = vadd.f32 %v6204, %v6225
        %v6272 = vadd.f32 %v6205, %v6229
        %v6273 = vadd.f32 %v6206, %v6233
        %v6274 = vadd.f32 %v6207, %v6217
        %v6275 = vadd.f32 %v6208, %v6221
        %v6276 = vadd.f32 %v6209, %v6225
        %v6277 = vadd.f32 %v6210, %v6229
        %v6278 = vadd.f32 %v6211, %v6233
        %6279 = vst [vmem:[%s364] sm:$0xff] %v6239
        %6280 = vst [vmem:[%s364 + $0x8] sm:$0xff] %v6240
        %6281 = vst [vmem:[%s364 + $0x10] sm:$0xff] %v6241
        %6282 = vst [vmem:[%s364 + $0x18] sm:$0xff] %v6242
        %6283 = vst [vmem:[%s364 + $0x20] sm:$0xff] %v6243
        %6284 = vst [vmem:[%s364 + $0x28] sm:$0x3] %v6244
        %6285 = vst [vmem:[%s364 + $0x30] sm:$0x3] %v6245
        %6286 = vst [vmem:[%s364 + $0x38] sm:$0x3] %v6246
        %6287 = vst [vmem:[%s364 + $0x40] sm:$0x3] %v6247
        %6288 = vst [vmem:[%s364 + $0x48] sm:$0x3] %v6248
        %s6289 = scalar_lea.vmem %s364, 80
        %6290 = vst [vmem:[%s6289] sm:$0xff] %v6249
        %6291 = vst [vmem:[%s6289 + $0x8] sm:$0xff] %v6250
        %6292 = vst [vmem:[%s6289 + $0x10] sm:$0xff] %v6251
        %6293 = vst [vmem:[%s6289 + $0x18] sm:$0xff] %v6252
        %6294 = vst [vmem:[%s6289 + $0x20] sm:$0xff] %v6253
        %6295 = vst [vmem:[%s6289 + $0x28] sm:$0x3] %v6254
        %6296 = vst [vmem:[%s6289 + $0x30] sm:$0x3] %v6255
        %6297 = vst [vmem:[%s6289 + $0x38] sm:$0x3] %v6256
        %6298 = vst [vmem:[%s6289 + $0x40] sm:$0x3] %v6257
        %6299 = vst [vmem:[%s6289 + $0x48] sm:$0x3] %v6258
        %s6300 = scalar_lea.vmem %s364, 160
        %6301 = vst [vmem:[%s6300] sm:$0xff] %v6259
        %6302 = vst [vmem:[%s6300 + $0x8] sm:$0xff] %v6260
        %6303 = vst [vmem:[%s6300 + $0x10] sm:$0xff] %v6261
        %6304 = vst [vmem:[%s6300 + $0x18] sm:$0xff] %v6262
        %6305 = vst [vmem:[%s6300 + $0x20] sm:$0xff] %v6263
        %6306 = vst [vmem:[%s6300 + $0x28] sm:$0x3] %v6264
        %6307 = vst [vmem:[%s6300 + $0x30] sm:$0x3] %v6265
        %6308 = vst [vmem:[%s6300 + $0x38] sm:$0x3] %v6266
        %6309 = vst [vmem:[%s6300 + $0x40] sm:$0x3] %v6267
        %6310 = vst [vmem:[%s6300 + $0x48] sm:$0x3] %v6268
        %s6311 = scalar_lea.vmem %s364, 240
        %6312 = vst [vmem:[%s6311] sm:$0xff] %v6269
        %6313 = vst [vmem:[%s6311 + $0x8] sm:$0xff] %v6270
        %6314 = vst [vmem:[%s6311 + $0x10] sm:$0xff] %v6271
        %6315 = vst [vmem:[%s6311 + $0x18] sm:$0xff] %v6272
        %6316 = vst [vmem:[%s6311 + $0x20] sm:$0xff] %v6273
        %6317 = vst [vmem:[%s6311 + $0x28] sm:$0x3] %v6274
        %6318 = vst [vmem:[%s6311 + $0x30] sm:$0x3] %v6275
        %6319 = vst [vmem:[%s6311 + $0x38] sm:$0x3] %v6276
        %6320 = vst [vmem:[%s6311 + $0x40] sm:$0x3] %v6277
        %6321 = vst [vmem:[%s6311 + $0x48] sm:$0x3] %v6278
        %s6322 = smul.u32 4, %s22
        %p6323 = scmp.lt.s32.totalorder %s6322, 7
        %s6324 = scalar_select %p6323, %s6322, 7
        %s6325 = smul.addr %s6324, 10
        %s6326 = smul.addr %s6325, 8
        %s6327 = scalar_lea.vmem %s7, %s6326
        // Predicated region
        $region73: #{net_forward.1} parent=47 // pred_check
          %p6328 = pneg %p192
        $region74: #{net_forward.1} parent=47 // pred_check_branch
          %6330 = sbr.rel (%p6328) target = $region76
        $region75: #{net_forward.1} parent=47 // pred_region
          %s6331 = smul.u32 4, %s22
        $region76: #{net_forward.1} parent=47 // pred_fallthru
          _
      $region48: #{net_forward.1} parent=5 // pred_fallthru
        _
      %p6332 = scmp.le.s32.totalorder 2, %s17
      // Predicated region
      $region77: #{net_forward.1} parent=5 // pred_check
        %p6333 = pneg %p6332
      $region78: #{net_forward.1} parent=5 // pred_check_branch
        %6335 = sbr.rel (%p6333) target = $region80
      $region79: #{net_forward.1} parent=5 // pred_region
        %s6336 = ssub.s32 %s17, 2
        // Predicated region
        $region81: #{net_forward.1} parent=79 // pred_check
          %p6337 = pneg %p198
        $region82: #{net_forward.1} parent=79 // pred_check_branch
          %6339 = sbr.rel (%p6337) target = $region84
        $region83: #{net_forward.1} parent=79 // pred_region
          %s6340 = smul.u32 4, %s23
          %p6341 = scmp.lt.s32.totalorder %s6340, 7
          %s6342 = scalar_select %p6341, %s6340, 7
          %s6343 = smul.addr %s6342, 10
          %s6344 = smul.addr %s6343, 8
          %s6345 = scalar_lea.vmem %s7, %s6344
        $region84: #{net_forward.1} parent=79 // pred_fallthru
          _
      $region80: #{net_forward.1} parent=5 // pred_fallthru
        _
    $region6: #{net_forward.1} parent=1 // loop_footer
      %s21 = sadd.s32 1, %s17
    $region7: #{net_forward.1} parent=1 // loop_footer_branch
      %16 = sbr.rel target = $region3
    $region8: #{net_forward.1} parent=1 // loop_exit
      _
    %6346 = vsyncpa [#allocation5], 1
    %s6347 = scalar_lea.sflag [#allocation5], 1
    %6348 = vsyncpa %s6347, 1
    %6349 = vsyncpa [#allocation7], 1
    %6350 = vsyncpa [#allocation10], 1
    %6351 = vsyncpa [#allocation13], 1

</llo_original>
